<compile_context>
chip_gen: v7x
topology: tpu7x:2x2x1
jax: 0.10.0
libtpu: 0.0.40
codegen_flags: <defaults>
</compile_context>

<pallas_src>
import functools

import jax
import jax.numpy as jnp
from jax import lax
from jax.experimental import pallas as pl
from jax.experimental.pallas import tpu as pltpu


# ----------------------------------------------------------------------------- config
C0 = 64            # true MBConv channel width (stored zero-padded to C0P lanes)
C0P = 128          # padded / lane-dense storage width for the conv stage
CE = 128           # MBConv expanded width
C2 = 128           # transformer width
HEADS = 4
HEAD_DIM = C2 // HEADS
MLP_DIM = 256
NEG_INF = -1e30    # f32-safe cross-batch mask (bias table is kept in f32)


# ----------------------------------------------------------------------------- helpers

def _layernorm(x, g, b, n, eps=1e-5):
    """LayerNorm whose statistics only count the first `n` (real) channels.

    Assumes padded lanes of x are exactly zero and g/b are zero-padded, so padded
    lanes of the output stay zero.  For n == x.shape[-1] this is a plain LayerNorm.
    """
    inv_n = 1.0 / n
    mean = jnp.sum(x, axis=-1, keepdims=True) * inv_n
    ex2 = jnp.sum(x * x, axis=-1, keepdims=True) * inv_n
    var = ex2 - mean * mean
    return (x - mean) * lax.rsqrt(var + eps) * g + b


def _fullspec(arr):
    nd = arr.ndim
    return pl.BlockSpec(arr.shape, lambda *_: (0,) * nd)


# ----------------------------------------------------------------------------- kernel

def _coatnet_kernel(xs_ref,
                    stem_w_ref, stem_b_ref,
                    ln0_g_ref, ln0_b_ref,
                    exp_w_ref, exp_b_ref,
                    dw_tap_ref, dw_b_ref,
                    proj_w_ref, proj_b_ref,
                    pool1_ref, down_w_ref, down_b_ref,
                    aln_g_ref, aln_b_ref,
                    wq_ref, bq_ref, wk_ref, bk_ref, wv_ref, bv_ref,
                    hmask_ref, bias_ref,
                    wo_ref, bo_ref,
                    mln_g_ref, mln_b_ref,
                    w1_ref, b1_ref, w2_ref, b2_ref,
                    fln_g_ref, fln_b_ref,
                    pool2_ref, head_w_ref, head_b_ref,
                    out_ref, *, dw_shifts):
    f32, bf16 = jnp.float32, jnp.bfloat16

    # ---- stem: stride-2 patch-embed conv (space-to-depth layout) + GELU ----------------
    h0 = jnp.dot(xs_ref[...], stem_w_ref[...], preferred_element_type=f32)
    h0 = jax.nn.gelu(h0 + stem_b_ref[...])             # (BHW, C0P); padded lanes stay 0

    # ---- MBConv: LN -> expand 1x1 -> depthwise 3x3 -> project 1x1 -> residual ----------
    t0 = _layernorm(h0, ln0_g_ref[...], ln0_b_ref[...], C0)   # TODO(synk): BN stand-in
    e = jnp.dot(t0.astype(bf16), exp_w_ref[...], preferred_element_type=f32)
    e = jax.nn.gelu(e + exp_b_ref[...])                 # (BHW, CE) f32, lane-dense

    # depthwise 3x3: 9 sublane rolls (XLU) * precomputed {boundary mask x tap weight};
    # roll wrap-around rows are exactly the rows the mask zeroes.
    acc = jnp.zeros_like(e)
    for t_idx, shift in enumerate(dw_shifts):
        src = e if shift == 0 else pltpu.roll(e, shift, 0)
        acc = acc + src * dw_tap_ref[t_idx]
    d = jax.nn.gelu(acc + dw_b_ref[...])

    pr = jnp.dot(d.astype(bf16), proj_w_ref[...], preferred_element_type=f32)
    x1 = h0 + pr + proj_b_ref[...]                      # residual (BHW, C0P)

    # ---- downsample: 2x2 avg-pool (precomputed pooling matrix) + 1x1 projection --------
    pooled = jnp.dot(pool1_ref[...], x1.astype(bf16), preferred_element_type=f32)
    tok = jnp.dot(pooled.astype(bf16), down_w_ref[...], preferred_element_type=f32)
    tok = jax.nn.gelu(tok + down_b_ref[...])            # (BS, C2) lane-dense

    # ---- transformer block: relative self-attention (scale folded into wq/bq) ----------
    ta = _layernorm(tok, aln_g_ref[...], aln_b_ref[...], C2).astype(bf16)
    q = jnp.dot(ta, wq_ref[...], preferred_element_type=f32) + bq_ref[...]
    k = jnp.dot(ta, wk_ref[...], preferred_element_type=f32) + bk_ref[...]
    v = jnp.dot(ta, wv_ref[...], preferred_element_type=f32) + bv_ref[...]
    kb = k.astype(bf16)

    dimnums = (((1,), (1,)), ((), ()))                  # A @ B^T (contract last dims)
    ov = jnp.zeros_like(tok)
    for h in range(HEADS):                              # unrolled; no per-head grid steps
        mh = hmask_ref[h]                               # (1, C2) precomputed lane mask
        qh = (q * mh).astype(bf16)
        s = lax.dot_general(qh, kb, dimnums, preferred_element_type=f32)
        s = s + bias_ref[h]                             # rel-pos bias + cross-batch mask
        s = s - jnp.max(s, axis=-1, keepdims=True)
        p = jnp.exp(s)
        p = p * pl.reciprocal(jnp.sum(p, axis=-1, keepdims=True), approx=True)
        vh = (v * mh).astype(bf16)
        ov = ov + jnp.dot(p.astype(bf16), vh, preferred_element_type=f32)
    attn = jnp.dot(ov.astype(bf16), wo_ref[...], preferred_element_type=f32) + bo_ref[...]
    tok = tok + attn

    # ---- MLP ---------------------------------------------------------------------------
    m = _layernorm(tok, mln_g_ref[...], mln_b_ref[...], C2).astype(bf16)
    m = jnp.dot(m, w1_ref[...], preferred_element_type=f32) + b1_ref[...]
    m = jax.nn.gelu(m).astype(bf16)
    m = jnp.dot(m, w2_ref[...], preferred_element_type=f32) + b2_ref[...]
    tok = tok + m

    # ---- final LN -> global mean pool (matmul) -> linear head -> sigmoid ----------------
    tokf = _layernorm(tok, fln_g_ref[...], fln_b_ref[...], C2)
    pooled2 = jnp.dot(pool2_ref[...], tokf.astype(bf16), preferred_element_type=f32)
    y = jnp.dot(pooled2.astype(bf16), head_w_ref[...], preferred_element_type=f32)
    out_ref[...] = jax.nn.sigmoid(y + head_b_ref[...])  # nn.Sigmoid() of CoATNet


# ----------------------------------------------------------------------------- params

def init_params(key, in_channels=3, num_classes=1, seq=16):
    ks = jax.random.split(key, 16)
    n = lambda k, shape, fan: jax.random.normal(k, shape, jnp.float32) * (2.0 / fan) ** 0.5
    z = lambda shape: jnp.zeros(shape, jnp.float32)
    o = lambda shape: jnp.ones(shape, jnp.float32)
    return dict(
        stem_w=n(ks[0], (4 * in_channels, C0), 4 * in_channels), stem_b=z((C0,)),
        mb_ln_g=o((C0,)), mb_ln_b=z((C0,)),
        mb_exp_w=n(ks[1], (C0, CE), C0), mb_exp_b=z((CE,)),
        mb_dw_w=n(ks[2], (3, 3, CE), 9.0), mb_dw_b=z((CE,)),
        mb_proj_w=n(ks[3], (CE, C0), CE), mb_proj_b=z((C0,)),
        down_w=n(ks[4], (C0, C2), C0), down_b=z((C2,)),
        attn_ln_g=o((C2,)), attn_ln_b=z((C2,)),
        wq=n(ks[5], (C2, C2), C2), bq=z((C2,)),
        wk=n(ks[6], (C2, C2), C2), bk=z((C2,)),
        wv=n(ks[7], (C2, C2), C2), bv=z((C2,)),
        rel_bias=0.02 * jax.random.normal(ks[8], (HEADS, seq, seq), jnp.float32),
        attn_out_w=n(ks[9], (C2, C2), C2), attn_out_b=z((C2,)),
        mlp_ln_g=o((C2,)), mlp_ln_b=z((C2,)),
        mlp1_w=n(ks[10], (C2, MLP_DIM), C2), mlp1_b=z((MLP_DIM,)),
        mlp2_w=n(ks[11], (MLP_DIM, C2), MLP_DIM), mlp2_b=z((C2,)),
        final_ln_g=o((C2,)), final_ln_b=z((C2,)),
        head_w=n(ks[12], (C2, num_classes), C2), head_b=z((num_classes,)),
    )


def prepare_params(p, B, H, W):
    """One-time host-side preparation: zero-pad to lane-dense widths, cast MXU weights
    to bf16, fold the attention scale, and precompute every (B, H, W)-dependent constant
    (pooling matrices, relative-bias table, per-head lane masks, dwconv tap weights)."""
    f32, bf16 = jnp.float32, jnp.bfloat16
    H1, W1 = H // 2, W // 2
    H2, W2 = H1 // 2, W1 // 2
    S = H2 * W2
    BHW = B * H1 * W1
    BS = B * S
    assert p["rel_bias"].shape[1] == S, "rel_bias table must match the token count"

    def pad_cols(w, n):
        return jnp.pad(w, [(0, 0)] * (w.ndim - 1) + [(0, n - w.shape[-1])])

    def pad_rows(w, n):
        return jnp.pad(w, [(0, n - w.shape[0])] + [(0, 0)] * (w.ndim - 1))

    # lane-dense (zero-padded) conv-stage weights; padded lanes remain exactly zero.
    stem_w = pad_cols(pad_rows(p["stem_w"], C0P), C0P).astype(bf16)    # (128, C0P)
    stem_b = pad_cols(p["stem_b"], C0P).reshape(1, -1)
    ln0_g = pad_cols(p["mb_ln_g"], C0P).reshape(1, -1)   # zero-padded gamma kills pad lanes
    ln0_b = pad_cols(p["mb_ln_b"], C0P).reshape(1, -1)
    exp_w = pad_rows(p["mb_exp_w"], C0P).astype(bf16)                  # (C0P, CE)
    exp_b = p["mb_exp_b"].reshape(1, -1)
    proj_w = pad_cols(p["mb_proj_w"], C0P).astype(bf16)                # (CE, C0P)
    proj_b = pad_cols(p["mb_proj_b"], C0P).reshape(1, -1)
    down_w = pad_rows(p["down_w"], C0P).astype(bf16)                   # (C0P, C2)
    down_b = p["down_b"].reshape(1, -1)

    # depthwise-3x3 tap weights with the zero-padding boundary mask folded in.
    pos = jnp.arange(BHW)
    yy = (pos % (H1 * W1)) // W1
    xx = pos % W1
    taps = []
    for ky in range(3):
        for kx in range(3):
            oy, ox = ky - 1, kx - 1
            valid = ((yy + oy >= 0) & (yy + oy < H1) &
                     (xx + ox >= 0) & (xx + ox < W1)).astype(f32)
            taps.append(valid[:, None] * p["mb_dw_w"][ky, kx][None, :])
    dw_tap = jnp.stack(taps)                                           # (9, BHW, CE) f32
    dw_b = p["mb_dw_b"].reshape(1, -1)

    # 2x2 average-pool matrix (downsample) and global-mean-pool matrix.
    r, c = jnp.arange(BS), jnp.arange(BHW)
    rb, rr = r // S, r % S
    ri, rj = rr // W2, rr % W2
    cb, cr = c // (H1 * W1), c % (H1 * W1)
    cy, cx = cr // W1, cr % W1
    pool1 = jnp.where((rb[:, None] == cb[None, :]) &
                      ((cy[None, :] // 2) == ri[:, None]) &
                      ((cx[None, :] // 2) == rj[:, None]), 0.25, 0.0).astype(bf16)
    pool2 = jnp.where(jnp.arange(B)[:, None] == (jnp.arange(BS)[None, :] // S),
                      1.0 / S, 0.0).astype(bf16)

    # relative-attention bias table with cross-batch mask folded in (kept in f32).
    big = jnp.tile(p["rel_bias"], (1, B, B))
    same = (jnp.arange(BS)[:, None] // S) == (jnp.arange(BS)[None, :] // S)
    bias_tab = jnp.where(same[None], big, NEG_INF).astype(f32)         # (HEADS, BS, BS)

    # per-head lane masks; fold 1/sqrt(head_dim) into wq / bq.
    hmask = (jnp.arange(C2)[None, :] // HEAD_DIM ==
             jnp.arange(HEADS)[:, None]).astype(f32).reshape(HEADS, 1, C2)
    scale = 1.0 / (HEAD_DIM ** 0.5)

    return dict(
        stem_w=stem_w, stem_b=stem_b, ln0_g=ln0_g, ln0_b=ln0_b,
        exp_w=exp_w, exp_b=exp_b, dw_tap=dw_tap, dw_b=dw_b,
        proj_w=proj_w, proj_b=proj_b,
        pool1=pool1, down_w=down_w, down_b=down_b,
        aln_g=p["attn_ln_g"].reshape(1, -1), aln_b=p["attn_ln_b"].reshape(1, -1),
        wq=(p["wq"] * scale).astype(bf16), bq=(p["bq"] * scale).reshape(1, -1),
        wk=p["wk"].astype(bf16), bk=p["bk"].reshape(1, -1),
        wv=p["wv"].astype(bf16), bv=p["bv"].reshape(1, -1),
        hmask=hmask, bias_tab=bias_tab,
        wo=p["attn_out_w"].astype(bf16), bo=p["attn_out_b"].reshape(1, -1),
        mln_g=p["mlp_ln_g"].reshape(1, -1), mln_b=p["mlp_ln_b"].reshape(1, -1),
        w1=p["mlp1_w"].astype(bf16), b1=p["mlp1_b"].reshape(1, -1),
        w2=p["mlp2_w"].astype(bf16), b2=p["mlp2_b"].reshape(1, -1),
        fln_g=p["final_ln_g"].reshape(1, -1), fln_b=p["final_ln_b"].reshape(1, -1),
        pool2=pool2, head_w=p["head_w"].astype(bf16), head_b=p["head_b"].reshape(1, -1),
    )


# ----------------------------------------------------------------------------- forward

def coatnet_forward(x_nchw, pp):
    """x_nchw: (B, Cin, H, W) float32 -> (B, num_classes) in (0, 1)."""
    B, Cin, H, W = x_nchw.shape
    H1, W1 = H // 2, W // 2
    BHW = B * H1 * W1
    NC = pp["head_w"].shape[1]

    # Space-to-depth(2): the stride-2 stem conv becomes one matmul (pure layout, 1x data);
    # pad the 4*Cin features to the lane-dense stem-weight width.
    x = jnp.transpose(x_nchw, (0, 2, 3, 1))
    xs = x.reshape(B, H1, 2, W1, 2, Cin).transpose(0, 1, 3, 2, 4, 5).reshape(BHW, 4 * Cin)
    xs = jnp.pad(xs, ((0, 0), (0, pp["stem_w"].shape[0] - 4 * Cin))).astype(jnp.bfloat16)

    # Static roll amounts for the depthwise 3x3 taps ((ky, kx) row-major, matching dw_tap).
    dw_shifts = tuple((-(ky - 1) * W1 - (kx - 1)) % BHW
                      for ky in range(3) for kx in range(3))

    args = (
        xs,
        pp["stem_w"], pp["stem_b"], pp["ln0_g"], pp["ln0_b"],
        pp["exp_w"], pp["exp_b"], pp["dw_tap"], pp["dw_b"],
        pp["proj_w"], pp["proj_b"],
        pp["pool1"], pp["down_w"], pp["down_b"],
        pp["aln_g"], pp["aln_b"],
        pp["wq"], pp["bq"], pp["wk"], pp["bk"], pp["wv"], pp["bv"],
        pp["hmask"], pp["bias_tab"],
        pp["wo"], pp["bo"],
        pp["mln_g"], pp["mln_b"],
        pp["w1"], pp["b1"], pp["w2"], pp["b2"],
        pp["fln_g"], pp["fln_b"],
        pp["pool2"], pp["head_w"], pp["head_b"],
    )
    # TODO(synk): at real resolutions, add a row-tile grid with
    # dimension_semantics=("parallel", ..., "arbitrary"), Buffered weight specs and an
    # explicit vmem_limit_bytes (v7x: 64 MiB VMEM, 2 TensorCores); grid=(1,) keeps
    # everything VMEM-resident at these toy shapes.
    return pl.pallas_call(
        functools.partial(_coatnet_kernel, dw_shifts=dw_shifts),
        out_shape=jax.ShapeDtypeStruct((B, NC), jnp.float32),
        grid=(1,),
        in_specs=[_fullspec(a) for a in args],
        out_specs=pl.BlockSpec((B, NC), lambda *_: (0, 0)),
    )(*args)


# ----------------------------------------------------------------------------- main

if __name__ == "__main__":
    key = jax.random.PRNGKey(0)
    k_param, k_x = jax.random.split(key)

    B, CIN, H, W = 2, 3, 16, 16
    params = init_params(k_param, in_channels=CIN, num_classes=1)
    pp = prepare_params(params, B, H, W)                  # one-time constant prep
    x = jax.random.normal(k_x, (B, CIN, H, W), jnp.float32)   # NCHW input

    fwd = jax.jit(coatnet_forward)
    y = jax.block_until_ready(fwd(x, pp))

    assert y.shape == (B, 1)
    assert bool(jnp.all((y > 0.0) & (y < 1.0)))
    print("KERNEL_OK")
</pallas_src>

<mosaic_0001>
module attributes {stable_mosaic.version = 11 : i64} {
  func.func @_coatnet_kernel(%arg0: i32, %arg1: memref<128x128xbf16, #tpu.memory_space<vmem>>, %arg2: memref<128x128xbf16, #tpu.memory_space<vmem>>, %arg3: memref<1x128xf32, #tpu.memory_space<vmem>>, %arg4: memref<1x128xf32, #tpu.memory_space<vmem>>, %arg5: memref<1x128xf32, #tpu.memory_space<vmem>>, %arg6: memref<128x128xbf16, #tpu.memory_space<vmem>>, %arg7: memref<1x128xf32, #tpu.memory_space<vmem>>, %arg8: memref<9x128x128xf32, #tpu.memory_space<vmem>>, %arg9: memref<1x128xf32, #tpu.memory_space<vmem>>, %arg10: memref<128x128xbf16, #tpu.memory_space<vmem>>, %arg11: memref<1x128xf32, #tpu.memory_space<vmem>>, %arg12: memref<32x128xbf16, #tpu.memory_space<vmem>>, %arg13: memref<128x128xbf16, #tpu.memory_space<vmem>>, %arg14: memref<1x128xf32, #tpu.memory_space<vmem>>, %arg15: memref<1x128xf32, #tpu.memory_space<vmem>>, %arg16: memref<1x128xf32, #tpu.memory_space<vmem>>, %arg17: memref<128x128xbf16, #tpu.memory_space<vmem>>, %arg18: memref<1x128xf32, #tpu.memory_space<vmem>>, %arg19: memref<128x128xbf16, #tpu.memory_space<vmem>>, %arg20: memref<1x128xf32, #tpu.memory_space<vmem>>, %arg21: memref<128x128xbf16, #tpu.memory_space<vmem>>, %arg22: memref<1x128xf32, #tpu.memory_space<vmem>>, %arg23: memref<4x1x128xf32, #tpu.memory_space<vmem>>, %arg24: memref<4x32x32xf32, #tpu.memory_space<vmem>>, %arg25: memref<128x128xbf16, #tpu.memory_space<vmem>>, %arg26: memref<1x128xf32, #tpu.memory_space<vmem>>, %arg27: memref<1x128xf32, #tpu.memory_space<vmem>>, %arg28: memref<1x128xf32, #tpu.memory_space<vmem>>, %arg29: memref<128x256xbf16, #tpu.memory_space<vmem>>, %arg30: memref<1x256xf32, #tpu.memory_space<vmem>>, %arg31: memref<256x128xbf16, #tpu.memory_space<vmem>>, %arg32: memref<1x128xf32, #tpu.memory_space<vmem>>, %arg33: memref<1x128xf32, #tpu.memory_space<vmem>>, %arg34: memref<1x128xf32, #tpu.memory_space<vmem>>, %arg35: memref<2x32xbf16, #tpu.memory_space<vmem>>, %arg36: memref<128x1xbf16, #tpu.memory_space<vmem>>, %arg37: memref<1x1xf32, #tpu.memory_space<vmem>>, %arg38: memref<2x1xf32, #tpu.memory_space<vmem>>) attributes {dimension_semantics = [#tpu.dimension_semantics<arbitrary>], iteration_bounds = array<i64: 1>, scalar_prefetch = 0 : i64, scratch_operands = 0 : i64, tpu.core_type = #tpu.core_type<tc>, window_params = [{pipeline_mode = #tpu.pipeline_mode<synchronous>, transform_indices = @transform_0, window_bounds = array<i64: 128, 128>}, {pipeline_mode = #tpu.pipeline_mode<synchronous>, transform_indices = @transform_1, window_bounds = array<i64: 128, 128>}, {pipeline_mode = #tpu.pipeline_mode<synchronous>, transform_indices = @transform_2, window_bounds = array<i64: 1, 128>}, {pipeline_mode = #tpu.pipeline_mode<synchronous>, transform_indices = @transform_3, window_bounds = array<i64: 1, 128>}, {pipeline_mode = #tpu.pipeline_mode<synchronous>, transform_indices = @transform_4, window_bounds = array<i64: 1, 128>}, {pipeline_mode = #tpu.pipeline_mode<synchronous>, transform_indices = @transform_5, window_bounds = array<i64: 128, 128>}, {pipeline_mode = #tpu.pipeline_mode<synchronous>, transform_indices = @transform_6, window_bounds = array<i64: 1, 128>}, {pipeline_mode = #tpu.pipeline_mode<synchronous>, transform_indices = @transform_7, window_bounds = array<i64: 9, 128, 128>}, {pipeline_mode = #tpu.pipeline_mode<synchronous>, transform_indices = @transform_8, window_bounds = array<i64: 1, 128>}, {pipeline_mode = #tpu.pipeline_mode<synchronous>, transform_indices = @transform_9, window_bounds = array<i64: 128, 128>}, {pipeline_mode = #tpu.pipeline_mode<synchronous>, transform_indices = @transform_10, window_bounds = array<i64: 1, 128>}, {pipeline_mode = #tpu.pipeline_mode<synchronous>, transform_indices = @transform_11, window_bounds = array<i64: 32, 128>}, {pipeline_mode = #tpu.pipeline_mode<synchronous>, transform_indices = @transform_12, window_bounds = array<i64: 128, 128>}, {pipeline_mode = #tpu.pipeline_mode<synchronous>, transform_indices = @transform_13, window_bounds = array<i64: 1, 128>}, {pipeline_mode = #tpu.pipeline_mode<synchronous>, transform_indices = @transform_14, window_bounds = array<i64: 1, 128>}, {pipeline_mode = #tpu.pipeline_mode<synchronous>, transform_indices = @transform_15, window_bounds = array<i64: 1, 128>}, {pipeline_mode = #tpu.pipeline_mode<synchronous>, transform_indices = @transform_16, window_bounds = array<i64: 128, 128>}, {pipeline_mode = #tpu.pipeline_mode<synchronous>, transform_indices = @transform_17, window_bounds = array<i64: 1, 128>}, {pipeline_mode = #tpu.pipeline_mode<synchronous>, transform_indices = @transform_18, window_bounds = array<i64: 128, 128>}, {pipeline_mode = #tpu.pipeline_mode<synchronous>, transform_indices = @transform_19, window_bounds = array<i64: 1, 128>}, {pipeline_mode = #tpu.pipeline_mode<synchronous>, transform_indices = @transform_20, window_bounds = array<i64: 128, 128>}, {pipeline_mode = #tpu.pipeline_mode<synchronous>, transform_indices = @transform_21, window_bounds = array<i64: 1, 128>}, {pipeline_mode = #tpu.pipeline_mode<synchronous>, transform_indices = @transform_22, window_bounds = array<i64: 4, 1, 128>}, {pipeline_mode = #tpu.pipeline_mode<synchronous>, transform_indices = @transform_23, window_bounds = array<i64: 4, 32, 32>}, {pipeline_mode = #tpu.pipeline_mode<synchronous>, transform_indices = @transform_24, window_bounds = array<i64: 128, 128>}, {pipeline_mode = #tpu.pipeline_mode<synchronous>, transform_indices = @transform_25, window_bounds = array<i64: 1, 128>}, {pipeline_mode = #tpu.pipeline_mode<synchronous>, transform_indices = @transform_26, window_bounds = array<i64: 1, 128>}, {pipeline_mode = #tpu.pipeline_mode<synchronous>, transform_indices = @transform_27, window_bounds = array<i64: 1, 128>}, {pipeline_mode = #tpu.pipeline_mode<synchronous>, transform_indices = @transform_28, window_bounds = array<i64: 128, 256>}, {pipeline_mode = #tpu.pipeline_mode<synchronous>, transform_indices = @transform_29, window_bounds = array<i64: 1, 256>}, {pipeline_mode = #tpu.pipeline_mode<synchronous>, transform_indices = @transform_30, window_bounds = array<i64: 256, 128>}, {pipeline_mode = #tpu.pipeline_mode<synchronous>, transform_indices = @transform_31, window_bounds = array<i64: 1, 128>}, {pipeline_mode = #tpu.pipeline_mode<synchronous>, transform_indices = @transform_32, window_bounds = array<i64: 1, 128>}, {pipeline_mode = #tpu.pipeline_mode<synchronous>, transform_indices = @transform_33, window_bounds = array<i64: 1, 128>}, {pipeline_mode = #tpu.pipeline_mode<synchronous>, transform_indices = @transform_34, window_bounds = array<i64: 2, 32>}, {pipeline_mode = #tpu.pipeline_mode<synchronous>, transform_indices = @transform_35, window_bounds = array<i64: 128, 1>}, {pipeline_mode = #tpu.pipeline_mode<synchronous>, transform_indices = @transform_36, window_bounds = array<i64: 1, 1>}, {pipeline_mode = #tpu.pipeline_mode<synchronous>, transform_indices = @transform_37, window_bounds = array<i64: 2, 1>}]} {
    %c0 = arith.constant 0 : index
    %c0_0 = arith.constant 0 : index
    %0 = vector.load %arg1[%c0, %c0_0] : memref<128x128xbf16, #tpu.memory_space<vmem>>, vector<128x128xbf16>
    %c0_1 = arith.constant 0 : index
    %c0_2 = arith.constant 0 : index
    %1 = vector.load %arg2[%c0_1, %c0_2] : memref<128x128xbf16, #tpu.memory_space<vmem>>, vector<128x128xbf16>
    %cst = arith.constant dense<0.000000e+00> : vector<128x128xf32>
    %2 = tpu.matmul %0, %1, %cst {dimension_numbers = #tpu.dot_dimension_numbers<[1], [0], [0], [1], [0, 0, 1, 1], [], []>} : vector<128x128xbf16>, vector<128x128xbf16>, vector<128x128xf32> -> vector<128x128xf32>
    %c0_3 = arith.constant 0 : index
    %c0_4 = arith.constant 0 : index
    %3 = vector.load %arg3[%c0_3, %c0_4] : memref<1x128xf32, #tpu.memory_space<vmem>>, vector<1x128xf32>
    %4 = vector.broadcast %3 : vector<1x128xf32> to vector<128x128xf32>
    %5 = arith.addf %2, %4 : vector<128x128xf32>
    %6 = arith.mulf %5, %5 : vector<128x128xf32>
    %7 = arith.mulf %5, %6 : vector<128x128xf32>
    %cst_5 = arith.constant 4.471500e-02 : f32
    %8 = vector.broadcast %cst_5 : f32 to vector<128x128xf32>
    %9 = arith.mulf %8, %7 : vector<128x128xf32>
    %10 = arith.addf %5, %9 : vector<128x128xf32>
    %cst_6 = arith.constant 0.797884583 : f32
    %11 = vector.broadcast %cst_6 : f32 to vector<128x128xf32>
    %12 = arith.mulf %11, %10 : vector<128x128xf32>
    %13 = math.tanh %12 : vector<128x128xf32>
    %cst_7 = arith.constant 1.000000e+00 : f32
    %14 = vector.broadcast %cst_7 : f32 to vector<128x128xf32>
    %15 = arith.addf %14, %13 : vector<128x128xf32>
    %cst_8 = arith.constant 5.000000e-01 : f32
    %16 = vector.broadcast %cst_8 : f32 to vector<128x128xf32>
    %17 = arith.mulf %16, %15 : vector<128x128xf32>
    %18 = arith.mulf %5, %17 : vector<128x128xf32>
    %c0_9 = arith.constant 0 : index
    %c0_10 = arith.constant 0 : index
    %19 = vector.load %arg4[%c0_9, %c0_10] : memref<1x128xf32, #tpu.memory_space<vmem>>, vector<1x128xf32>
    %c0_11 = arith.constant 0 : index
    %c0_12 = arith.constant 0 : index
    %20 = vector.load %arg5[%c0_11, %c0_12] : memref<1x128xf32, #tpu.memory_space<vmem>>, vector<1x128xf32>
    %cst_13 = arith.constant dense<0.000000e+00> : vector<128xf32>
    %21 = vector.multi_reduction <add>, %18, %cst_13 [1] : vector<128x128xf32> to vector<128xf32>
    %22 = vector.shape_cast %21 : vector<128xf32> to vector<128x1xf32>
    %cst_14 = arith.constant 1.562500e-02 : f32
    %23 = vector.broadcast %cst_14 : f32 to vector<128x1xf32>
    %24 = arith.mulf %22, %23 : vector<128x1xf32>
    %25 = arith.mulf %18, %18 : vector<128x128xf32>
    %cst_15 = arith.constant dense<0.000000e+00> : vector<128xf32>
    %26 = vector.multi_reduction <add>, %25, %cst_15 [1] : vector<128x128xf32> to vector<128xf32>
    %27 = vector.shape_cast %26 : vector<128xf32> to vector<128x1xf32>
    %cst_16 = arith.constant 1.562500e-02 : f32
    %28 = vector.broadcast %cst_16 : f32 to vector<128x1xf32>
    %29 = arith.mulf %27, %28 : vector<128x1xf32>
    %30 = arith.mulf %24, %24 : vector<128x1xf32>
    %31 = arith.subf %29, %30 : vector<128x1xf32>
    %32 = vector.broadcast %24 : vector<128x1xf32> to vector<128x128xf32>
    %33 = arith.subf %18, %32 : vector<128x128xf32>
    %cst_17 = arith.constant 9.99999974E-6 : f32
    %34 = vector.broadcast %cst_17 : f32 to vector<128x1xf32>
    %35 = arith.addf %31, %34 : vector<128x1xf32>
    %36 = math.rsqrt %35 : vector<128x1xf32>
    %37 = vector.broadcast %36 : vector<128x1xf32> to vector<128x128xf32>
    %38 = arith.mulf %33, %37 : vector<128x128xf32>
    %39 = vector.broadcast %19 : vector<1x128xf32> to vector<128x128xf32>
    %40 = arith.mulf %38, %39 : vector<128x128xf32>
    %41 = vector.broadcast %20 : vector<1x128xf32> to vector<128x128xf32>
    %42 = arith.addf %40, %41 : vector<128x128xf32>
    %43 = arith.truncf %42 : vector<128x128xf32> to vector<128x128xbf16>
    %c0_18 = arith.constant 0 : index
    %c0_19 = arith.constant 0 : index
    %44 = vector.load %arg6[%c0_18, %c0_19] : memref<128x128xbf16, #tpu.memory_space<vmem>>, vector<128x128xbf16>
    %cst_20 = arith.constant dense<0.000000e+00> : vector<128x128xf32>
    %45 = tpu.matmul %43, %44, %cst_20 {dimension_numbers = #tpu.dot_dimension_numbers<[1], [0], [0], [1], [0, 0, 1, 1], [], []>} : vector<128x128xbf16>, vector<128x128xbf16>, vector<128x128xf32> -> vector<128x128xf32>
    %c0_21 = arith.constant 0 : index
    %c0_22 = arith.constant 0 : index
    %46 = vector.load %arg7[%c0_21, %c0_22] : memref<1x128xf32, #tpu.memory_space<vmem>>, vector<1x128xf32>
    %47 = vector.broadcast %46 : vector<1x128xf32> to vector<128x128xf32>
    %48 = arith.addf %45, %47 : vector<128x128xf32>
    %49 = arith.mulf %48, %48 : vector<128x128xf32>
    %50 = arith.mulf %48, %49 : vector<128x128xf32>
    %cst_23 = arith.constant 4.471500e-02 : f32
    %51 = vector.broadcast %cst_23 : f32 to vector<128x128xf32>
    %52 = arith.mulf %51, %50 : vector<128x128xf32>
    %53 = arith.addf %48, %52 : vector<128x128xf32>
    %cst_24 = arith.constant 0.797884583 : f32
    %54 = vector.broadcast %cst_24 : f32 to vector<128x128xf32>
    %55 = arith.mulf %54, %53 : vector<128x128xf32>
    %56 = math.tanh %55 : vector<128x128xf32>
    %cst_25 = arith.constant 1.000000e+00 : f32
    %57 = vector.broadcast %cst_25 : f32 to vector<128x128xf32>
    %58 = arith.addf %57, %56 : vector<128x128xf32>
    %cst_26 = arith.constant 5.000000e-01 : f32
    %59 = vector.broadcast %cst_26 : f32 to vector<128x128xf32>
    %60 = arith.mulf %59, %58 : vector<128x128xf32>
    %61 = arith.mulf %48, %60 : vector<128x128xf32>
    %cst_27 = arith.constant 0.000000e+00 : f32
    %62 = vector.broadcast %cst_27 : f32 to vector<128x128xf32>
    %c9_i32 = arith.constant 9 : i32
    %63 = tpu.dynamic_rotate %61 by %c9_i32 dim 0 : vector<128x128xf32>, i32 -> vector<128x128xf32>
    %c0_28 = arith.constant 0 : index
    %c0_29 = arith.constant 0 : index
    %c0_30 = arith.constant 0 : index
    %64 = vector.load %arg8[%c0_28, %c0_29, %c0_30] : memref<9x128x128xf32, #tpu.memory_space<vmem>>, vector<1x128x128xf32>
    %65 = vector.shape_cast %64 : vector<1x128x128xf32> to vector<128x128xf32>
    %66 = arith.mulf %63, %65 : vector<128x128xf32>
    %67 = arith.addf %62, %66 : vector<128x128xf32>
    %c8_i32 = arith.constant 8 : i32
    %68 = tpu.dynamic_rotate %61 by %c8_i32 dim 0 : vector<128x128xf32>, i32 -> vector<128x128xf32>
    %c1 = arith.constant 1 : index
    %c0_31 = arith.constant 0 : index
    %c0_32 = arith.constant 0 : index
    %69 = vector.load %arg8[%c1, %c0_31, %c0_32] : memref<9x128x128xf32, #tpu.memory_space<vmem>>, vector<1x128x128xf32>
    %70 = vector.shape_cast %69 : vector<1x128x128xf32> to vector<128x128xf32>
    %71 = arith.mulf %68, %70 : vector<128x128xf32>
    %72 = arith.addf %67, %71 : vector<128x128xf32>
    %c7_i32 = arith.constant 7 : i32
    %73 = tpu.dynamic_rotate %61 by %c7_i32 dim 0 : vector<128x128xf32>, i32 -> vector<128x128xf32>
    %c2 = arith.constant 2 : index
    %c0_33 = arith.constant 0 : index
    %c0_34 = arith.constant 0 : index
    %74 = vector.load %arg8[%c2, %c0_33, %c0_34] : memref<9x128x128xf32, #tpu.memory_space<vmem>>, vector<1x128x128xf32>
    %75 = vector.shape_cast %74 : vector<1x128x128xf32> to vector<128x128xf32>
    %76 = arith.mulf %73, %75 : vector<128x128xf32>
    %77 = arith.addf %72, %76 : vector<128x128xf32>
    %c1_i32 = arith.constant 1 : i32
    %78 = tpu.dynamic_rotate %61 by %c1_i32 dim 0 : vector<128x128xf32>, i32 -> vector<128x128xf32>
    %c3 = arith.constant 3 : index
    %c0_35 = arith.constant 0 : index
    %c0_36 = arith.constant 0 : index
    %79 = vector.load %arg8[%c3, %c0_35, %c0_36] : memref<9x128x128xf32, #tpu.memory_space<vmem>>, vector<1x128x128xf32>
    %80 = vector.shape_cast %79 : vector<1x128x128xf32> to vector<128x128xf32>
    %81 = arith.mulf %78, %80 : vector<128x128xf32>
    %82 = arith.addf %77, %81 : vector<128x128xf32>
    %c4 = arith.constant 4 : index
    %c0_37 = arith.constant 0 : index
    %c0_38 = arith.constant 0 : index
    %83 = vector.load %arg8[%c4, %c0_37, %c0_38] : memref<9x128x128xf32, #tpu.memory_space<vmem>>, vector<1x128x128xf32>
    %84 = vector.shape_cast %83 : vector<1x128x128xf32> to vector<128x128xf32>
    %85 = arith.mulf %61, %84 : vector<128x128xf32>
    %86 = arith.addf %82, %85 : vector<128x128xf32>
    %c127_i32 = arith.constant 127 : i32
    %87 = tpu.dynamic_rotate %61 by %c127_i32 dim 0 : vector<128x128xf32>, i32 -> vector<128x128xf32>
    %c5 = arith.constant 5 : index
    %c0_39 = arith.constant 0 : index
    %c0_40 = arith.constant 0 : index
    %88 = vector.load %arg8[%c5, %c0_39, %c0_40] : memref<9x128x128xf32, #tpu.memory_space<vmem>>, vector<1x128x128xf32>
    %89 = vector.shape_cast %88 : vector<1x128x128xf32> to vector<128x128xf32>
    %90 = arith.mulf %87, %89 : vector<128x128xf32>
    %91 = arith.addf %86, %90 : vector<128x128xf32>
    %c121_i32 = arith.constant 121 : i32
    %92 = tpu.dynamic_rotate %61 by %c121_i32 dim 0 : vector<128x128xf32>, i32 -> vector<128x128xf32>
    %c6 = arith.constant 6 : index
    %c0_41 = arith.constant 0 : index
    %c0_42 = arith.constant 0 : index
    %93 = vector.load %arg8[%c6, %c0_41, %c0_42] : memref<9x128x128xf32, #tpu.memory_space<vmem>>, vector<1x128x128xf32>
    %94 = vector.shape_cast %93 : vector<1x128x128xf32> to vector<128x128xf32>
    %95 = arith.mulf %92, %94 : vector<128x128xf32>
    %96 = arith.addf %91, %95 : vector<128x128xf32>
    %c120_i32 = arith.constant 120 : i32
    %97 = tpu.dynamic_rotate %61 by %c120_i32 dim 0 : vector<128x128xf32>, i32 -> vector<128x128xf32>
    %c7 = arith.constant 7 : index
    %c0_43 = arith.constant 0 : index
    %c0_44 = arith.constant 0 : index
    %98 = vector.load %arg8[%c7, %c0_43, %c0_44] : memref<9x128x128xf32, #tpu.memory_space<vmem>>, vector<1x128x128xf32>
    %99 = vector.shape_cast %98 : vector<1x128x128xf32> to vector<128x128xf32>
    %100 = arith.mulf %97, %99 : vector<128x128xf32>
    %101 = arith.addf %96, %100 : vector<128x128xf32>
    %c119_i32 = arith.constant 119 : i32
    %102 = tpu.dynamic_rotate %61 by %c119_i32 dim 0 : vector<128x128xf32>, i32 -> vector<128x128xf32>
    %c8 = arith.constant 8 : index
    %c0_45 = arith.constant 0 : index
    %c0_46 = arith.constant 0 : index
    %103 = vector.load %arg8[%c8, %c0_45, %c0_46] : memref<9x128x128xf32, #tpu.memory_space<vmem>>, vector<1x128x128xf32>
    %104 = vector.shape_cast %103 : vector<1x128x128xf32> to vector<128x128xf32>
    %105 = arith.mulf %102, %104 : vector<128x128xf32>
    %106 = arith.addf %101, %105 : vector<128x128xf32>
    %c0_47 = arith.constant 0 : index
    %c0_48 = arith.constant 0 : index
    %107 = vector.load %arg9[%c0_47, %c0_48] : memref<1x128xf32, #tpu.memory_space<vmem>>, vector<1x128xf32>
    %108 = vector.broadcast %107 : vector<1x128xf32> to vector<128x128xf32>
    %109 = arith.addf %106, %108 : vector<128x128xf32>
    %110 = arith.mulf %109, %109 : vector<128x128xf32>
    %111 = arith.mulf %109, %110 : vector<128x128xf32>
    %cst_49 = arith.constant 4.471500e-02 : f32
    %112 = vector.broadcast %cst_49 : f32 to vector<128x128xf32>
    %113 = arith.mulf %112, %111 : vector<128x128xf32>
    %114 = arith.addf %109, %113 : vector<128x128xf32>
    %cst_50 = arith.constant 0.797884583 : f32
    %115 = vector.broadcast %cst_50 : f32 to vector<128x128xf32>
    %116 = arith.mulf %115, %114 : vector<128x128xf32>
    %117 = math.tanh %116 : vector<128x128xf32>
    %cst_51 = arith.constant 1.000000e+00 : f32
    %118 = vector.broadcast %cst_51 : f32 to vector<128x128xf32>
    %119 = arith.addf %118, %117 : vector<128x128xf32>
    %cst_52 = arith.constant 5.000000e-01 : f32
    %120 = vector.broadcast %cst_52 : f32 to vector<128x128xf32>
    %121 = arith.mulf %120, %119 : vector<128x128xf32>
    %122 = arith.mulf %109, %121 : vector<128x128xf32>
    %123 = arith.truncf %122 : vector<128x128xf32> to vector<128x128xbf16>
    %c0_53 = arith.constant 0 : index
    %c0_54 = arith.constant 0 : index
    %124 = vector.load %arg10[%c0_53, %c0_54] : memref<128x128xbf16, #tpu.memory_space<vmem>>, vector<128x128xbf16>
    %cst_55 = arith.constant dense<0.000000e+00> : vector<128x128xf32>
    %125 = tpu.matmul %123, %124, %cst_55 {dimension_numbers = #tpu.dot_dimension_numbers<[1], [0], [0], [1], [0, 0, 1, 1], [], []>} : vector<128x128xbf16>, vector<128x128xbf16>, vector<128x128xf32> -> vector<128x128xf32>
    %126 = arith.addf %18, %125 : vector<128x128xf32>
    %c0_56 = arith.constant 0 : index
    %c0_57 = arith.constant 0 : index
    %127 = vector.load %arg11[%c0_56, %c0_57] : memref<1x128xf32, #tpu.memory_space<vmem>>, vector<1x128xf32>
    %128 = vector.broadcast %127 : vector<1x128xf32> to vector<128x128xf32>
    %129 = arith.addf %126, %128 : vector<128x128xf32>
    %c0_58 = arith.constant 0 : index
    %c0_59 = arith.constant 0 : index
    %130 = vector.load %arg12[%c0_58, %c0_59] : memref<32x128xbf16, #tpu.memory_space<vmem>>, vector<32x128xbf16>
    %131 = arith.truncf %129 : vector<128x128xf32> to vector<128x128xbf16>
    %cst_60 = arith.constant dense<0.000000e+00> : vector<32x128xf32>
    %132 = tpu.matmul %130, %131, %cst_60 {dimension_numbers = #tpu.dot_dimension_numbers<[1], [0], [0], [1], [0, 0, 1, 1], [], []>} : vector<32x128xbf16>, vector<128x128xbf16>, vector<32x128xf32> -> vector<32x128xf32>
    %133 = arith.truncf %132 : vector<32x128xf32> to vector<32x128xbf16>
    %c0_61 = arith.constant 0 : index
    %c0_62 = arith.constant 0 : index
    %134 = vector.load %arg13[%c0_61, %c0_62] : memref<128x128xbf16, #tpu.memory_space<vmem>>, vector<128x128xbf16>
    %cst_63 = arith.constant dense<0.000000e+00> : vector<32x128xf32>
    %135 = tpu.matmul %133, %134, %cst_63 {dimension_numbers = #tpu.dot_dimension_numbers<[1], [0], [0], [1], [0, 0, 1, 1], [], []>} : vector<32x128xbf16>, vector<128x128xbf16>, vector<32x128xf32> -> vector<32x128xf32>
    %c0_64 = arith.constant 0 : index
    %c0_65 = arith.constant 0 : index
    %136 = vector.load %arg14[%c0_64, %c0_65] : memref<1x128xf32, #tpu.memory_space<vmem>>, vector<1x128xf32>
    %137 = vector.broadcast %136 : vector<1x128xf32> to vector<32x128xf32>
    %138 = arith.addf %135, %137 : vector<32x128xf32>
    %139 = arith.mulf %138, %138 : vector<32x128xf32>
    %140 = arith.mulf %138, %139 : vector<32x128xf32>
    %cst_66 = arith.constant 4.471500e-02 : f32
    %141 = vector.broadcast %cst_66 : f32 to vector<32x128xf32>
    %142 = arith.mulf %141, %140 : vector<32x128xf32>
    %143 = arith.addf %138, %142 : vector<32x128xf32>
    %cst_67 = arith.constant 0.797884583 : f32
    %144 = vector.broadcast %cst_67 : f32 to vector<32x128xf32>
    %145 = arith.mulf %144, %143 : vector<32x128xf32>
    %146 = math.tanh %145 : vector<32x128xf32>
    %cst_68 = arith.constant 1.000000e+00 : f32
    %147 = vector.broadcast %cst_68 : f32 to vector<32x128xf32>
    %148 = arith.addf %147, %146 : vector<32x128xf32>
    %cst_69 = arith.constant 5.000000e-01 : f32
    %149 = vector.broadcast %cst_69 : f32 to vector<32x128xf32>
    %150 = arith.mulf %149, %148 : vector<32x128xf32>
    %151 = arith.mulf %138, %150 : vector<32x128xf32>
    %c0_70 = arith.constant 0 : index
    %c0_71 = arith.constant 0 : index
    %152 = vector.load %arg15[%c0_70, %c0_71] : memref<1x128xf32, #tpu.memory_space<vmem>>, vector<1x128xf32>
    %c0_72 = arith.constant 0 : index
    %c0_73 = arith.constant 0 : index
    %153 = vector.load %arg16[%c0_72, %c0_73] : memref<1x128xf32, #tpu.memory_space<vmem>>, vector<1x128xf32>
    %cst_74 = arith.constant dense<0.000000e+00> : vector<32xf32>
    %154 = vector.multi_reduction <add>, %151, %cst_74 [1] : vector<32x128xf32> to vector<32xf32>
    %155 = vector.shape_cast %154 : vector<32xf32> to vector<32x1xf32>
    %cst_75 = arith.constant 7.812500e-03 : f32
    %156 = vector.broadcast %cst_75 : f32 to vector<32x1xf32>
    %157 = arith.mulf %155, %156 : vector<32x1xf32>
    %158 = arith.mulf %151, %151 : vector<32x128xf32>
    %cst_76 = arith.constant dense<0.000000e+00> : vector<32xf32>
    %159 = vector.multi_reduction <add>, %158, %cst_76 [1] : vector<32x128xf32> to vector<32xf32>
    %160 = vector.shape_cast %159 : vector<32xf32> to vector<32x1xf32>
    %cst_77 = arith.constant 7.812500e-03 : f32
    %161 = vector.broadcast %cst_77 : f32 to vector<32x1xf32>
    %162 = arith.mulf %160, %161 : vector<32x1xf32>
    %163 = arith.mulf %157, %157 : vector<32x1xf32>
    %164 = arith.subf %162, %163 : vector<32x1xf32>
    %165 = vector.broadcast %157 : vector<32x1xf32> to vector<32x128xf32>
    %166 = arith.subf %151, %165 : vector<32x128xf32>
    %cst_78 = arith.constant 9.99999974E-6 : f32
    %167 = vector.broadcast %cst_78 : f32 to vector<32x1xf32>
    %168 = arith.addf %164, %167 : vector<32x1xf32>
    %169 = math.rsqrt %168 : vector<32x1xf32>
    %170 = vector.broadcast %169 : vector<32x1xf32> to vector<32x128xf32>
    %171 = arith.mulf %166, %170 : vector<32x128xf32>
    %172 = vector.broadcast %152 : vector<1x128xf32> to vector<32x128xf32>
    %173 = arith.mulf %171, %172 : vector<32x128xf32>
    %174 = vector.broadcast %153 : vector<1x128xf32> to vector<32x128xf32>
    %175 = arith.addf %173, %174 : vector<32x128xf32>
    %176 = arith.truncf %175 : vector<32x128xf32> to vector<32x128xbf16>
    %c0_79 = arith.constant 0 : index
    %c0_80 = arith.constant 0 : index
    %177 = vector.load %arg17[%c0_79, %c0_80] : memref<128x128xbf16, #tpu.memory_space<vmem>>, vector<128x128xbf16>
    %cst_81 = arith.constant dense<0.000000e+00> : vector<32x128xf32>
    %178 = tpu.matmul %176, %177, %cst_81 {dimension_numbers = #tpu.dot_dimension_numbers<[1], [0], [0], [1], [0, 0, 1, 1], [], []>} : vector<32x128xbf16>, vector<128x128xbf16>, vector<32x128xf32> -> vector<32x128xf32>
    %c0_82 = arith.constant 0 : index
    %c0_83 = arith.constant 0 : index
    %179 = vector.load %arg18[%c0_82, %c0_83] : memref<1x128xf32, #tpu.memory_space<vmem>>, vector<1x128xf32>
    %180 = vector.broadcast %179 : vector<1x128xf32> to vector<32x128xf32>
    %181 = arith.addf %178, %180 : vector<32x128xf32>
    %c0_84 = arith.constant 0 : index
    %c0_85 = arith.constant 0 : index
    %182 = vector.load %arg19[%c0_84, %c0_85] : memref<128x128xbf16, #tpu.memory_space<vmem>>, vector<128x128xbf16>
    %cst_86 = arith.constant dense<0.000000e+00> : vector<32x128xf32>
    %183 = tpu.matmul %176, %182, %cst_86 {dimension_numbers = #tpu.dot_dimension_numbers<[1], [0], [0], [1], [0, 0, 1, 1], [], []>} : vector<32x128xbf16>, vector<128x128xbf16>, vector<32x128xf32> -> vector<32x128xf32>
    %c0_87 = arith.constant 0 : index
    %c0_88 = arith.constant 0 : index
    %184 = vector.load %arg20[%c0_87, %c0_88] : memref<1x128xf32, #tpu.memory_space<vmem>>, vector<1x128xf32>
    %185 = vector.broadcast %184 : vector<1x128xf32> to vector<32x128xf32>
    %186 = arith.addf %183, %185 : vector<32x128xf32>
    %c0_89 = arith.constant 0 : index
    %c0_90 = arith.constant 0 : index
    %187 = vector.load %arg21[%c0_89, %c0_90] : memref<128x128xbf16, #tpu.memory_space<vmem>>, vector<128x128xbf16>
    %cst_91 = arith.constant dense<0.000000e+00> : vector<32x128xf32>
    %188 = tpu.matmul %176, %187, %cst_91 {dimension_numbers = #tpu.dot_dimension_numbers<[1], [0], [0], [1], [0, 0, 1, 1], [], []>} : vector<32x128xbf16>, vector<128x128xbf16>, vector<32x128xf32> -> vector<32x128xf32>
    %c0_92 = arith.constant 0 : index
    %c0_93 = arith.constant 0 : index
    %189 = vector.load %arg22[%c0_92, %c0_93] : memref<1x128xf32, #tpu.memory_space<vmem>>, vector<1x128xf32>
    %190 = vector.broadcast %189 : vector<1x128xf32> to vector<32x128xf32>
    %191 = arith.addf %188, %190 : vector<32x128xf32>
    %192 = arith.truncf %186 : vector<32x128xf32> to vector<32x128xbf16>
    %cst_94 = arith.constant 0.000000e+00 : f32
    %193 = vector.broadcast %cst_94 : f32 to vector<32x128xf32>
    %c0_95 = arith.constant 0 : index
    %c0_96 = arith.constant 0 : index
    %c0_97 = arith.constant 0 : index
    %194 = vector.load %arg23[%c0_95, %c0_96, %c0_97] : memref<4x1x128xf32, #tpu.memory_space<vmem>>, vector<1x1x128xf32>
    %195 = vector.shape_cast %194 : vector<1x1x128xf32> to vector<1x128xf32>
    %196 = vector.broadcast %195 : vector<1x128xf32> to vector<32x128xf32>
    %197 = arith.mulf %181, %196 : vector<32x128xf32>
    %198 = arith.truncf %197 : vector<32x128xf32> to vector<32x128xbf16>
    %cst_98 = arith.constant dense<0.000000e+00> : vector<32x32xf32>
    %199 = tpu.matmul %198, %192, %cst_98 {dimension_numbers = #tpu.dot_dimension_numbers<[1], [1], [0], [0], [0, 0, 1, 0], [], []>} : vector<32x128xbf16>, vector<32x128xbf16>, vector<32x32xf32> -> vector<32x32xf32>
    %c0_99 = arith.constant 0 : index
    %c0_100 = arith.constant 0 : index
    %c0_101 = arith.constant 0 : index
    %200 = vector.load %arg24[%c0_99, %c0_100, %c0_101] : memref<4x32x32xf32, #tpu.memory_space<vmem>>, vector<1x32x32xf32>
    %201 = vector.shape_cast %200 : vector<1x32x32xf32> to vector<32x32xf32>
    %202 = arith.addf %199, %201 : vector<32x32xf32>
    %cst_102 = arith.constant dense<0xFF800000> : vector<32xf32>
    %203 = vector.multi_reduction <maximumf>, %202, %cst_102 [1] : vector<32x32xf32> to vector<32xf32>
    %204 = vector.shape_cast %203 : vector<32xf32> to vector<32x1xf32>
    %205 = vector.broadcast %204 : vector<32x1xf32> to vector<32x32xf32>
    %206 = arith.subf %202, %205 : vector<32x32xf32>
    %207 = math.exp %206 : vector<32x32xf32>
    %cst_103 = arith.constant dense<0.000000e+00> : vector<32xf32>
    %208 = vector.multi_reduction <add>, %207, %cst_103 [1] : vector<32x32xf32> to vector<32xf32>
    %209 = vector.shape_cast %208 : vector<32xf32> to vector<32x1xf32>
    %210 = tpu.reciprocal %209 {approx = true} : vector<32x1xf32> -> vector<32x1xf32>
    %211 = vector.broadcast %210 : vector<32x1xf32> to vector<32x32xf32>
    %212 = arith.mulf %207, %211 : vector<32x32xf32>
    %213 = vector.broadcast %195 : vector<1x128xf32> to vector<32x128xf32>
    %214 = arith.mulf %191, %213 : vector<32x128xf32>
    %215 = arith.truncf %214 : vector<32x128xf32> to vector<32x128xbf16>
    %216 = arith.truncf %212 : vector<32x32xf32> to vector<32x32xbf16>
    %cst_104 = arith.constant dense<0.000000e+00> : vector<32x128xf32>
    %217 = tpu.matmul %216, %215, %cst_104 {dimension_numbers = #tpu.dot_dimension_numbers<[1], [0], [0], [1], [0, 0, 1, 1], [], []>} : vector<32x32xbf16>, vector<32x128xbf16>, vector<32x128xf32> -> vector<32x128xf32>
    %218 = arith.addf %193, %217 : vector<32x128xf32>
    %c1_105 = arith.constant 1 : index
    %c0_106 = arith.constant 0 : index
    %c0_107 = arith.constant 0 : index
    %219 = vector.load %arg23[%c1_105, %c0_106, %c0_107] : memref<4x1x128xf32, #tpu.memory_space<vmem>>, vector<1x1x128xf32>
    %220 = vector.shape_cast %219 : vector<1x1x128xf32> to vector<1x128xf32>
    %221 = vector.broadcast %220 : vector<1x128xf32> to vector<32x128xf32>
    %222 = arith.mulf %181, %221 : vector<32x128xf32>
    %223 = arith.truncf %222 : vector<32x128xf32> to vector<32x128xbf16>
    %cst_108 = arith.constant dense<0.000000e+00> : vector<32x32xf32>
    %224 = tpu.matmul %223, %192, %cst_108 {dimension_numbers = #tpu.dot_dimension_numbers<[1], [1], [0], [0], [0, 0, 1, 0], [], []>} : vector<32x128xbf16>, vector<32x128xbf16>, vector<32x32xf32> -> vector<32x32xf32>
    %c1_109 = arith.constant 1 : index
    %c0_110 = arith.constant 0 : index
    %c0_111 = arith.constant 0 : index
    %225 = vector.load %arg24[%c1_109, %c0_110, %c0_111] : memref<4x32x32xf32, #tpu.memory_space<vmem>>, vector<1x32x32xf32>
    %226 = vector.shape_cast %225 : vector<1x32x32xf32> to vector<32x32xf32>
    %227 = arith.addf %224, %226 : vector<32x32xf32>
    %cst_112 = arith.constant dense<0xFF800000> : vector<32xf32>
    %228 = vector.multi_reduction <maximumf>, %227, %cst_112 [1] : vector<32x32xf32> to vector<32xf32>
    %229 = vector.shape_cast %228 : vector<32xf32> to vector<32x1xf32>
    %230 = vector.broadcast %229 : vector<32x1xf32> to vector<32x32xf32>
    %231 = arith.subf %227, %230 : vector<32x32xf32>
    %232 = math.exp %231 : vector<32x32xf32>
    %cst_113 = arith.constant dense<0.000000e+00> : vector<32xf32>
    %233 = vector.multi_reduction <add>, %232, %cst_113 [1] : vector<32x32xf32> to vector<32xf32>
    %234 = vector.shape_cast %233 : vector<32xf32> to vector<32x1xf32>
    %235 = tpu.reciprocal %234 {approx = true} : vector<32x1xf32> -> vector<32x1xf32>
    %236 = vector.broadcast %235 : vector<32x1xf32> to vector<32x32xf32>
    %237 = arith.mulf %232, %236 : vector<32x32xf32>
    %238 = vector.broadcast %220 : vector<1x128xf32> to vector<32x128xf32>
    %239 = arith.mulf %191, %238 : vector<32x128xf32>
    %240 = arith.truncf %239 : vector<32x128xf32> to vector<32x128xbf16>
    %241 = arith.truncf %237 : vector<32x32xf32> to vector<32x32xbf16>
    %cst_114 = arith.constant dense<0.000000e+00> : vector<32x128xf32>
    %242 = tpu.matmul %241, %240, %cst_114 {dimension_numbers = #tpu.dot_dimension_numbers<[1], [0], [0], [1], [0, 0, 1, 1], [], []>} : vector<32x32xbf16>, vector<32x128xbf16>, vector<32x128xf32> -> vector<32x128xf32>
    %243 = arith.addf %218, %242 : vector<32x128xf32>
    %c2_115 = arith.constant 2 : index
    %c0_116 = arith.constant 0 : index
    %c0_117 = arith.constant 0 : index
    %244 = vector.load %arg23[%c2_115, %c0_116, %c0_117] : memref<4x1x128xf32, #tpu.memory_space<vmem>>, vector<1x1x128xf32>
    %245 = vector.shape_cast %244 : vector<1x1x128xf32> to vector<1x128xf32>
    %246 = vector.broadcast %245 : vector<1x128xf32> to vector<32x128xf32>
    %247 = arith.mulf %181, %246 : vector<32x128xf32>
    %248 = arith.truncf %247 : vector<32x128xf32> to vector<32x128xbf16>
    %cst_118 = arith.constant dense<0.000000e+00> : vector<32x32xf32>
    %249 = tpu.matmul %248, %192, %cst_118 {dimension_numbers = #tpu.dot_dimension_numbers<[1], [1], [0], [0], [0, 0, 1, 0], [], []>} : vector<32x128xbf16>, vector<32x128xbf16>, vector<32x32xf32> -> vector<32x32xf32>
    %c2_119 = arith.constant 2 : index
    %c0_120 = arith.constant 0 : index
    %c0_121 = arith.constant 0 : index
    %250 = vector.load %arg24[%c2_119, %c0_120, %c0_121] : memref<4x32x32xf32, #tpu.memory_space<vmem>>, vector<1x32x32xf32>
    %251 = vector.shape_cast %250 : vector<1x32x32xf32> to vector<32x32xf32>
    %252 = arith.addf %249, %251 : vector<32x32xf32>
    %cst_122 = arith.constant dense<0xFF800000> : vector<32xf32>
    %253 = vector.multi_reduction <maximumf>, %252, %cst_122 [1] : vector<32x32xf32> to vector<32xf32>
    %254 = vector.shape_cast %253 : vector<32xf32> to vector<32x1xf32>
    %255 = vector.broadcast %254 : vector<32x1xf32> to vector<32x32xf32>
    %256 = arith.subf %252, %255 : vector<32x32xf32>
    %257 = math.exp %256 : vector<32x32xf32>
    %cst_123 = arith.constant dense<0.000000e+00> : vector<32xf32>
    %258 = vector.multi_reduction <add>, %257, %cst_123 [1] : vector<32x32xf32> to vector<32xf32>
    %259 = vector.shape_cast %258 : vector<32xf32> to vector<32x1xf32>
    %260 = tpu.reciprocal %259 {approx = true} : vector<32x1xf32> -> vector<32x1xf32>
    %261 = vector.broadcast %260 : vector<32x1xf32> to vector<32x32xf32>
    %262 = arith.mulf %257, %261 : vector<32x32xf32>
    %263 = vector.broadcast %245 : vector<1x128xf32> to vector<32x128xf32>
    %264 = arith.mulf %191, %263 : vector<32x128xf32>
    %265 = arith.truncf %264 : vector<32x128xf32> to vector<32x128xbf16>
    %266 = arith.truncf %262 : vector<32x32xf32> to vector<32x32xbf16>
    %cst_124 = arith.constant dense<0.000000e+00> : vector<32x128xf32>
    %267 = tpu.matmul %266, %265, %cst_124 {dimension_numbers = #tpu.dot_dimension_numbers<[1], [0], [0], [1], [0, 0, 1, 1], [], []>} : vector<32x32xbf16>, vector<32x128xbf16>, vector<32x128xf32> -> vector<32x128xf32>
    %268 = arith.addf %243, %267 : vector<32x128xf32>
    %c3_125 = arith.constant 3 : index
    %c0_126 = arith.constant 0 : index
    %c0_127 = arith.constant 0 : index
    %269 = vector.load %arg23[%c3_125, %c0_126, %c0_127] : memref<4x1x128xf32, #tpu.memory_space<vmem>>, vector<1x1x128xf32>
    %270 = vector.shape_cast %269 : vector<1x1x128xf32> to vector<1x128xf32>
    %271 = vector.broadcast %270 : vector<1x128xf32> to vector<32x128xf32>
    %272 = arith.mulf %181, %271 : vector<32x128xf32>
    %273 = arith.truncf %272 : vector<32x128xf32> to vector<32x128xbf16>
    %cst_128 = arith.constant dense<0.000000e+00> : vector<32x32xf32>
    %274 = tpu.matmul %273, %192, %cst_128 {dimension_numbers = #tpu.dot_dimension_numbers<[1], [1], [0], [0], [0, 0, 1, 0], [], []>} : vector<32x128xbf16>, vector<32x128xbf16>, vector<32x32xf32> -> vector<32x32xf32>
    %c3_129 = arith.constant 3 : index
    %c0_130 = arith.constant 0 : index
    %c0_131 = arith.constant 0 : index
    %275 = vector.load %arg24[%c3_129, %c0_130, %c0_131] : memref<4x32x32xf32, #tpu.memory_space<vmem>>, vector<1x32x32xf32>
    %276 = vector.shape_cast %275 : vector<1x32x32xf32> to vector<32x32xf32>
    %277 = arith.addf %274, %276 : vector<32x32xf32>
    %cst_132 = arith.constant dense<0xFF800000> : vector<32xf32>
    %278 = vector.multi_reduction <maximumf>, %277, %cst_132 [1] : vector<32x32xf32> to vector<32xf32>
    %279 = vector.shape_cast %278 : vector<32xf32> to vector<32x1xf32>
    %280 = vector.broadcast %279 : vector<32x1xf32> to vector<32x32xf32>
    %281 = arith.subf %277, %280 : vector<32x32xf32>
    %282 = math.exp %281 : vector<32x32xf32>
    %cst_133 = arith.constant dense<0.000000e+00> : vector<32xf32>
    %283 = vector.multi_reduction <add>, %282, %cst_133 [1] : vector<32x32xf32> to vector<32xf32>
    %284 = vector.shape_cast %283 : vector<32xf32> to vector<32x1xf32>
    %285 = tpu.reciprocal %284 {approx = true} : vector<32x1xf32> -> vector<32x1xf32>
    %286 = vector.broadcast %285 : vector<32x1xf32> to vector<32x32xf32>
    %287 = arith.mulf %282, %286 : vector<32x32xf32>
    %288 = vector.broadcast %270 : vector<1x128xf32> to vector<32x128xf32>
    %289 = arith.mulf %191, %288 : vector<32x128xf32>
    %290 = arith.truncf %289 : vector<32x128xf32> to vector<32x128xbf16>
    %291 = arith.truncf %287 : vector<32x32xf32> to vector<32x32xbf16>
    %cst_134 = arith.constant dense<0.000000e+00> : vector<32x128xf32>
    %292 = tpu.matmul %291, %290, %cst_134 {dimension_numbers = #tpu.dot_dimension_numbers<[1], [0], [0], [1], [0, 0, 1, 1], [], []>} : vector<32x32xbf16>, vector<32x128xbf16>, vector<32x128xf32> -> vector<32x128xf32>
    %293 = arith.addf %268, %292 : vector<32x128xf32>
    %294 = arith.truncf %293 : vector<32x128xf32> to vector<32x128xbf16>
    %c0_135 = arith.constant 0 : index
    %c0_136 = arith.constant 0 : index
    %295 = vector.load %arg25[%c0_135, %c0_136] : memref<128x128xbf16, #tpu.memory_space<vmem>>, vector<128x128xbf16>
    %cst_137 = arith.constant dense<0.000000e+00> : vector<32x128xf32>
    %296 = tpu.matmul %294, %295, %cst_137 {dimension_numbers = #tpu.dot_dimension_numbers<[1], [0], [0], [1], [0, 0, 1, 1], [], []>} : vector<32x128xbf16>, vector<128x128xbf16>, vector<32x128xf32> -> vector<32x128xf32>
    %c0_138 = arith.constant 0 : index
    %c0_139 = arith.constant 0 : index
    %297 = vector.load %arg26[%c0_138, %c0_139] : memref<1x128xf32, #tpu.memory_space<vmem>>, vector<1x128xf32>
    %298 = vector.broadcast %297 : vector<1x128xf32> to vector<32x128xf32>
    %299 = arith.addf %296, %298 : vector<32x128xf32>
    %300 = arith.addf %151, %299 : vector<32x128xf32>
    %c0_140 = arith.constant 0 : index
    %c0_141 = arith.constant 0 : index
    %301 = vector.load %arg27[%c0_140, %c0_141] : memref<1x128xf32, #tpu.memory_space<vmem>>, vector<1x128xf32>
    %c0_142 = arith.constant 0 : index
    %c0_143 = arith.constant 0 : index
    %302 = vector.load %arg28[%c0_142, %c0_143] : memref<1x128xf32, #tpu.memory_space<vmem>>, vector<1x128xf32>
    %cst_144 = arith.constant dense<0.000000e+00> : vector<32xf32>
    %303 = vector.multi_reduction <add>, %300, %cst_144 [1] : vector<32x128xf32> to vector<32xf32>
    %304 = vector.shape_cast %303 : vector<32xf32> to vector<32x1xf32>
    %cst_145 = arith.constant 7.812500e-03 : f32
    %305 = vector.broadcast %cst_145 : f32 to vector<32x1xf32>
    %306 = arith.mulf %304, %305 : vector<32x1xf32>
    %307 = arith.mulf %300, %300 : vector<32x128xf32>
    %cst_146 = arith.constant dense<0.000000e+00> : vector<32xf32>
    %308 = vector.multi_reduction <add>, %307, %cst_146 [1] : vector<32x128xf32> to vector<32xf32>
    %309 = vector.shape_cast %308 : vector<32xf32> to vector<32x1xf32>
    %cst_147 = arith.constant 7.812500e-03 : f32
    %310 = vector.broadcast %cst_147 : f32 to vector<32x1xf32>
    %311 = arith.mulf %309, %310 : vector<32x1xf32>
    %312 = arith.mulf %306, %306 : vector<32x1xf32>
    %313 = arith.subf %311, %312 : vector<32x1xf32>
    %314 = vector.broadcast %306 : vector<32x1xf32> to vector<32x128xf32>
    %315 = arith.subf %300, %314 : vector<32x128xf32>
    %cst_148 = arith.constant 9.99999974E-6 : f32
    %316 = vector.broadcast %cst_148 : f32 to vector<32x1xf32>
    %317 = arith.addf %313, %316 : vector<32x1xf32>
    %318 = math.rsqrt %317 : vector<32x1xf32>
    %319 = vector.broadcast %318 : vector<32x1xf32> to vector<32x128xf32>
    %320 = arith.mulf %315, %319 : vector<32x128xf32>
    %321 = vector.broadcast %301 : vector<1x128xf32> to vector<32x128xf32>
    %322 = arith.mulf %320, %321 : vector<32x128xf32>
    %323 = vector.broadcast %302 : vector<1x128xf32> to vector<32x128xf32>
    %324 = arith.addf %322, %323 : vector<32x128xf32>
    %325 = arith.truncf %324 : vector<32x128xf32> to vector<32x128xbf16>
    %c0_149 = arith.constant 0 : index
    %c0_150 = arith.constant 0 : index
    %326 = vector.load %arg29[%c0_149, %c0_150] : memref<128x256xbf16, #tpu.memory_space<vmem>>, vector<128x256xbf16>
    %cst_151 = arith.constant dense<0.000000e+00> : vector<32x256xf32>
    %327 = tpu.matmul %325, %326, %cst_151 {dimension_numbers = #tpu.dot_dimension_numbers<[1], [0], [0], [1], [0, 0, 1, 1], [], []>} : vector<32x128xbf16>, vector<128x256xbf16>, vector<32x256xf32> -> vector<32x256xf32>
    %c0_152 = arith.constant 0 : index
    %c0_153 = arith.constant 0 : index
    %328 = vector.load %arg30[%c0_152, %c0_153] : memref<1x256xf32, #tpu.memory_space<vmem>>, vector<1x256xf32>
    %329 = vector.broadcast %328 : vector<1x256xf32> to vector<32x256xf32>
    %330 = arith.addf %327, %329 : vector<32x256xf32>
    %331 = arith.mulf %330, %330 : vector<32x256xf32>
    %332 = arith.mulf %330, %331 : vector<32x256xf32>
    %cst_154 = arith.constant 4.471500e-02 : f32
    %333 = vector.broadcast %cst_154 : f32 to vector<32x256xf32>
    %334 = arith.mulf %333, %332 : vector<32x256xf32>
    %335 = arith.addf %330, %334 : vector<32x256xf32>
    %cst_155 = arith.constant 0.797884583 : f32
    %336 = vector.broadcast %cst_155 : f32 to vector<32x256xf32>
    %337 = arith.mulf %336, %335 : vector<32x256xf32>
    %338 = math.tanh %337 : vector<32x256xf32>
    %cst_156 = arith.constant 1.000000e+00 : f32
    %339 = vector.broadcast %cst_156 : f32 to vector<32x256xf32>
    %340 = arith.addf %339, %338 : vector<32x256xf32>
    %cst_157 = arith.constant 5.000000e-01 : f32
    %341 = vector.broadcast %cst_157 : f32 to vector<32x256xf32>
    %342 = arith.mulf %341, %340 : vector<32x256xf32>
    %343 = arith.mulf %330, %342 : vector<32x256xf32>
    %344 = arith.truncf %343 : vector<32x256xf32> to vector<32x256xbf16>
    %c0_158 = arith.constant 0 : index
    %c0_159 = arith.constant 0 : index
    %345 = vector.load %arg31[%c0_158, %c0_159] : memref<256x128xbf16, #tpu.memory_space<vmem>>, vector<256x128xbf16>
    %cst_160 = arith.constant dense<0.000000e+00> : vector<32x128xf32>
    %346 = tpu.matmul %344, %345, %cst_160 {dimension_numbers = #tpu.dot_dimension_numbers<[1], [0], [0], [1], [0, 0, 1, 1], [], []>} : vector<32x256xbf16>, vector<256x128xbf16>, vector<32x128xf32> -> vector<32x128xf32>
    %c0_161 = arith.constant 0 : index
    %c0_162 = arith.constant 0 : index
    %347 = vector.load %arg32[%c0_161, %c0_162] : memref<1x128xf32, #tpu.memory_space<vmem>>, vector<1x128xf32>
    %348 = vector.broadcast %347 : vector<1x128xf32> to vector<32x128xf32>
    %349 = arith.addf %346, %348 : vector<32x128xf32>
    %350 = arith.addf %300, %349 : vector<32x128xf32>
    %c0_163 = arith.constant 0 : index
    %c0_164 = arith.constant 0 : index
    %351 = vector.load %arg33[%c0_163, %c0_164] : memref<1x128xf32, #tpu.memory_space<vmem>>, vector<1x128xf32>
    %c0_165 = arith.constant 0 : index
    %c0_166 = arith.constant 0 : index
    %352 = vector.load %arg34[%c0_165, %c0_166] : memref<1x128xf32, #tpu.memory_space<vmem>>, vector<1x128xf32>
    %cst_167 = arith.constant dense<0.000000e+00> : vector<32xf32>
    %353 = vector.multi_reduction <add>, %350, %cst_167 [1] : vector<32x128xf32> to vector<32xf32>
    %354 = vector.shape_cast %353 : vector<32xf32> to vector<32x1xf32>
    %cst_168 = arith.constant 7.812500e-03 : f32
    %355 = vector.broadcast %cst_168 : f32 to vector<32x1xf32>
    %356 = arith.mulf %354, %355 : vector<32x1xf32>
    %357 = arith.mulf %350, %350 : vector<32x128xf32>
    %cst_169 = arith.constant dense<0.000000e+00> : vector<32xf32>
    %358 = vector.multi_reduction <add>, %357, %cst_169 [1] : vector<32x128xf32> to vector<32xf32>
    %359 = vector.shape_cast %358 : vector<32xf32> to vector<32x1xf32>
    %cst_170 = arith.constant 7.812500e-03 : f32
    %360 = vector.broadcast %cst_170 : f32 to vector<32x1xf32>
    %361 = arith.mulf %359, %360 : vector<32x1xf32>
    %362 = arith.mulf %356, %356 : vector<32x1xf32>
    %363 = arith.subf %361, %362 : vector<32x1xf32>
    %364 = vector.broadcast %356 : vector<32x1xf32> to vector<32x128xf32>
    %365 = arith.subf %350, %364 : vector<32x128xf32>
    %cst_171 = arith.constant 9.99999974E-6 : f32
    %366 = vector.broadcast %cst_171 : f32 to vector<32x1xf32>
    %367 = arith.addf %363, %366 : vector<32x1xf32>
    %368 = math.rsqrt %367 : vector<32x1xf32>
    %369 = vector.broadcast %368 : vector<32x1xf32> to vector<32x128xf32>
    %370 = arith.mulf %365, %369 : vector<32x128xf32>
    %371 = vector.broadcast %351 : vector<1x128xf32> to vector<32x128xf32>
    %372 = arith.mulf %370, %371 : vector<32x128xf32>
    %373 = vector.broadcast %352 : vector<1x128xf32> to vector<32x128xf32>
    %374 = arith.addf %372, %373 : vector<32x128xf32>
    %c0_172 = arith.constant 0 : index
    %c0_173 = arith.constant 0 : index
    %375 = vector.load %arg35[%c0_172, %c0_173] : memref<2x32xbf16, #tpu.memory_space<vmem>>, vector<2x32xbf16>
    %376 = arith.truncf %374 : vector<32x128xf32> to vector<32x128xbf16>
    %cst_174 = arith.constant dense<0.000000e+00> : vector<2x128xf32>
    %377 = tpu.matmul %375, %376, %cst_174 {dimension_numbers = #tpu.dot_dimension_numbers<[1], [0], [0], [1], [0, 0, 1, 1], [], []>} : vector<2x32xbf16>, vector<32x128xbf16>, vector<2x128xf32> -> vector<2x128xf32>
    %378 = arith.truncf %377 : vector<2x128xf32> to vector<2x128xbf16>
    %c0_175 = arith.constant 0 : index
    %c0_176 = arith.constant 0 : index
    %379 = vector.load %arg36[%c0_175, %c0_176] : memref<128x1xbf16, #tpu.memory_space<vmem>>, vector<128x1xbf16>
    %cst_177 = arith.constant dense<0.000000e+00> : vector<2x1xf32>
    %380 = tpu.matmul %378, %379, %cst_177 {dimension_numbers = #tpu.dot_dimension_numbers<[1], [0], [0], [1], [0, 0, 1, 1], [], []>} : vector<2x128xbf16>, vector<128x1xbf16>, vector<2x1xf32> -> vector<2x1xf32>
    %c0_178 = arith.constant 0 : index
    %c0_179 = arith.constant 0 : index
    %381 = vector.load %arg37[%c0_178, %c0_179] : memref<1x1xf32, #tpu.memory_space<vmem>>, vector<1x1xf32>
    %382 = vector.broadcast %381 : vector<1x1xf32> to vector<2x1xf32>
    %383 = arith.addf %380, %382 : vector<2x1xf32>
    %384 = arith.negf %383 : vector<2x1xf32>
    %385 = math.exp %384 : vector<2x1xf32>
    %cst_180 = arith.constant 1.000000e+00 : f32
    %386 = vector.broadcast %cst_180 : f32 to vector<2x1xf32>
    %387 = arith.addf %386, %385 : vector<2x1xf32>
    %388 = arith.divf %386, %387 : vector<2x1xf32>
    %c0_181 = arith.constant 0 : index
    %c0_182 = arith.constant 0 : index
    %389 = vector.load %arg38[%c0_181, %c0_182] : memref<2x1xf32, #tpu.memory_space<vmem>>, vector<2x1xf32>
    tpu.vector_store %arg38[%c0_181, %c0_182], %388 {strides = array<i32>} : memref<2x1xf32, #tpu.memory_space<vmem>>, vector<2x1xf32>,
    return
  }
  func.func @transform_0(%arg0: i32) -> (i32, i32) {
    %c0_i32 = arith.constant 0 : i32
    %c0_i32_0 = arith.constant 0 : i32
    %c0_i32_1 = arith.constant 0 : i32
    return %c0_i32, %c0_i32_0 : i32, i32
  }
  func.func @transform_1(%arg0: i32) -> (i32, i32) {
    %c0_i32 = arith.constant 0 : i32
    %c0_i32_0 = arith.constant 0 : i32
    %c0_i32_1 = arith.constant 0 : i32
    return %c0_i32, %c0_i32_0 : i32, i32
  }
  func.func @transform_2(%arg0: i32) -> (i32, i32) {
    %c0_i32 = arith.constant 0 : i32
    %c0_i32_0 = arith.constant 0 : i32
    %c0_i32_1 = arith.constant 0 : i32
    return %c0_i32, %c0_i32_0 : i32, i32
  }
  func.func @transform_3(%arg0: i32) -> (i32, i32) {
    %c0_i32 = arith.constant 0 : i32
    %c0_i32_0 = arith.constant 0 : i32
    %c0_i32_1 = arith.constant 0 : i32
    return %c0_i32, %c0_i32_0 : i32, i32
  }
  func.func @transform_4(%arg0: i32) -> (i32, i32) {
    %c0_i32 = arith.constant 0 : i32
    %c0_i32_0 = arith.constant 0 : i32
    %c0_i32_1 = arith.constant 0 : i32
    return %c0_i32, %c0_i32_0 : i32, i32
  }
  func.func @transform_5(%arg0: i32) -> (i32, i32) {
    %c0_i32 = arith.constant 0 : i32
    %c0_i32_0 = arith.constant 0 : i32
    %c0_i32_1 = arith.constant 0 : i32
    return %c0_i32, %c0_i32_0 : i32, i32
  }
  func.func @transform_6(%arg0: i32) -> (i32, i32) {
    %c0_i32 = arith.constant 0 : i32
    %c0_i32_0 = arith.constant 0 : i32
    %c0_i32_1 = arith.constant 0 : i32
    return %c0_i32, %c0_i32_0 : i32, i32
  }
  func.func @transform_7(%arg0: i32) -> (i32, i32, i32) {
    %c0_i32 = arith.constant 0 : i32
    %c0_i32_0 = arith.constant 0 : i32
    %c0_i32_1 = arith.constant 0 : i32
    %c0_i32_2 = arith.constant 0 : i32
    return %c0_i32, %c0_i32_0, %c0_i32_1 : i32, i32, i32
  }
  func.func @transform_8(%arg0: i32) -> (i32, i32) {
    %c0_i32 = arith.constant 0 : i32
    %c0_i32_0 = arith.constant 0 : i32
    %c0_i32_1 = arith.constant 0 : i32
    return %c0_i32, %c0_i32_0 : i32, i32
  }
  func.func @transform_9(%arg0: i32) -> (i32, i32) {
    %c0_i32 = arith.constant 0 : i32
    %c0_i32_0 = arith.constant 0 : i32
    %c0_i32_1 = arith.constant 0 : i32
    return %c0_i32, %c0_i32_0 : i32, i32
  }
  func.func @transform_10(%arg0: i32) -> (i32, i32) {
    %c0_i32 = arith.constant 0 : i32
    %c0_i32_0 = arith.constant 0 : i32
    %c0_i32_1 = arith.constant 0 : i32
    return %c0_i32, %c0_i32_0 : i32, i32
  }
  func.func @transform_11(%arg0: i32) -> (i32, i32) {
    %c0_i32 = arith.constant 0 : i32
    %c0_i32_0 = arith.constant 0 : i32
    %c0_i32_1 = arith.constant 0 : i32
    return %c0_i32, %c0_i32_0 : i32, i32
  }
  func.func @transform_12(%arg0: i32) -> (i32, i32) {
    %c0_i32 = arith.constant 0 : i32
    %c0_i32_0 = arith.constant 0 : i32
    %c0_i32_1 = arith.constant 0 : i32
    return %c0_i32, %c0_i32_0 : i32, i32
  }
  func.func @transform_13(%arg0: i32) -> (i32, i32) {
    %c0_i32 = arith.constant 0 : i32
    %c0_i32_0 = arith.constant 0 : i32
    %c0_i32_1 = arith.constant 0 : i32
    return %c0_i32, %c0_i32_0 : i32, i32
  }
  func.func @transform_14(%arg0: i32) -> (i32, i32) {
    %c0_i32 = arith.constant 0 : i32
    %c0_i32_0 = arith.constant 0 : i32
    %c0_i32_1 = arith.constant 0 : i32
    return %c0_i32, %c0_i32_0 : i32, i32
  }
  func.func @transform_15(%arg0: i32) -> (i32, i32) {
    %c0_i32 = arith.constant 0 : i32
    %c0_i32_0 = arith.constant 0 : i32
    %c0_i32_1 = arith.constant 0 : i32
    return %c0_i32, %c0_i32_0 : i32, i32
  }
  func.func @transform_16(%arg0: i32) -> (i32, i32) {
    %c0_i32 = arith.constant 0 : i32
    %c0_i32_0 = arith.constant 0 : i32
    %c0_i32_1 = arith.constant 0 : i32
    return %c0_i32, %c0_i32_0 : i32, i32
  }
  func.func @transform_17(%arg0: i32) -> (i32, i32) {
    %c0_i32 = arith.constant 0 : i32
    %c0_i32_0 = arith.constant 0 : i32
    %c0_i32_1 = arith.constant 0 : i32
    return %c0_i32, %c0_i32_0 : i32, i32
  }
  func.func @transform_18(%arg0: i32) -> (i32, i32) {
    %c0_i32 = arith.constant 0 : i32
    %c0_i32_0 = arith.constant 0 : i32
    %c0_i32_1 = arith.constant 0 : i32
    return %c0_i32, %c0_i32_0 : i32, i32
  }
  func.func @transform_19(%arg0: i32) -> (i32, i32) {
    %c0_i32 = arith.constant 0 : i32
    %c0_i32_0 = arith.constant 0 : i32
    %c0_i32_1 = arith.constant 0 : i32
    return %c0_i32, %c0_i32_0 : i32, i32
  }
  func.func @transform_20(%arg0: i32) -> (i32, i32) {
    %c0_i32 = arith.constant 0 : i32
    %c0_i32_0 = arith.constant 0 : i32
    %c0_i32_1 = arith.constant 0 : i32
    return %c0_i32, %c0_i32_0 : i32, i32
  }
  func.func @transform_21(%arg0: i32) -> (i32, i32) {
    %c0_i32 = arith.constant 0 : i32
    %c0_i32_0 = arith.constant 0 : i32
    %c0_i32_1 = arith.constant 0 : i32
    return %c0_i32, %c0_i32_0 : i32, i32
  }
  func.func @transform_22(%arg0: i32) -> (i32, i32, i32) {
    %c0_i32 = arith.constant 0 : i32
    %c0_i32_0 = arith.constant 0 : i32
    %c0_i32_1 = arith.constant 0 : i32
    %c0_i32_2 = arith.constant 0 : i32
    return %c0_i32, %c0_i32_0, %c0_i32_1 : i32, i32, i32
  }
  func.func @transform_23(%arg0: i32) -> (i32, i32, i32) {
    %c0_i32 = arith.constant 0 : i32
    %c0_i32_0 = arith.constant 0 : i32
    %c0_i32_1 = arith.constant 0 : i32
    %c0_i32_2 = arith.constant 0 : i32
    return %c0_i32, %c0_i32_0, %c0_i32_1 : i32, i32, i32
  }
  func.func @transform_24(%arg0: i32) -> (i32, i32) {
    %c0_i32 = arith.constant 0 : i32
    %c0_i32_0 = arith.constant 0 : i32
    %c0_i32_1 = arith.constant 0 : i32
    return %c0_i32, %c0_i32_0 : i32, i32
  }
  func.func @transform_25(%arg0: i32) -> (i32, i32) {
    %c0_i32 = arith.constant 0 : i32
    %c0_i32_0 = arith.constant 0 : i32
    %c0_i32_1 = arith.constant 0 : i32
    return %c0_i32, %c0_i32_0 : i32, i32
  }
  func.func @transform_26(%arg0: i32) -> (i32, i32) {
    %c0_i32 = arith.constant 0 : i32
    %c0_i32_0 = arith.constant 0 : i32
    %c0_i32_1 = arith.constant 0 : i32
    return %c0_i32, %c0_i32_0 : i32, i32
  }
  func.func @transform_27(%arg0: i32) -> (i32, i32) {
    %c0_i32 = arith.constant 0 : i32
    %c0_i32_0 = arith.constant 0 : i32
    %c0_i32_1 = arith.constant 0 : i32
    return %c0_i32, %c0_i32_0 : i32, i32
  }
  func.func @transform_28(%arg0: i32) -> (i32, i32) {
    %c0_i32 = arith.constant 0 : i32
    %c0_i32_0 = arith.constant 0 : i32
    %c0_i32_1 = arith.constant 0 : i32
    return %c0_i32, %c0_i32_0 : i32, i32
  }
  func.func @transform_29(%arg0: i32) -> (i32, i32) {
    %c0_i32 = arith.constant 0 : i32
    %c0_i32_0 = arith.constant 0 : i32
    %c0_i32_1 = arith.constant 0 : i32
    return %c0_i32, %c0_i32_0 : i32, i32
  }
  func.func @transform_30(%arg0: i32) -> (i32, i32) {
    %c0_i32 = arith.constant 0 : i32
    %c0_i32_0 = arith.constant 0 : i32
    %c0_i32_1 = arith.constant 0 : i32
    return %c0_i32, %c0_i32_0 : i32, i32
  }
  func.func @transform_31(%arg0: i32) -> (i32, i32) {
    %c0_i32 = arith.constant 0 : i32
    %c0_i32_0 = arith.constant 0 : i32
    %c0_i32_1 = arith.constant 0 : i32
    return %c0_i32, %c0_i32_0 : i32, i32
  }
  func.func @transform_32(%arg0: i32) -> (i32, i32) {
    %c0_i32 = arith.constant 0 : i32
    %c0_i32_0 = arith.constant 0 : i32
    %c0_i32_1 = arith.constant 0 : i32
    return %c0_i32, %c0_i32_0 : i32, i32
  }
  func.func @transform_33(%arg0: i32) -> (i32, i32) {
    %c0_i32 = arith.constant 0 : i32
    %c0_i32_0 = arith.constant 0 : i32
    %c0_i32_1 = arith.constant 0 : i32
    return %c0_i32, %c0_i32_0 : i32, i32
  }
  func.func @transform_34(%arg0: i32) -> (i32, i32) {
    %c0_i32 = arith.constant 0 : i32
    %c0_i32_0 = arith.constant 0 : i32
    %c0_i32_1 = arith.constant 0 : i32
    return %c0_i32, %c0_i32_0 : i32, i32
  }
  func.func @transform_35(%arg0: i32) -> (i32, i32) {
    %c0_i32 = arith.constant 0 : i32
    %c0_i32_0 = arith.constant 0 : i32
    %c0_i32_1 = arith.constant 0 : i32
    return %c0_i32, %c0_i32_0 : i32, i32
  }
  func.func @transform_36(%arg0: i32) -> (i32, i32) {
    %c0_i32 = arith.constant 0 : i32
    %c0_i32_0 = arith.constant 0 : i32
    %c0_i32_1 = arith.constant 0 : i32
    return %c0_i32, %c0_i32_0 : i32, i32
  }
  func.func @transform_37(%arg0: i32) -> (i32, i32) {
    %c0_i32 = arith.constant 0 : i32
    %c0_i32_0 = arith.constant 0 : i32
    %c0_i32_1 = arith.constant 0 : i32
    return %c0_i32, %c0_i32_0 : i32, i32
  }
}

</mosaic_0001>

<llo_original>
// kernel: coatnet_forward.1
$region0: #{coatnet_forward.1}
  #allocation0 [shape = 'u32[]', space=smem, size = 0x4, offset = 0x4, fixed_abs, tag = 'smem constant byte address 0x4 - core index']
  #allocation1 [shape = 'u32[144,128]{1,0:T(1,128)}', space=vmem, size = 0x12000, scoped, tag = 'internal scratch']
  #allocation2 [shape = 'f32[1,1]{1,0:T(1,128)S(1)}', space=vmem, size = 0x200, scoped, tag = 'scoped memory for coatnet_forward.1']
  %s0 = inlined_call_operand.smem [shape: u32[38], index: -1, kind: input, shape index: {}]
  %s1 = sld [smem:[%s0]]
  %s2 = scalar_lea.smem %s0, 1
  %s3 = sld [smem:[%s2]]
  %s4 = scalar_lea.smem %s0, 2
  %s5 = sld [smem:[%s4]]
  %s6 = scalar_lea.smem %s0, 3
  %s7 = sld [smem:[%s6]]
  %s8 = scalar_lea.smem %s0, 4
  %s9 = sld [smem:[%s8]]
  %s10 = scalar_lea.smem %s0, 5
  %s11 = sld [smem:[%s10]]
  %s12 = scalar_lea.smem %s0, 6
  %s13 = sld [smem:[%s12]]
  %s14 = scalar_lea.smem %s0, 7
  %s15 = sld [smem:[%s14]]
  %s16 = scalar_lea.smem %s0, 8
  %s17 = sld [smem:[%s16]]
  %s18 = scalar_lea.smem %s0, 9
  %s19 = sld [smem:[%s18]]
  %s20 = scalar_lea.smem %s0, 10
  %s21 = sld [smem:[%s20]]
  %s22 = scalar_lea.smem %s0, 11
  %s23 = sld [smem:[%s22]]
  %s24 = scalar_lea.smem %s0, 12
  %s25 = sld [smem:[%s24]]
  %s26 = scalar_lea.smem %s0, 13
  %s27 = sld [smem:[%s26]]
  %s28 = scalar_lea.smem %s0, 14
  %s29 = sld [smem:[%s28]]
  %s30 = scalar_lea.smem %s0, 15
  %s31 = sld [smem:[%s30]]
  %s32 = scalar_lea.smem %s0, 16
  %s33 = sld [smem:[%s32]]
  %s34 = scalar_lea.smem %s0, 17
  %s35 = sld [smem:[%s34]]
  %s36 = scalar_lea.smem %s0, 18
  %s37 = sld [smem:[%s36]]
  %s38 = scalar_lea.smem %s0, 19
  %s39 = sld [smem:[%s38]]
  %s40 = scalar_lea.smem %s0, 20
  %s41 = sld [smem:[%s40]]
  %s42 = scalar_lea.smem %s0, 21
  %s43 = sld [smem:[%s42]]
  %s44 = scalar_lea.smem %s0, 22
  %s45 = sld [smem:[%s44]]
  %s46 = scalar_lea.smem %s0, 23
  %s47 = sld [smem:[%s46]]
  %s48 = scalar_lea.smem %s0, 24
  %s49 = sld [smem:[%s48]]
  %s50 = scalar_lea.smem %s0, 25
  %s51 = sld [smem:[%s50]]
  %s52 = scalar_lea.smem %s0, 26
  %s53 = sld [smem:[%s52]]
  %s54 = scalar_lea.smem %s0, 27
  %s55 = sld [smem:[%s54]]
  %s56 = scalar_lea.smem %s0, 28
  %s57 = sld [smem:[%s56]]
  %s58 = scalar_lea.smem %s0, 29
  %s59 = sld [smem:[%s58]]
  %s60 = scalar_lea.smem %s0, 30
  %s61 = sld [smem:[%s60]]
  %s62 = scalar_lea.smem %s0, 31
  %s63 = sld [smem:[%s62]]
  %s64 = scalar_lea.smem %s0, 32
  %s65 = sld [smem:[%s64]]
  %s66 = scalar_lea.smem %s0, 33
  %s67 = sld [smem:[%s66]]
  %s68 = scalar_lea.smem %s0, 34
  %s69 = sld [smem:[%s68]]
  %s70 = scalar_lea.smem %s0, 35
  %s71 = sld [smem:[%s70]]
  %s72 = scalar_lea.smem %s0, 36
  %s73 = sld [smem:[%s72]]
  %s74 = scalar_lea.smem %s0, 37
  %s75 = sld [smem:[%s74]]
  %s76 = sld [smem:[#allocation0]]
  $region278: #{coatnet_forward.1} parent=0
    _
  %s78 = ssub.s32 1, %s76
  %s79 = scalar_select 0, %s78, %s76
  %v80 = vstv %s73
  %81 = vst [vmem:[#allocation2] sm:$0x1] %v80
  $region1: #{coatnet_forward.1} parent=0
    #allocation3 [shape = 'u8[512]{0}', space=vmem, size = 0x400, scoped, tag = 'input window, operand 2, single buffered']
    #allocation4 [shape = 's32[1]{0}', space=sflag, size = 0x4, scoped, tag = 'scoped memory for coatnet_forward.1']
    #allocation5 [shape = 'u8[512]{0}', space=vmem, size = 0x400, scoped, tag = 'input window, operand 3, single buffered']
    #allocation6 [shape = 's32[1]{0}', space=sflag, size = 0x4, scoped, tag = 'scoped memory for coatnet_forward.1']
    #allocation7 [shape = 'u8[512]{0}', space=vmem, size = 0x400, scoped, tag = 'input window, operand 4, single buffered']
    #allocation8 [shape = 'u8[32768]{0}', space=vmem, size = 0x8000, scoped, tag = 'input window, operand 5, single buffered']
    #allocation9 [shape = 's32[1]{0}', space=sflag, size = 0x4, scoped, tag = 'scoped memory for coatnet_forward.1']
    #allocation10 [shape = 'u8[512]{0}', space=vmem, size = 0x400, scoped, tag = 'input window, operand 6, single buffered']
    #allocation11 [shape = 'u8[512]{0}', space=vmem, size = 0x400, scoped, tag = 'input window, operand 8, single buffered']
    #allocation12 [shape = 's32[1]{0}', space=sflag, size = 0x4, scoped, tag = 'scoped memory for coatnet_forward.1']
    #allocation13 [shape = 'u8[32768]{0}', space=vmem, size = 0x8000, scoped, tag = 'input window, operand 9, single buffered']
    #allocation14 [shape = 'u8[512]{0}', space=vmem, size = 0x400, scoped, tag = 'input window, operand 10, single buffered']
    #allocation15 [shape = 's32[1]{0}', space=sflag, size = 0x4, scoped, tag = 'scoped memory for coatnet_forward.1']
    #allocation16 [shape = 'u8[8192]{0}', space=vmem, size = 0x2000, scoped, tag = 'input window, operand 11, single buffered']
    #allocation17 [shape = 'u8[32768]{0}', space=vmem, size = 0x8000, scoped, tag = 'input window, operand 12, single buffered']
    #allocation18 [shape = 's32[1]{0}', space=sflag, size = 0x4, scoped, tag = 'scoped memory for coatnet_forward.1']
    #allocation19 [shape = 'u8[512]{0}', space=vmem, size = 0x400, scoped, tag = 'input window, operand 13, single buffered']
    #allocation20 [shape = 'u8[512]{0}', space=vmem, size = 0x400, scoped, tag = 'input window, operand 14, single buffered']
    #allocation21 [shape = 's32[1]{0}', space=sflag, size = 0x4, scoped, tag = 'scoped memory for coatnet_forward.1']
    #allocation22 [shape = 'u8[512]{0}', space=vmem, size = 0x400, scoped, tag = 'input window, operand 15, single buffered']
    #allocation23 [shape = 'u8[32768]{0}', space=vmem, size = 0x8000, scoped, tag = 'input window, operand 16, single buffered']
    #allocation24 [shape = 's32[1]{0}', space=sflag, size = 0x4, scoped, tag = 'scoped memory for coatnet_forward.1']
    #allocation25 [shape = 'u8[512]{0}', space=vmem, size = 0x400, scoped, tag = 'input window, operand 17, single buffered']
    #allocation26 [shape = 'u8[32768]{0}', space=vmem, size = 0x8000, scoped, tag = 'input window, operand 18, single buffered']
    #allocation27 [shape = 's32[1]{0}', space=sflag, size = 0x4, scoped, tag = 'scoped memory for coatnet_forward.1']
    #allocation28 [shape = 'u8[512]{0}', space=vmem, size = 0x400, scoped, tag = 'input window, operand 19, single buffered']
    #allocation29 [shape = 'u8[32768]{0}', space=vmem, size = 0x8000, scoped, tag = 'input window, operand 20, single buffered']
    #allocation30 [shape = 's32[1]{0}', space=sflag, size = 0x4, scoped, tag = 'scoped memory for coatnet_forward.1']
    #allocation31 [shape = 'u8[512]{0}', space=vmem, size = 0x400, scoped, tag = 'input window, operand 21, single buffered']
    #allocation32 [shape = 'u8[2048]{0}', space=vmem, size = 0x800, scoped, tag = 'input window, operand 22, single buffered']
    #allocation33 [shape = 's32[1]{0}', space=sflag, size = 0x4, scoped, tag = 'scoped memory for coatnet_forward.1']
    #allocation34 [shape = 'u8[32768]{0}', space=vmem, size = 0x8000, scoped, tag = 'input window, operand 24, single buffered']
    #allocation35 [shape = 'u8[512]{0}', space=vmem, size = 0x400, scoped, tag = 'input window, operand 25, single buffered']
    #allocation36 [shape = 's32[1]{0}', space=sflag, size = 0x4, scoped, tag = 'scoped memory for coatnet_forward.1']
    #allocation37 [shape = 'u8[512]{0}', space=vmem, size = 0x400, scoped, tag = 'input window, operand 26, single buffered']
    #allocation38 [shape = 'u8[512]{0}', space=vmem, size = 0x400, scoped, tag = 'input window, operand 27, single buffered']
    #allocation39 [shape = 's32[1]{0}', space=sflag, size = 0x4, scoped, tag = 'scoped memory for coatnet_forward.1']
    #allocation40 [shape = 'u8[1024]{0}', space=vmem, size = 0x400, scoped, tag = 'input window, operand 29, single buffered']
    #allocation41 [shape = 'u8[65536]{0}', space=vmem, size = 0x10000, scoped, tag = 'input window, operand 30, single buffered']
    #allocation42 [shape = 's32[1]{0}', space=sflag, size = 0x4, scoped, tag = 'scoped memory for coatnet_forward.1']
    #allocation43 [shape = 'u8[512]{0}', space=vmem, size = 0x400, scoped, tag = 'input window, operand 31, single buffered']
    #allocation44 [shape = 'u8[512]{0}', space=vmem, size = 0x400, scoped, tag = 'input window, operand 32, single buffered']
    #allocation45 [shape = 's32[1]{0}', space=sflag, size = 0x4, scoped, tag = 'scoped memory for coatnet_forward.1']
    #allocation46 [shape = 'u8[512]{0}', space=vmem, size = 0x400, scoped, tag = 'input window, operand 33, single buffered']
    #allocation47 [shape = 'u8[512]{0}', space=vmem, size = 0x400, scoped, tag = 'input window, operand 34, single buffered']
    #allocation48 [shape = 's32[1]{0}', space=sflag, size = 0x4, scoped, tag = 'scoped memory for coatnet_forward.1']
    %82 = vsyncpa [#allocation4], 0
    %83 = vsyncpa [#allocation6], 0
    %84 = vsyncpa [#allocation9], 0
    %85 = vsyncpa [#allocation12], 0
    %86 = vsyncpa [#allocation15], 0
    %87 = vsyncpa [#allocation18], 0
    %88 = vsyncpa [#allocation21], 0
    %89 = vsyncpa [#allocation24], 0
    %90 = vsyncpa [#allocation27], 0
    %91 = vsyncpa [#allocation30], 0
    %92 = vsyncpa [#allocation33], 0
    %93 = vsyncpa [#allocation36], 0
    %94 = vsyncpa [#allocation39], 0
    %95 = vsyncpa [#allocation42], 0
    %96 = vsyncpa [#allocation45], 0
    %97 = vsyncpa [#allocation48], 0
    // Predicated region
    $region2: #{coatnet_forward.1} parent=1 // pred_check
      _
    $region3: #{coatnet_forward.1} parent=1 // pred_check_branch
      %99 = sbr.rel (0) target = $region5
    $region4: #{coatnet_forward.1} parent=1 // pred_region
      _
    $region5: #{coatnet_forward.1} parent=1 // pred_fallthru
      _
    // Predicated region
    $region6: #{coatnet_forward.1} parent=1 // pred_check
      _
    $region7: #{coatnet_forward.1} parent=1 // pred_check_branch
      %101 = sbr.rel (0) target = $region9
    $region8: #{coatnet_forward.1} parent=1 // pred_region
      _
    $region9: #{coatnet_forward.1} parent=1 // pred_fallthru
      _
    // Predicated region
    $region10: #{coatnet_forward.1} parent=1 // pred_check
      _
    $region11: #{coatnet_forward.1} parent=1 // pred_check_branch
      %103 = sbr.rel (0) target = $region13
    $region12: #{coatnet_forward.1} parent=1 // pred_region
      %s105 = ssub.s32 16, 16
      %106 = vsyncadd [#allocation4], %s105
      %s108 = sshll.u32 [#allocation3], 4
      %s109 = int_to_ptr.vmem [resolvable:$true] %s108
      %111 = dma.hbm_to_vmem [thread:$0]  %s5, 16, %s109, [#allocation4]
    $region13: #{coatnet_forward.1} parent=1 // pred_fallthru
      _
    // Predicated region
    $region14: #{coatnet_forward.1} parent=1 // pred_check
      _
    $region15: #{coatnet_forward.1} parent=1 // pred_check_branch
      %113 = sbr.rel (0) target = $region17
    $region16: #{coatnet_forward.1} parent=1 // pred_region
      %s115 = ssub.s32 16, 16
      %116 = vsyncadd [#allocation6], %s115
      %s118 = sshll.u32 [#allocation5], 4
      %s119 = int_to_ptr.vmem [resolvable:$true] %s118
      %121 = dma.hbm_to_vmem [thread:$0]  %s7, 16, %s119, [#allocation6]
    $region17: #{coatnet_forward.1} parent=1 // pred_fallthru
      _
    // Predicated region
    $region18: #{coatnet_forward.1} parent=1 // pred_check
      _
    $region19: #{coatnet_forward.1} parent=1 // pred_check_branch
      %123 = sbr.rel (0) target = $region21
    $region20: #{coatnet_forward.1} parent=1 // pred_region
      %s125 = ssub.s32 16, 16
      %126 = vsyncadd [#allocation6], %s125
      %s128 = sshll.u32 [#allocation7], 4
      %s129 = int_to_ptr.vmem [resolvable:$true] %s128
      %131 = dma.hbm_to_vmem [thread:$0]  %s9, 16, %s129, [#allocation6]
    $region21: #{coatnet_forward.1} parent=1 // pred_fallthru
      _
    // Predicated region
    $region22: #{coatnet_forward.1} parent=1 // pred_check
      _
    $region23: #{coatnet_forward.1} parent=1 // pred_check_branch
      %133 = sbr.rel (0) target = $region25
    $region24: #{coatnet_forward.1} parent=1 // pred_region
      %s135 = ssub.s32 1024, 1024
      %136 = vsyncadd [#allocation9], %s135
      %s137 = sshll.u32 [#allocation8], 4
      %s138 = int_to_ptr.vmem [resolvable:$true] %s137
      %143 = dma.hbm_to_vmem [thread:$0]  %s11, 1024, %s138, [#allocation9], 64, 64, 4
    $region25: #{coatnet_forward.1} parent=1 // pred_fallthru
      _
    // Predicated region
    $region26: #{coatnet_forward.1} parent=1 // pred_check
      _
    $region27: #{coatnet_forward.1} parent=1 // pred_check_branch
      %145 = sbr.rel (0) target = $region29
    $region28: #{coatnet_forward.1} parent=1 // pred_region
      %s147 = ssub.s32 16, 16
      %148 = vsyncadd [#allocation9], %s147
      %s150 = sshll.u32 [#allocation10], 4
      %s151 = int_to_ptr.vmem [resolvable:$true] %s150
      %153 = dma.hbm_to_vmem [thread:$0]  %s13, 16, %s151, [#allocation9]
    $region29: #{coatnet_forward.1} parent=1 // pred_fallthru
      _
    // Predicated region
    $region30: #{coatnet_forward.1} parent=1 // pred_check
      _
    $region31: #{coatnet_forward.1} parent=1 // pred_check_branch
      %155 = sbr.rel (0) target = $region33
    $region32: #{coatnet_forward.1} parent=1 // pred_region
      _
    $region33: #{coatnet_forward.1} parent=1 // pred_fallthru
      _
    // Predicated region
    $region34: #{coatnet_forward.1} parent=1 // pred_check
      _
    $region35: #{coatnet_forward.1} parent=1 // pred_check_branch
      %157 = sbr.rel (0) target = $region37
    $region36: #{coatnet_forward.1} parent=1 // pred_region
      %s159 = ssub.s32 16, 16
      %160 = vsyncadd [#allocation12], %s159
      %s162 = sshll.u32 [#allocation11], 4
      %s163 = int_to_ptr.vmem [resolvable:$true] %s162
      %165 = dma.hbm_to_vmem [thread:$0]  %s17, 16, %s163, [#allocation12]
    $region37: #{coatnet_forward.1} parent=1 // pred_fallthru
      _
    // Predicated region
    $region38: #{coatnet_forward.1} parent=1 // pred_check
      _
    $region39: #{coatnet_forward.1} parent=1 // pred_check_branch
      %167 = sbr.rel (0) target = $region41
    $region40: #{coatnet_forward.1} parent=1 // pred_region
      %s169 = ssub.s32 1024, 1024
      %170 = vsyncadd [#allocation12], %s169
      %s171 = sshll.u32 [#allocation13], 4
      %s172 = int_to_ptr.vmem [resolvable:$true] %s171
      %177 = dma.hbm_to_vmem [thread:$0]  %s19, 1024, %s172, [#allocation12], 64, 64, 4
    $region41: #{coatnet_forward.1} parent=1 // pred_fallthru
      _
    // Predicated region
    $region42: #{coatnet_forward.1} parent=1 // pred_check
      _
    $region43: #{coatnet_forward.1} parent=1 // pred_check_branch
      %179 = sbr.rel (0) target = $region45
    $region44: #{coatnet_forward.1} parent=1 // pred_region
      %s181 = ssub.s32 16, 16
      %182 = vsyncadd [#allocation15], %s181
      %s184 = sshll.u32 [#allocation14], 4
      %s185 = int_to_ptr.vmem [resolvable:$true] %s184
      %187 = dma.hbm_to_vmem [thread:$0]  %s21, 16, %s185, [#allocation15]
    $region45: #{coatnet_forward.1} parent=1 // pred_fallthru
      _
    // Predicated region
    $region46: #{coatnet_forward.1} parent=1 // pred_check
      _
    $region47: #{coatnet_forward.1} parent=1 // pred_check_branch
      %189 = sbr.rel (0) target = $region49
    $region48: #{coatnet_forward.1} parent=1 // pred_region
      %s191 = ssub.s32 256, 256
      %192 = vsyncadd [#allocation15], %s191
      %s193 = sshll.u32 [#allocation16], 4
      %s194 = int_to_ptr.vmem [resolvable:$true] %s193
      %199 = dma.hbm_to_vmem [thread:$0]  %s23, 256, %s194, [#allocation15], 64, 64, 4
    $region49: #{coatnet_forward.1} parent=1 // pred_fallthru
      _
    // Predicated region
    $region50: #{coatnet_forward.1} parent=1 // pred_check
      _
    $region51: #{coatnet_forward.1} parent=1 // pred_check_branch
      %201 = sbr.rel (0) target = $region53
    $region52: #{coatnet_forward.1} parent=1 // pred_region
      %s203 = ssub.s32 1024, 1024
      %204 = vsyncadd [#allocation18], %s203
      %s205 = sshll.u32 [#allocation17], 4
      %s206 = int_to_ptr.vmem [resolvable:$true] %s205
      %211 = dma.hbm_to_vmem [thread:$0]  %s25, 1024, %s206, [#allocation18], 64, 64, 4
    $region53: #{coatnet_forward.1} parent=1 // pred_fallthru
      _
    // Predicated region
    $region54: #{coatnet_forward.1} parent=1 // pred_check
      _
    $region55: #{coatnet_forward.1} parent=1 // pred_check_branch
      %213 = sbr.rel (0) target = $region57
    $region56: #{coatnet_forward.1} parent=1 // pred_region
      %s215 = ssub.s32 16, 16
      %216 = vsyncadd [#allocation18], %s215
      %s218 = sshll.u32 [#allocation19], 4
      %s219 = int_to_ptr.vmem [resolvable:$true] %s218
      %221 = dma.hbm_to_vmem [thread:$0]  %s27, 16, %s219, [#allocation18]
    $region57: #{coatnet_forward.1} parent=1 // pred_fallthru
      _
    // Predicated region
    $region58: #{coatnet_forward.1} parent=1 // pred_check
      _
    $region59: #{coatnet_forward.1} parent=1 // pred_check_branch
      %223 = sbr.rel (0) target = $region61
    $region60: #{coatnet_forward.1} parent=1 // pred_region
      %s225 = ssub.s32 16, 16
      %226 = vsyncadd [#allocation21], %s225
      %s228 = sshll.u32 [#allocation20], 4
      %s229 = int_to_ptr.vmem [resolvable:$true] %s228
      %231 = dma.hbm_to_vmem [thread:$0]  %s29, 16, %s229, [#allocation21]
    $region61: #{coatnet_forward.1} parent=1 // pred_fallthru
      _
    // Predicated region
    $region62: #{coatnet_forward.1} parent=1 // pred_check
      _
    $region63: #{coatnet_forward.1} parent=1 // pred_check_branch
      %233 = sbr.rel (0) target = $region65
    $region64: #{coatnet_forward.1} parent=1 // pred_region
      %s235 = ssub.s32 16, 16
      %236 = vsyncadd [#allocation21], %s235
      %s238 = sshll.u32 [#allocation22], 4
      %s239 = int_to_ptr.vmem [resolvable:$true] %s238
      %241 = dma.hbm_to_vmem [thread:$0]  %s31, 16, %s239, [#allocation21]
    $region65: #{coatnet_forward.1} parent=1 // pred_fallthru
      _
    // Predicated region
    $region66: #{coatnet_forward.1} parent=1 // pred_check
      _
    $region67: #{coatnet_forward.1} parent=1 // pred_check_branch
      %243 = sbr.rel (0) target = $region69
    $region68: #{coatnet_forward.1} parent=1 // pred_region
      %s245 = ssub.s32 1024, 1024
      %246 = vsyncadd [#allocation24], %s245
      %s247 = sshll.u32 [#allocation23], 4
      %s248 = int_to_ptr.vmem [resolvable:$true] %s247
      %253 = dma.hbm_to_vmem [thread:$0]  %s33, 1024, %s248, [#allocation24], 64, 64, 4
    $region69: #{coatnet_forward.1} parent=1 // pred_fallthru
      _
    // Predicated region
    $region70: #{coatnet_forward.1} parent=1 // pred_check
      _
    $region71: #{coatnet_forward.1} parent=1 // pred_check_branch
      %255 = sbr.rel (0) target = $region73
    $region72: #{coatnet_forward.1} parent=1 // pred_region
      %s257 = ssub.s32 16, 16
      %258 = vsyncadd [#allocation24], %s257
      %s260 = sshll.u32 [#allocation25], 4
      %s261 = int_to_ptr.vmem [resolvable:$true] %s260
      %263 = dma.hbm_to_vmem [thread:$0]  %s35, 16, %s261, [#allocation24]
    $region73: #{coatnet_forward.1} parent=1 // pred_fallthru
      _
    // Predicated region
    $region74: #{coatnet_forward.1} parent=1 // pred_check
      _
    $region75: #{coatnet_forward.1} parent=1 // pred_check_branch
      %265 = sbr.rel (0) target = $region77
    $region76: #{coatnet_forward.1} parent=1 // pred_region
      %s267 = ssub.s32 1024, 1024
      %268 = vsyncadd [#allocation27], %s267
      %s269 = sshll.u32 [#allocation26], 4
      %s270 = int_to_ptr.vmem [resolvable:$true] %s269
      %275 = dma.hbm_to_vmem [thread:$0]  %s37, 1024, %s270, [#allocation27], 64, 64, 4
    $region77: #{coatnet_forward.1} parent=1 // pred_fallthru
      _
    // Predicated region
    $region78: #{coatnet_forward.1} parent=1 // pred_check
      _
    $region79: #{coatnet_forward.1} parent=1 // pred_check_branch
      %277 = sbr.rel (0) target = $region81
    $region80: #{coatnet_forward.1} parent=1 // pred_region
      %s279 = ssub.s32 16, 16
      %280 = vsyncadd [#allocation27], %s279
      %s282 = sshll.u32 [#allocation28], 4
      %s283 = int_to_ptr.vmem [resolvable:$true] %s282
      %285 = dma.hbm_to_vmem [thread:$0]  %s39, 16, %s283, [#allocation27]
    $region81: #{coatnet_forward.1} parent=1 // pred_fallthru
      _
    // Predicated region
    $region82: #{coatnet_forward.1} parent=1 // pred_check
      _
    $region83: #{coatnet_forward.1} parent=1 // pred_check_branch
      %287 = sbr.rel (0) target = $region85
    $region84: #{coatnet_forward.1} parent=1 // pred_region
      %s289 = ssub.s32 1024, 1024
      %290 = vsyncadd [#allocation30], %s289
      %s291 = sshll.u32 [#allocation29], 4
      %s292 = int_to_ptr.vmem [resolvable:$true] %s291
      %297 = dma.hbm_to_vmem [thread:$0]  %s41, 1024, %s292, [#allocation30], 64, 64, 4
    $region85: #{coatnet_forward.1} parent=1 // pred_fallthru
      _
    // Predicated region
    $region86: #{coatnet_forward.1} parent=1 // pred_check
      _
    $region87: #{coatnet_forward.1} parent=1 // pred_check_branch
      %299 = sbr.rel (0) target = $region89
    $region88: #{coatnet_forward.1} parent=1 // pred_region
      %s301 = ssub.s32 16, 16
      %302 = vsyncadd [#allocation30], %s301
      %s304 = sshll.u32 [#allocation31], 4
      %s305 = int_to_ptr.vmem [resolvable:$true] %s304
      %307 = dma.hbm_to_vmem [thread:$0]  %s43, 16, %s305, [#allocation30]
    $region89: #{coatnet_forward.1} parent=1 // pred_fallthru
      _
    // Predicated region
    $region90: #{coatnet_forward.1} parent=1 // pred_check
      _
    $region91: #{coatnet_forward.1} parent=1 // pred_check_branch
      %309 = sbr.rel (0) target = $region93
    $region92: #{coatnet_forward.1} parent=1 // pred_region
      %s311 = ssub.s32 64, 64
      %312 = vsyncadd [#allocation33], %s311
      %s313 = sshll.u32 [#allocation32], 4
      %s314 = int_to_ptr.vmem [resolvable:$true] %s313
      %319 = dma.hbm_to_vmem [thread:$0]  %s45, 64, %s314, [#allocation33], 16, 16, 1
    $region93: #{coatnet_forward.1} parent=1 // pred_fallthru
      _
    // Predicated region
    $region94: #{coatnet_forward.1} parent=1 // pred_check
      _
    $region95: #{coatnet_forward.1} parent=1 // pred_check_branch
      %321 = sbr.rel (0) target = $region97
    $region96: #{coatnet_forward.1} parent=1 // pred_region
      _
    $region97: #{coatnet_forward.1} parent=1 // pred_fallthru
      _
    // Predicated region
    $region98: #{coatnet_forward.1} parent=1 // pred_check
      _
    $region99: #{coatnet_forward.1} parent=1 // pred_check_branch
      %323 = sbr.rel (0) target = $region101
    $region100: #{coatnet_forward.1} parent=1 // pred_region
      %s325 = ssub.s32 1024, 1024
      %326 = vsyncadd [#allocation33], %s325
      %s327 = sshll.u32 [#allocation34], 4
      %s328 = int_to_ptr.vmem [resolvable:$true] %s327
      %333 = dma.hbm_to_vmem [thread:$0]  %s49, 1024, %s328, [#allocation33], 64, 64, 4
    $region101: #{coatnet_forward.1} parent=1 // pred_fallthru
      _
    // Predicated region
    $region102: #{coatnet_forward.1} parent=1 // pred_check
      _
    $region103: #{coatnet_forward.1} parent=1 // pred_check_branch
      %335 = sbr.rel (0) target = $region105
    $region104: #{coatnet_forward.1} parent=1 // pred_region
      %s337 = ssub.s32 16, 16
      %338 = vsyncadd [#allocation36], %s337
      %s340 = sshll.u32 [#allocation35], 4
      %s341 = int_to_ptr.vmem [resolvable:$true] %s340
      %343 = dma.hbm_to_vmem [thread:$0]  %s51, 16, %s341, [#allocation36]
    $region105: #{coatnet_forward.1} parent=1 // pred_fallthru
      _
    // Predicated region
    $region106: #{coatnet_forward.1} parent=1 // pred_check
      _
    $region107: #{coatnet_forward.1} parent=1 // pred_check_branch
      %345 = sbr.rel (0) target = $region109
    $region108: #{coatnet_forward.1} parent=1 // pred_region
      %s347 = ssub.s32 16, 16
      %348 = vsyncadd [#allocation36], %s347
      %s350 = sshll.u32 [#allocation37], 4
      %s351 = int_to_ptr.vmem [resolvable:$true] %s350
      %353 = dma.hbm_to_vmem [thread:$0]  %s53, 16, %s351, [#allocation36]
    $region109: #{coatnet_forward.1} parent=1 // pred_fallthru
      _
    // Predicated region
    $region110: #{coatnet_forward.1} parent=1 // pred_check
      _
    $region111: #{coatnet_forward.1} parent=1 // pred_check_branch
      %355 = sbr.rel (0) target = $region113
    $region112: #{coatnet_forward.1} parent=1 // pred_region
      %s357 = ssub.s32 16, 16
      %358 = vsyncadd [#allocation39], %s357
      %s360 = sshll.u32 [#allocation38], 4
      %s361 = int_to_ptr.vmem [resolvable:$true] %s360
      %363 = dma.hbm_to_vmem [thread:$0]  %s55, 16, %s361, [#allocation39]
    $region113: #{coatnet_forward.1} parent=1 // pred_fallthru
      _
    // Predicated region
    $region114: #{coatnet_forward.1} parent=1 // pred_check
      _
    $region115: #{coatnet_forward.1} parent=1 // pred_check_branch
      %365 = sbr.rel (0) target = $region117
    $region116: #{coatnet_forward.1} parent=1 // pred_region
      _
    $region117: #{coatnet_forward.1} parent=1 // pred_fallthru
      _
    // Predicated region
    $region118: #{coatnet_forward.1} parent=1 // pred_check
      _
    $region119: #{coatnet_forward.1} parent=1 // pred_check_branch
      %367 = sbr.rel (0) target = $region121
    $region120: #{coatnet_forward.1} parent=1 // pred_region
      %s369 = ssub.s32 32, 32
      %370 = vsyncadd [#allocation39], %s369
      %s372 = sshll.u32 [#allocation40], 4
      %s373 = int_to_ptr.vmem [resolvable:$true] %s372
      %375 = dma.hbm_to_vmem [thread:$0]  %s59, 32, %s373, [#allocation39]
    $region121: #{coatnet_forward.1} parent=1 // pred_fallthru
      _
    // Predicated region
    $region122: #{coatnet_forward.1} parent=1 // pred_check
      _
    $region123: #{coatnet_forward.1} parent=1 // pred_check_branch
      %377 = sbr.rel (0) target = $region125
    $region124: #{coatnet_forward.1} parent=1 // pred_region
      %s379 = ssub.s32 2048, 2048
      %380 = vsyncadd [#allocation42], %s379
      %s381 = sshll.u32 [#allocation41], 4
      %s382 = int_to_ptr.vmem [resolvable:$true] %s381
      %387 = dma.hbm_to_vmem [thread:$0]  %s61, 2048, %s382, [#allocation42], 64, 64, 4
    $region125: #{coatnet_forward.1} parent=1 // pred_fallthru
      _
    // Predicated region
    $region126: #{coatnet_forward.1} parent=1 // pred_check
      _
    $region127: #{coatnet_forward.1} parent=1 // pred_check_branch
      %389 = sbr.rel (0) target = $region129
    $region128: #{coatnet_forward.1} parent=1 // pred_region
      %s391 = ssub.s32 16, 16
      %392 = vsyncadd [#allocation42], %s391
      %s394 = sshll.u32 [#allocation43], 4
      %s395 = int_to_ptr.vmem [resolvable:$true] %s394
      %397 = dma.hbm_to_vmem [thread:$0]  %s63, 16, %s395, [#allocation42]
    $region129: #{coatnet_forward.1} parent=1 // pred_fallthru
      _
    // Predicated region
    $region130: #{coatnet_forward.1} parent=1 // pred_check
      _
    $region131: #{coatnet_forward.1} parent=1 // pred_check_branch
      %399 = sbr.rel (0) target = $region133
    $region132: #{coatnet_forward.1} parent=1 // pred_region
      %s401 = ssub.s32 16, 16
      %402 = vsyncadd [#allocation45], %s401
      %s404 = sshll.u32 [#allocation44], 4
      %s405 = int_to_ptr.vmem [resolvable:$true] %s404
      %407 = dma.hbm_to_vmem [thread:$0]  %s65, 16, %s405, [#allocation45]
    $region133: #{coatnet_forward.1} parent=1 // pred_fallthru
      _
    // Predicated region
    $region134: #{coatnet_forward.1} parent=1 // pred_check
      _
    $region135: #{coatnet_forward.1} parent=1 // pred_check_branch
      %409 = sbr.rel (0) target = $region137
    $region136: #{coatnet_forward.1} parent=1 // pred_region
      %s411 = ssub.s32 16, 16
      %412 = vsyncadd [#allocation45], %s411
      %s414 = sshll.u32 [#allocation46], 4
      %s415 = int_to_ptr.vmem [resolvable:$true] %s414
      %417 = dma.hbm_to_vmem [thread:$0]  %s67, 16, %s415, [#allocation45]
    $region137: #{coatnet_forward.1} parent=1 // pred_fallthru
      _
    // Predicated region
    $region138: #{coatnet_forward.1} parent=1 // pred_check
      _
    $region139: #{coatnet_forward.1} parent=1 // pred_check_branch
      %419 = sbr.rel (0) target = $region141
    $region140: #{coatnet_forward.1} parent=1 // pred_region
      %s421 = ssub.s32 16, 16
      %422 = vsyncadd [#allocation48], %s421
      %s424 = sshll.u32 [#allocation47], 4
      %s425 = int_to_ptr.vmem [resolvable:$true] %s424
      %427 = dma.hbm_to_vmem [thread:$0]  %s69, 16, %s425, [#allocation48]
    $region141: #{coatnet_forward.1} parent=1 // pred_fallthru
      _
    // Predicated region
    $region142: #{coatnet_forward.1} parent=1 // pred_check
      _
    $region143: #{coatnet_forward.1} parent=1 // pred_check_branch
      %429 = sbr.rel (0) target = $region145
    $region144: #{coatnet_forward.1} parent=1 // pred_region
      _
    $region145: #{coatnet_forward.1} parent=1 // pred_fallthru
      _
    // Predicated region
    $region146: #{coatnet_forward.1} parent=1 // pred_check
      _
    $region147: #{coatnet_forward.1} parent=1 // pred_check_branch
      %431 = sbr.rel (0) target = $region149
    $region148: #{coatnet_forward.1} parent=1 // pred_region
      _
    $region149: #{coatnet_forward.1} parent=1 // pred_fallthru
      _
    // Predicated region
    $region150: #{coatnet_forward.1} parent=1 // pred_check
      _
    $region151: #{coatnet_forward.1} parent=1 // pred_check_branch
      %433 = sbr.rel (0) target = $region153
    $region152: #{coatnet_forward.1} parent=1 // pred_region
      %434 = dma.done [#allocation4], 16
    $region153: #{coatnet_forward.1} parent=1 // pred_fallthru
      _
    // Predicated region
    $region154: #{coatnet_forward.1} parent=1 // pred_check
      _
    $region155: #{coatnet_forward.1} parent=1 // pred_check_branch
      %436 = sbr.rel (0) target = $region157
    $region156: #{coatnet_forward.1} parent=1 // pred_region
      %437 = dma.done [#allocation6], 16
    $region157: #{coatnet_forward.1} parent=1 // pred_fallthru
      _
    // Predicated region
    $region158: #{coatnet_forward.1} parent=1 // pred_check
      _
    $region159: #{coatnet_forward.1} parent=1 // pred_check_branch
      %439 = sbr.rel (0) target = $region161
    $region160: #{coatnet_forward.1} parent=1 // pred_region
      %440 = dma.done [#allocation6], 16
    $region161: #{coatnet_forward.1} parent=1 // pred_fallthru
      _
    // Predicated region
    $region162: #{coatnet_forward.1} parent=1 // pred_check
      _
    $region163: #{coatnet_forward.1} parent=1 // pred_check_branch
      %442 = sbr.rel (0) target = $region165
    $region164: #{coatnet_forward.1} parent=1 // pred_region
      %443 = dma.done [#allocation9], 1024
    $region165: #{coatnet_forward.1} parent=1 // pred_fallthru
      _
    // Predicated region
    $region166: #{coatnet_forward.1} parent=1 // pred_check
      _
    $region167: #{coatnet_forward.1} parent=1 // pred_check_branch
      %445 = sbr.rel (0) target = $region169
    $region168: #{coatnet_forward.1} parent=1 // pred_region
      %446 = dma.done [#allocation9], 16
    $region169: #{coatnet_forward.1} parent=1 // pred_fallthru
      _
    // Predicated region
    $region170: #{coatnet_forward.1} parent=1 // pred_check
      _
    $region171: #{coatnet_forward.1} parent=1 // pred_check_branch
      %448 = sbr.rel (0) target = $region173
    $region172: #{coatnet_forward.1} parent=1 // pred_region
      %449 = dma.done [#allocation12], 16
    $region173: #{coatnet_forward.1} parent=1 // pred_fallthru
      _
    // Predicated region
    $region174: #{coatnet_forward.1} parent=1 // pred_check
      _
    $region175: #{coatnet_forward.1} parent=1 // pred_check_branch
      %451 = sbr.rel (0) target = $region177
    $region176: #{coatnet_forward.1} parent=1 // pred_region
      %452 = dma.done [#allocation12], 1024
    $region177: #{coatnet_forward.1} parent=1 // pred_fallthru
      _
    // Predicated region
    $region178: #{coatnet_forward.1} parent=1 // pred_check
      _
    $region179: #{coatnet_forward.1} parent=1 // pred_check_branch
      %454 = sbr.rel (0) target = $region181
    $region180: #{coatnet_forward.1} parent=1 // pred_region
      %455 = dma.done [#allocation15], 16
    $region181: #{coatnet_forward.1} parent=1 // pred_fallthru
      _
    // Predicated region
    $region182: #{coatnet_forward.1} parent=1 // pred_check
      _
    $region183: #{coatnet_forward.1} parent=1 // pred_check_branch
      %457 = sbr.rel (0) target = $region185
    $region184: #{coatnet_forward.1} parent=1 // pred_region
      %458 = dma.done [#allocation15], 256
    $region185: #{coatnet_forward.1} parent=1 // pred_fallthru
      _
    // Predicated region
    $region186: #{coatnet_forward.1} parent=1 // pred_check
      _
    $region187: #{coatnet_forward.1} parent=1 // pred_check_branch
      %460 = sbr.rel (0) target = $region189
    $region188: #{coatnet_forward.1} parent=1 // pred_region
      %461 = dma.done [#allocation18], 1024
    $region189: #{coatnet_forward.1} parent=1 // pred_fallthru
      _
    // Predicated region
    $region190: #{coatnet_forward.1} parent=1 // pred_check
      _
    $region191: #{coatnet_forward.1} parent=1 // pred_check_branch
      %463 = sbr.rel (0) target = $region193
    $region192: #{coatnet_forward.1} parent=1 // pred_region
      %464 = dma.done [#allocation18], 16
    $region193: #{coatnet_forward.1} parent=1 // pred_fallthru
      _
    // Predicated region
    $region194: #{coatnet_forward.1} parent=1 // pred_check
      _
    $region195: #{coatnet_forward.1} parent=1 // pred_check_branch
      %466 = sbr.rel (0) target = $region197
    $region196: #{coatnet_forward.1} parent=1 // pred_region
      %467 = dma.done [#allocation21], 16
    $region197: #{coatnet_forward.1} parent=1 // pred_fallthru
      _
    // Predicated region
    $region198: #{coatnet_forward.1} parent=1 // pred_check
      _
    $region199: #{coatnet_forward.1} parent=1 // pred_check_branch
      %469 = sbr.rel (0) target = $region201
    $region200: #{coatnet_forward.1} parent=1 // pred_region
      %470 = dma.done [#allocation21], 16
    $region201: #{coatnet_forward.1} parent=1 // pred_fallthru
      _
    // Predicated region
    $region202: #{coatnet_forward.1} parent=1 // pred_check
      _
    $region203: #{coatnet_forward.1} parent=1 // pred_check_branch
      %472 = sbr.rel (0) target = $region205
    $region204: #{coatnet_forward.1} parent=1 // pred_region
      %473 = dma.done [#allocation24], 1024
    $region205: #{coatnet_forward.1} parent=1 // pred_fallthru
      _
    // Predicated region
    $region206: #{coatnet_forward.1} parent=1 // pred_check
      _
    $region207: #{coatnet_forward.1} parent=1 // pred_check_branch
      %475 = sbr.rel (0) target = $region209
    $region208: #{coatnet_forward.1} parent=1 // pred_region
      %476 = dma.done [#allocation24], 16
    $region209: #{coatnet_forward.1} parent=1 // pred_fallthru
      _
    // Predicated region
    $region210: #{coatnet_forward.1} parent=1 // pred_check
      _
    $region211: #{coatnet_forward.1} parent=1 // pred_check_branch
      %478 = sbr.rel (0) target = $region213
    $region212: #{coatnet_forward.1} parent=1 // pred_region
      %479 = dma.done [#allocation27], 1024
    $region213: #{coatnet_forward.1} parent=1 // pred_fallthru
      _
    // Predicated region
    $region214: #{coatnet_forward.1} parent=1 // pred_check
      _
    $region215: #{coatnet_forward.1} parent=1 // pred_check_branch
      %481 = sbr.rel (0) target = $region217
    $region216: #{coatnet_forward.1} parent=1 // pred_region
      %482 = dma.done [#allocation27], 16
    $region217: #{coatnet_forward.1} parent=1 // pred_fallthru
      _
    // Predicated region
    $region218: #{coatnet_forward.1} parent=1 // pred_check
      _
    $region219: #{coatnet_forward.1} parent=1 // pred_check_branch
      %484 = sbr.rel (0) target = $region221
    $region220: #{coatnet_forward.1} parent=1 // pred_region
      %485 = dma.done [#allocation30], 1024
    $region221: #{coatnet_forward.1} parent=1 // pred_fallthru
      _
    // Predicated region
    $region222: #{coatnet_forward.1} parent=1 // pred_check
      _
    $region223: #{coatnet_forward.1} parent=1 // pred_check_branch
      %487 = sbr.rel (0) target = $region225
    $region224: #{coatnet_forward.1} parent=1 // pred_region
      %488 = dma.done [#allocation30], 16
    $region225: #{coatnet_forward.1} parent=1 // pred_fallthru
      _
    // Predicated region
    $region226: #{coatnet_forward.1} parent=1 // pred_check
      _
    $region227: #{coatnet_forward.1} parent=1 // pred_check_branch
      %490 = sbr.rel (0) target = $region229
    $region228: #{coatnet_forward.1} parent=1 // pred_region
      %491 = dma.done [#allocation33], 64
    $region229: #{coatnet_forward.1} parent=1 // pred_fallthru
      _
    // Predicated region
    $region230: #{coatnet_forward.1} parent=1 // pred_check
      _
    $region231: #{coatnet_forward.1} parent=1 // pred_check_branch
      %493 = sbr.rel (0) target = $region233
    $region232: #{coatnet_forward.1} parent=1 // pred_region
      %494 = dma.done [#allocation33], 1024
    $region233: #{coatnet_forward.1} parent=1 // pred_fallthru
      _
    // Predicated region
    $region234: #{coatnet_forward.1} parent=1 // pred_check
      _
    $region235: #{coatnet_forward.1} parent=1 // pred_check_branch
      %496 = sbr.rel (0) target = $region237
    $region236: #{coatnet_forward.1} parent=1 // pred_region
      %497 = dma.done [#allocation36], 16
    $region237: #{coatnet_forward.1} parent=1 // pred_fallthru
      _
    // Predicated region
    $region238: #{coatnet_forward.1} parent=1 // pred_check
      _
    $region239: #{coatnet_forward.1} parent=1 // pred_check_branch
      %499 = sbr.rel (0) target = $region241
    $region240: #{coatnet_forward.1} parent=1 // pred_region
      %500 = dma.done [#allocation36], 16
    $region241: #{coatnet_forward.1} parent=1 // pred_fallthru
      _
    // Predicated region
    $region242: #{coatnet_forward.1} parent=1 // pred_check
      _
    $region243: #{coatnet_forward.1} parent=1 // pred_check_branch
      %502 = sbr.rel (0) target = $region245
    $region244: #{coatnet_forward.1} parent=1 // pred_region
      %503 = dma.done [#allocation39], 16
    $region245: #{coatnet_forward.1} parent=1 // pred_fallthru
      _
    // Predicated region
    $region246: #{coatnet_forward.1} parent=1 // pred_check
      _
    $region247: #{coatnet_forward.1} parent=1 // pred_check_branch
      %505 = sbr.rel (0) target = $region249
    $region248: #{coatnet_forward.1} parent=1 // pred_region
      %506 = dma.done [#allocation39], 32
    $region249: #{coatnet_forward.1} parent=1 // pred_fallthru
      _
    // Predicated region
    $region250: #{coatnet_forward.1} parent=1 // pred_check
      _
    $region251: #{coatnet_forward.1} parent=1 // pred_check_branch
      %508 = sbr.rel (0) target = $region253
    $region252: #{coatnet_forward.1} parent=1 // pred_region
      %509 = dma.done [#allocation42], 2048
    $region253: #{coatnet_forward.1} parent=1 // pred_fallthru
      _
    // Predicated region
    $region254: #{coatnet_forward.1} parent=1 // pred_check
      _
    $region255: #{coatnet_forward.1} parent=1 // pred_check_branch
      %511 = sbr.rel (0) target = $region257
    $region256: #{coatnet_forward.1} parent=1 // pred_region
      %512 = dma.done [#allocation42], 16
    $region257: #{coatnet_forward.1} parent=1 // pred_fallthru
      _
    // Predicated region
    $region258: #{coatnet_forward.1} parent=1 // pred_check
      _
    $region259: #{coatnet_forward.1} parent=1 // pred_check_branch
      %514 = sbr.rel (0) target = $region261
    $region260: #{coatnet_forward.1} parent=1 // pred_region
      %515 = dma.done [#allocation45], 16
    $region261: #{coatnet_forward.1} parent=1 // pred_fallthru
      _
    // Predicated region
    $region262: #{coatnet_forward.1} parent=1 // pred_check
      _
    $region263: #{coatnet_forward.1} parent=1 // pred_check_branch
      %517 = sbr.rel (0) target = $region265
    $region264: #{coatnet_forward.1} parent=1 // pred_region
      %518 = dma.done [#allocation45], 16
    $region265: #{coatnet_forward.1} parent=1 // pred_fallthru
      _
    // Predicated region
    $region266: #{coatnet_forward.1} parent=1 // pred_check
      _
    $region267: #{coatnet_forward.1} parent=1 // pred_check_branch
      %520 = sbr.rel (0) target = $region269
    $region268: #{coatnet_forward.1} parent=1 // pred_region
      %521 = dma.done [#allocation48], 16
    $region269: #{coatnet_forward.1} parent=1 // pred_fallthru
      _
    %v523 = vld [vmem:[%s1] sm:$0xf]
    %v524 = vld [vmem:[%s1 + $0x4] sm:$0xf]
    %v525 = vld [vmem:[%s1 + $0x8] sm:$0xf]
    %v526 = vld [vmem:[%s1 + $0xc] sm:$0xf]
    %v527 = vld [vmem:[%s1 + $0x10] sm:$0xf]
    %v528 = vld [vmem:[%s1 + $0x14] sm:$0xf]
    %v529 = vld [vmem:[%s1 + $0x18] sm:$0xf]
    %v530 = vld [vmem:[%s1 + $0x1c] sm:$0xf]
    %v531 = vld [vmem:[%s1 + $0x20] sm:$0xf]
    %v532 = vld [vmem:[%s1 + $0x24] sm:$0xf]
    %v533 = vld [vmem:[%s1 + $0x28] sm:$0xf]
    %v534 = vld [vmem:[%s1 + $0x2c] sm:$0xf]
    %v535 = vld [vmem:[%s1 + $0x30] sm:$0xf]
    %v536 = vld [vmem:[%s1 + $0x34] sm:$0xf]
    %v537 = vld [vmem:[%s1 + $0x38] sm:$0xf]
    %v538 = vld [vmem:[%s1 + $0x3c] sm:$0xf]
    %v539 = vld [vmem:[%s3] sm:$0xf]
    %v540 = vld [vmem:[%s3 + $0x4] sm:$0xf]
    %v541 = vld [vmem:[%s3 + $0x8] sm:$0xf]
    %v542 = vld [vmem:[%s3 + $0xc] sm:$0xf]
    %v543 = vld [vmem:[%s3 + $0x10] sm:$0xf]
    %v544 = vld [vmem:[%s3 + $0x14] sm:$0xf]
    %v545 = vld [vmem:[%s3 + $0x18] sm:$0xf]
    %v546 = vld [vmem:[%s3 + $0x1c] sm:$0xf]
    %v547 = vld [vmem:[%s3 + $0x20] sm:$0xf]
    %v548 = vld [vmem:[%s3 + $0x24] sm:$0xf]
    %v549 = vld [vmem:[%s3 + $0x28] sm:$0xf]
    %v550 = vld [vmem:[%s3 + $0x2c] sm:$0xf]
    %v551 = vld [vmem:[%s3 + $0x30] sm:$0xf]
    %v552 = vld [vmem:[%s3 + $0x34] sm:$0xf]
    %v553 = vld [vmem:[%s3 + $0x38] sm:$0xf]
    %v554 = vld [vmem:[%s3 + $0x3c] sm:$0xf]
    %v555 = vld [vmem:[#allocation3] sm:$0x1]
    %v557 = vlaneseq
    %v558 = vshrl.u32 %v557, 7
    %v559 = vsub.s32 0, %v558
    %v560 = vrot.slane %v555, %v559
    %v578 = vunpack.c.l.b16 %v523
    %v579 = vunpack.c.l.b16 %v524
    %v580 = vunpack.c.l.b16 %v525
    %v581 = vunpack.c.l.b16 %v526
    %v582 = vunpack.c.l.b16 %v527
    %v583 = vunpack.c.l.b16 %v528
    %v584 = vunpack.c.l.b16 %v529
    %v585 = vunpack.c.l.b16 %v530
    %v586 = vunpack.c.l.b16 %v531
    %v587 = vunpack.c.l.b16 %v532
    %v588 = vunpack.c.l.b16 %v533
    %v589 = vunpack.c.l.b16 %v534
    %v590 = vunpack.c.l.b16 %v535
    %v591 = vunpack.c.l.b16 %v536
    %v592 = vunpack.c.l.b16 %v537
    %v593 = vunpack.c.l.b16 %v538
    %v594 = vpack.c.b16 %v579, %v578
    %v595 = vpack.c.b16 %v581, %v580
    %v596 = vpack.c.b16 %v583, %v582
    %v597 = vpack.c.b16 %v585, %v584
    %v598 = vpack.c.b16 %v587, %v586
    %v599 = vpack.c.b16 %v589, %v588
    %v600 = vpack.c.b16 %v591, %v590
    %v601 = vpack.c.b16 %v593, %v592
    %v626 = vunpack.c.l.b16 %v539
    %v627 = vunpack.c.l.b16 %v540
    %v628 = vunpack.c.l.b16 %v541
    %v629 = vunpack.c.l.b16 %v542
    %v630 = vunpack.c.l.b16 %v543
    %v631 = vunpack.c.l.b16 %v544
    %v632 = vunpack.c.l.b16 %v545
    %v633 = vunpack.c.l.b16 %v546
    %v634 = vunpack.c.l.b16 %v547
    %v635 = vunpack.c.l.b16 %v548
    %v636 = vunpack.c.l.b16 %v549
    %v637 = vunpack.c.l.b16 %v550
    %v638 = vunpack.c.l.b16 %v551
    %v639 = vunpack.c.l.b16 %v552
    %v640 = vunpack.c.l.b16 %v553
    %v641 = vunpack.c.l.b16 %v554
    %v642 = vpack.c.b16 %v627, %v626
    %v643 = vpack.c.b16 %v629, %v628
    %v644 = vpack.c.b16 %v631, %v630
    %v645 = vpack.c.b16 %v633, %v632
    %v646 = vpack.c.b16 %v635, %v634
    %v647 = vpack.c.b16 %v637, %v636
    %v648 = vpack.c.b16 %v639, %v638
    %v649 = vpack.c.b16 %v641, %v640
    %658 = vmatprep.subr.bf16.mxu0 0
    %659 = vmatpush1.bf16.msra.mxu0 %v642
    %660 = vmatprep.subr.bf16.mxu0 0
    %661 = vmatpush1.bf16.msra.mxu0 %v643
    %662 = vmatprep.subr.bf16.mxu0 0
    %663 = vmatpush1.bf16.msra.mxu0 %v644
    %664 = vmatprep.subr.bf16.mxu0 0
    %665 = vmatpush1.bf16.msra.mxu0 %v645
    %666 = vmatprep.subr.bf16.mxu0 0
    %667 = vmatpush1.bf16.msra.mxu0 %v646
    %668 = vmatprep.subr.bf16.mxu0 0
    %669 = vmatpush1.bf16.msra.mxu0 %v647
    %670 = vmatprep.subr.bf16.mxu0 0
    %671 = vmatpush1.bf16.msra.mxu0 %v648
    %672 = vmatprep.subr.bf16.mxu0 0
    %673 = vmatpush1.bf16.msra.mxu0 %v649
    %674 = vmatprep.subr.bf16.mxu0 0
    %675 = vmatpush1.bf16.msra.mxu0 0
    %676 = vmatprep.subr.bf16.mxu0 0
    %677 = vmatpush1.bf16.msra.mxu0 0
    %678 = vmatprep.subr.bf16.mxu0 0
    %679 = vmatpush1.bf16.msra.mxu0 0
    %680 = vmatprep.subr.bf16.mxu0 0
    %681 = vmatpush1.bf16.msra.mxu0 0
    %682 = vmatprep.subr.bf16.mxu0 0
    %683 = vmatpush1.bf16.msra.mxu0 0
    %684 = vmatprep.subr.bf16.mxu0 0
    %685 = vmatpush1.bf16.msra.mxu0 0
    %686 = vmatprep.subr.bf16.mxu0 0
    %687 = vmatpush1.bf16.msra.mxu0 0
    %688 = vmatprep.subr.bf16.mxu0 0
    %689 = vmatpush1.bf16.msra.mxu0 0
    %690 = vmatprep.mubr.bf16.mxu0 0
    %691 = vmatmul.mubr.bf16.gmra.mrb[0].mxu0 %v594
    %v692 = vpop.f32.mrb[0].mxu0
    %v693 = vadd.f32 %v560, %v692
    %v694 = vpop.f32.mrb[0].mxu0
    %v695 = vpop.f32.mrb[0].mxu0
    %v696 = vadd.f32 %v560, %v695
    %v697 = vpop.f32.mrb[0].mxu0
    %698 = vmatprep.mubr.bf16.mxu0 0
    %699 = vmatmul.mubr.bf16.gmra.mrb[0].mxu0 %v595
    %v700 = vpop.f32.mrb[0].mxu0
    %v701 = vadd.f32 %v560, %v700
    %v702 = vpop.f32.mrb[0].mxu0
    %v703 = vpop.f32.mrb[0].mxu0
    %v704 = vadd.f32 %v560, %v703
    %v705 = vpop.f32.mrb[0].mxu0
    %706 = vmatprep.mubr.bf16.mxu0 0
    %707 = vmatmul.mubr.bf16.gmra.mrb[0].mxu0 %v596
    %v708 = vpop.f32.mrb[0].mxu0
    %v709 = vadd.f32 %v560, %v708
    %v710 = vpop.f32.mrb[0].mxu0
    %v711 = vpop.f32.mrb[0].mxu0
    %v712 = vadd.f32 %v560, %v711
    %v713 = vpop.f32.mrb[0].mxu0
    %714 = vmatprep.mubr.bf16.mxu0 0
    %715 = vmatmul.mubr.bf16.gmra.mrb[0].mxu0 %v597
    %v716 = vpop.f32.mrb[0].mxu0
    %v717 = vadd.f32 %v560, %v716
    %v718 = vpop.f32.mrb[0].mxu0
    %v719 = vpop.f32.mrb[0].mxu0
    %v720 = vadd.f32 %v560, %v719
    %v721 = vpop.f32.mrb[0].mxu0
    %722 = vmatprep.mubr.bf16.mxu0 0
    %723 = vmatmul.mubr.bf16.gmra.mrb[0].mxu0 %v598
    %v724 = vpop.f32.mrb[0].mxu0
    %v725 = vadd.f32 %v560, %v724
    %v726 = vpop.f32.mrb[0].mxu0
    %v727 = vpop.f32.mrb[0].mxu0
    %v728 = vadd.f32 %v560, %v727
    %v729 = vpop.f32.mrb[0].mxu0
    %730 = vmatprep.mubr.bf16.mxu0 0
    %731 = vmatmul.mubr.bf16.gmra.mrb[0].mxu0 %v599
    %v732 = vpop.f32.mrb[0].mxu0
    %v733 = vadd.f32 %v560, %v732
    %v734 = vpop.f32.mrb[0].mxu0
    %v735 = vpop.f32.mrb[0].mxu0
    %v736 = vadd.f32 %v560, %v735
    %v737 = vpop.f32.mrb[0].mxu0
    %738 = vmatprep.mubr.bf16.mxu0 0
    %739 = vmatmul.mubr.bf16.gmra.mrb[0].mxu0 %v600
    %v740 = vpop.f32.mrb[0].mxu0
    %v741 = vadd.f32 %v560, %v740
    %v742 = vpop.f32.mrb[0].mxu0
    %v743 = vpop.f32.mrb[0].mxu0
    %v744 = vadd.f32 %v560, %v743
    %v745 = vpop.f32.mrb[0].mxu0
    %746 = vmatprep.mubr.bf16.mxu0 0
    %747 = vmatmul.mubr.bf16.gmra.mrb[0].mxu0 %v601
    %v748 = vpop.f32.mrb[0].mxu0
    %v749 = vadd.f32 %v560, %v748
    %v750 = vpop.f32.mrb[0].mxu0
    %v751 = vpop.f32.mrb[0].mxu0
    %v752 = vadd.f32 %v560, %v751
    %v753 = vpop.f32.mrb[0].mxu0
    %754 = vdwg.mxu0
    %v755 = vmul.f32 %v693, %v693
    %v756 = vmul.f32 %v696, %v696
    %v757 = vmul.f32 %v701, %v701
    %v758 = vmul.f32 %v704, %v704
    %v759 = vmul.f32 %v709, %v709
    %v760 = vmul.f32 %v712, %v712
    %v761 = vmul.f32 %v717, %v717
    %v762 = vmul.f32 %v720, %v720
    %v763 = vmul.f32 %v725, %v725
    %v764 = vmul.f32 %v728, %v728
    %v765 = vmul.f32 %v733, %v733
    %v766 = vmul.f32 %v736, %v736
    %v767 = vmul.f32 %v741, %v741
    %v768 = vmul.f32 %v744, %v744
    %v769 = vmul.f32 %v749, %v749
    %v770 = vmul.f32 %v752, %v752
    %v771 = vmul.f32 %v693, %v755
    %v772 = vmul.f32 %v696, %v756
    %v773 = vmul.f32 %v701, %v757
    %v774 = vmul.f32 %v704, %v758
    %v775 = vmul.f32 %v709, %v759
    %v776 = vmul.f32 %v712, %v760
    %v777 = vmul.f32 %v717, %v761
    %v778 = vmul.f32 %v720, %v762
    %v779 = vmul.f32 %v725, %v763
    %v780 = vmul.f32 %v728, %v764
    %v781 = vmul.f32 %v733, %v765
    %v782 = vmul.f32 %v736, %v766
    %v783 = vmul.f32 %v741, %v767
    %v784 = vmul.f32 %v744, %v768
    %v785 = vmul.f32 %v749, %v769
    %v786 = vmul.f32 %v752, %v770
    %v787 = vmul.f32 %v771, 0.044715
    %v788 = vmul.f32 %v772, 0.044715
    %v789 = vmul.f32 %v773, 0.044715
    %v790 = vmul.f32 %v774, 0.044715
    %v791 = vmul.f32 %v775, 0.044715
    %v792 = vmul.f32 %v776, 0.044715
    %v793 = vmul.f32 %v777, 0.044715
    %v794 = vmul.f32 %v778, 0.044715
    %v795 = vmul.f32 %v779, 0.044715
    %v796 = vmul.f32 %v780, 0.044715
    %v797 = vmul.f32 %v781, 0.044715
    %v798 = vmul.f32 %v782, 0.044715
    %v799 = vmul.f32 %v783, 0.044715
    %v800 = vmul.f32 %v784, 0.044715
    %v801 = vmul.f32 %v785, 0.044715
    %v802 = vmul.f32 %v786, 0.044715
    %v803 = vadd.f32 %v693, %v787
    %v804 = vadd.f32 %v696, %v788
    %v805 = vadd.f32 %v701, %v789
    %v806 = vadd.f32 %v704, %v790
    %v807 = vadd.f32 %v709, %v791
    %v808 = vadd.f32 %v712, %v792
    %v809 = vadd.f32 %v717, %v793
    %v810 = vadd.f32 %v720, %v794
    %v811 = vadd.f32 %v725, %v795
    %v812 = vadd.f32 %v728, %v796
    %v813 = vadd.f32 %v733, %v797
    %v814 = vadd.f32 %v736, %v798
    %v815 = vadd.f32 %v741, %v799
    %v816 = vadd.f32 %v744, %v800
    %v817 = vadd.f32 %v749, %v801
    %v818 = vadd.f32 %v752, %v802
    %v819 = vmul.f32 %v803, 0.7978846
    %v820 = vmul.f32 %v804, 0.7978846
    %v821 = vmul.f32 %v805, 0.7978846
    %v822 = vmul.f32 %v806, 0.7978846
    %v823 = vmul.f32 %v807, 0.7978846
    %v824 = vmul.f32 %v808, 0.7978846
    %v825 = vmul.f32 %v809, 0.7978846
    %v826 = vmul.f32 %v810, 0.7978846
    %v827 = vmul.f32 %v811, 0.7978846
    %v828 = vmul.f32 %v812, 0.7978846
    %v829 = vmul.f32 %v813, 0.7978846
    %v830 = vmul.f32 %v814, 0.7978846
    %v831 = vmul.f32 %v815, 0.7978846
    %v832 = vmul.f32 %v816, 0.7978846
    %v833 = vmul.f32 %v817, 0.7978846
    %v834 = vmul.f32 %v818, 0.7978846
    %v835 = vtanh.pop %v819
    %v836 = vtanh.pop %v820
    %v837 = vtanh.pop %v821
    %v838 = vtanh.pop %v822
    %v839 = vtanh.pop %v823
    %v840 = vtanh.pop %v824
    %v841 = vtanh.pop %v825
    %v842 = vtanh.pop %v826
    %v843 = vtanh.pop %v827
    %v844 = vtanh.pop %v828
    %v845 = vtanh.pop %v829
    %v846 = vtanh.pop %v830
    %v847 = vtanh.pop %v831
    %v848 = vtanh.pop %v832
    %v849 = vtanh.pop %v833
    %v850 = vtanh.pop %v834
    %v851 = vadd.f32 %v835, 1.0
    %v852 = vadd.f32 %v836, 1.0
    %v853 = vadd.f32 %v837, 1.0
    %v854 = vadd.f32 %v838, 1.0
    %v855 = vadd.f32 %v839, 1.0
    %v856 = vadd.f32 %v840, 1.0
    %v857 = vadd.f32 %v841, 1.0
    %v858 = vadd.f32 %v842, 1.0
    %v859 = vadd.f32 %v843, 1.0
    %v860 = vadd.f32 %v844, 1.0
    %v861 = vadd.f32 %v845, 1.0
    %v862 = vadd.f32 %v846, 1.0
    %v863 = vadd.f32 %v847, 1.0
    %v864 = vadd.f32 %v848, 1.0
    %v865 = vadd.f32 %v849, 1.0
    %v866 = vadd.f32 %v850, 1.0
    %v867 = vmul.f32 %v851, 0.5
    %v868 = vmul.f32 %v852, 0.5
    %v869 = vmul.f32 %v853, 0.5
    %v870 = vmul.f32 %v854, 0.5
    %v871 = vmul.f32 %v855, 0.5
    %v872 = vmul.f32 %v856, 0.5
    %v873 = vmul.f32 %v857, 0.5
    %v874 = vmul.f32 %v858, 0.5
    %v875 = vmul.f32 %v859, 0.5
    %v876 = vmul.f32 %v860, 0.5
    %v877 = vmul.f32 %v861, 0.5
    %v878 = vmul.f32 %v862, 0.5
    %v879 = vmul.f32 %v863, 0.5
    %v880 = vmul.f32 %v864, 0.5
    %v881 = vmul.f32 %v865, 0.5
    %v882 = vmul.f32 %v866, 0.5
    %v883 = vmul.f32 %v693, %v867
    %v884 = vmul.f32 %v696, %v868
    %v885 = vmul.f32 %v701, %v869
    %v886 = vmul.f32 %v704, %v870
    %v887 = vmul.f32 %v709, %v871
    %v888 = vmul.f32 %v712, %v872
    %v889 = vmul.f32 %v717, %v873
    %v890 = vmul.f32 %v720, %v874
    %v891 = vmul.f32 %v725, %v875
    %v892 = vmul.f32 %v728, %v876
    %v893 = vmul.f32 %v733, %v877
    %v894 = vmul.f32 %v736, %v878
    %v895 = vmul.f32 %v741, %v879
    %v896 = vmul.f32 %v744, %v880
    %v897 = vmul.f32 %v749, %v881
    %v898 = vmul.f32 %v752, %v882
    %v899 = vld [vmem:[#allocation5] sm:$0x1]
    %v900 = vld [vmem:[#allocation7] sm:$0x1]
    %901 = vadd.xlane.f32.xlu0 %v883
    %v902 = vpop.xlane.xlu0 %901
    %903 = vadd.xlane.f32.xlu0 %v884
    %v904 = vpop.xlane.xlu0 %903
    %905 = vadd.xlane.f32.xlu0 %v885
    %v906 = vpop.xlane.xlu0 %905
    %907 = vadd.xlane.f32.xlu0 %v886
    %v908 = vpop.xlane.xlu0 %907
    %909 = vadd.xlane.f32.xlu0 %v887
    %v910 = vpop.xlane.xlu0 %909
    %911 = vadd.xlane.f32.xlu0 %v888
    %v912 = vpop.xlane.xlu0 %911
    %913 = vadd.xlane.f32.xlu0 %v889
    %v914 = vpop.xlane.xlu0 %913
    %915 = vadd.xlane.f32.xlu0 %v890
    %v916 = vpop.xlane.xlu0 %915
    %917 = vadd.xlane.f32.xlu0 %v891
    %v918 = vpop.xlane.xlu0 %917
    %919 = vadd.xlane.f32.xlu0 %v892
    %v920 = vpop.xlane.xlu0 %919
    %921 = vadd.xlane.f32.xlu0 %v893
    %v922 = vpop.xlane.xlu0 %921
    %923 = vadd.xlane.f32.xlu0 %v894
    %v924 = vpop.xlane.xlu0 %923
    %925 = vadd.xlane.f32.xlu0 %v895
    %v926 = vpop.xlane.xlu0 %925
    %927 = vadd.xlane.f32.xlu0 %v896
    %v928 = vpop.xlane.xlu0 %927
    %929 = vadd.xlane.f32.xlu0 %v897
    %v930 = vpop.xlane.xlu0 %929
    %931 = vadd.xlane.f32.xlu0 %v898
    %v932 = vpop.xlane.xlu0 %931
    %v933 = vmul.f32 %v902, 0.015625
    %v934 = vmul.f32 %v904, 0.015625
    %v935 = vmul.f32 %v906, 0.015625
    %v936 = vmul.f32 %v908, 0.015625
    %v937 = vmul.f32 %v910, 0.015625
    %v938 = vmul.f32 %v912, 0.015625
    %v939 = vmul.f32 %v914, 0.015625
    %v940 = vmul.f32 %v916, 0.015625
    %v941 = vmul.f32 %v918, 0.015625
    %v942 = vmul.f32 %v920, 0.015625
    %v943 = vmul.f32 %v922, 0.015625
    %v944 = vmul.f32 %v924, 0.015625
    %v945 = vmul.f32 %v926, 0.015625
    %v946 = vmul.f32 %v928, 0.015625
    %v947 = vmul.f32 %v930, 0.015625
    %v948 = vmul.f32 %v932, 0.015625
    %v949 = vmul.f32 %v883, %v883
    %v950 = vmul.f32 %v884, %v884
    %v951 = vmul.f32 %v885, %v885
    %v952 = vmul.f32 %v886, %v886
    %v953 = vmul.f32 %v887, %v887
    %v954 = vmul.f32 %v888, %v888
    %v955 = vmul.f32 %v889, %v889
    %v956 = vmul.f32 %v890, %v890
    %v957 = vmul.f32 %v891, %v891
    %v958 = vmul.f32 %v892, %v892
    %v959 = vmul.f32 %v893, %v893
    %v960 = vmul.f32 %v894, %v894
    %v961 = vmul.f32 %v895, %v895
    %v962 = vmul.f32 %v896, %v896
    %v963 = vmul.f32 %v897, %v897
    %v964 = vmul.f32 %v898, %v898
    %965 = vadd.xlane.f32.xlu0 %v949
    %v966 = vpop.xlane.xlu0 %965
    %967 = vadd.xlane.f32.xlu0 %v950
    %v968 = vpop.xlane.xlu0 %967
    %969 = vadd.xlane.f32.xlu0 %v951
    %v970 = vpop.xlane.xlu0 %969
    %971 = vadd.xlane.f32.xlu0 %v952
    %v972 = vpop.xlane.xlu0 %971
    %973 = vadd.xlane.f32.xlu0 %v953
    %v974 = vpop.xlane.xlu0 %973
    %975 = vadd.xlane.f32.xlu0 %v954
    %v976 = vpop.xlane.xlu0 %975
    %977 = vadd.xlane.f32.xlu0 %v955
    %v978 = vpop.xlane.xlu0 %977
    %979 = vadd.xlane.f32.xlu0 %v956
    %v980 = vpop.xlane.xlu0 %979
    %981 = vadd.xlane.f32.xlu0 %v957
    %v982 = vpop.xlane.xlu0 %981
    %983 = vadd.xlane.f32.xlu0 %v958
    %v984 = vpop.xlane.xlu0 %983
    %985 = vadd.xlane.f32.xlu0 %v959
    %v986 = vpop.xlane.xlu0 %985
    %987 = vadd.xlane.f32.xlu0 %v960
    %v988 = vpop.xlane.xlu0 %987
    %989 = vadd.xlane.f32.xlu0 %v961
    %v990 = vpop.xlane.xlu0 %989
    %991 = vadd.xlane.f32.xlu0 %v962
    %v992 = vpop.xlane.xlu0 %991
    %993 = vadd.xlane.f32.xlu0 %v963
    %v994 = vpop.xlane.xlu0 %993
    %995 = vadd.xlane.f32.xlu0 %v964
    %v996 = vpop.xlane.xlu0 %995
    %v997 = vmul.f32 %v966, 0.015625
    %v998 = vmul.f32 %v968, 0.015625
    %v999 = vmul.f32 %v970, 0.015625
    %v1000 = vmul.f32 %v972, 0.015625
    %v1001 = vmul.f32 %v974, 0.015625
    %v1002 = vmul.f32 %v976, 0.015625
    %v1003 = vmul.f32 %v978, 0.015625
    %v1004 = vmul.f32 %v980, 0.015625
    %v1005 = vmul.f32 %v982, 0.015625
    %v1006 = vmul.f32 %v984, 0.015625
    %v1007 = vmul.f32 %v986, 0.015625
    %v1008 = vmul.f32 %v988, 0.015625
    %v1009 = vmul.f32 %v990, 0.015625
    %v1010 = vmul.f32 %v992, 0.015625
    %v1011 = vmul.f32 %v994, 0.015625
    %v1012 = vmul.f32 %v996, 0.015625
    %v1013 = vmul.f32 %v933, %v933
    %v1014 = vmul.f32 %v934, %v934
    %v1015 = vmul.f32 %v935, %v935
    %v1016 = vmul.f32 %v936, %v936
    %v1017 = vmul.f32 %v937, %v937
    %v1018 = vmul.f32 %v938, %v938
    %v1019 = vmul.f32 %v939, %v939
    %v1020 = vmul.f32 %v940, %v940
    %v1021 = vmul.f32 %v941, %v941
    %v1022 = vmul.f32 %v942, %v942
    %v1023 = vmul.f32 %v943, %v943
    %v1024 = vmul.f32 %v944, %v944
    %v1025 = vmul.f32 %v945, %v945
    %v1026 = vmul.f32 %v946, %v946
    %v1027 = vmul.f32 %v947, %v947
    %v1028 = vmul.f32 %v948, %v948
    %v1029 = vsub.f32 %v997, %v1013
    %v1030 = vsub.f32 %v998, %v1014
    %v1031 = vsub.f32 %v999, %v1015
    %v1032 = vsub.f32 %v1000, %v1016
    %v1033 = vsub.f32 %v1001, %v1017
    %v1034 = vsub.f32 %v1002, %v1018
    %v1035 = vsub.f32 %v1003, %v1019
    %v1036 = vsub.f32 %v1004, %v1020
    %v1037 = vsub.f32 %v1005, %v1021
    %v1038 = vsub.f32 %v1006, %v1022
    %v1039 = vsub.f32 %v1007, %v1023
    %v1040 = vsub.f32 %v1008, %v1024
    %v1041 = vsub.f32 %v1009, %v1025
    %v1042 = vsub.f32 %v1010, %v1026
    %v1043 = vsub.f32 %v1011, %v1027
    %v1044 = vsub.f32 %v1012, %v1028
    %v1045 = vsub.f32 %v883, %v933
    %v1046 = vsub.f32 %v884, %v934
    %v1047 = vsub.f32 %v885, %v935
    %v1048 = vsub.f32 %v886, %v936
    %v1049 = vsub.f32 %v887, %v937
    %v1050 = vsub.f32 %v888, %v938
    %v1051 = vsub.f32 %v889, %v939
    %v1052 = vsub.f32 %v890, %v940
    %v1053 = vsub.f32 %v891, %v941
    %v1054 = vsub.f32 %v892, %v942
    %v1055 = vsub.f32 %v893, %v943
    %v1056 = vsub.f32 %v894, %v944
    %v1057 = vsub.f32 %v895, %v945
    %v1058 = vsub.f32 %v896, %v946
    %v1059 = vsub.f32 %v897, %v947
    %v1060 = vsub.f32 %v898, %v948
    %v1061 = vadd.f32 %v1029, 1e-05
    %v1062 = vadd.f32 %v1030, 1e-05
    %v1063 = vadd.f32 %v1031, 1e-05
    %v1064 = vadd.f32 %v1032, 1e-05
    %v1065 = vadd.f32 %v1033, 1e-05
    %v1066 = vadd.f32 %v1034, 1e-05
    %v1067 = vadd.f32 %v1035, 1e-05
    %v1068 = vadd.f32 %v1036, 1e-05
    %v1069 = vadd.f32 %v1037, 1e-05
    %v1070 = vadd.f32 %v1038, 1e-05
    %v1071 = vadd.f32 %v1039, 1e-05
    %v1072 = vadd.f32 %v1040, 1e-05
    %v1073 = vadd.f32 %v1041, 1e-05
    %v1074 = vadd.f32 %v1042, 1e-05
    %v1075 = vadd.f32 %v1043, 1e-05
    %v1076 = vadd.f32 %v1044, 1e-05
    %v1077 = vrsqrt.pop %v1061
    %v1078 = vrsqrt.pop %v1062
    %v1079 = vrsqrt.pop %v1063
    %v1080 = vrsqrt.pop %v1064
    %v1081 = vrsqrt.pop %v1065
    %v1082 = vrsqrt.pop %v1066
    %v1083 = vrsqrt.pop %v1067
    %v1084 = vrsqrt.pop %v1068
    %v1085 = vrsqrt.pop %v1069
    %v1086 = vrsqrt.pop %v1070
    %v1087 = vrsqrt.pop %v1071
    %v1088 = vrsqrt.pop %v1072
    %v1089 = vrsqrt.pop %v1073
    %v1090 = vrsqrt.pop %v1074
    %v1091 = vrsqrt.pop %v1075
    %v1092 = vrsqrt.pop %v1076
    %v1093 = vmul.f32 %v1045, %v1077
    %v1094 = vmul.f32 %v1046, %v1078
    %v1095 = vmul.f32 %v1047, %v1079
    %v1096 = vmul.f32 %v1048, %v1080
    %v1097 = vmul.f32 %v1049, %v1081
    %v1098 = vmul.f32 %v1050, %v1082
    %v1099 = vmul.f32 %v1051, %v1083
    %v1100 = vmul.f32 %v1052, %v1084
    %v1101 = vmul.f32 %v1053, %v1085
    %v1102 = vmul.f32 %v1054, %v1086
    %v1103 = vmul.f32 %v1055, %v1087
    %v1104 = vmul.f32 %v1056, %v1088
    %v1105 = vmul.f32 %v1057, %v1089
    %v1106 = vmul.f32 %v1058, %v1090
    %v1107 = vmul.f32 %v1059, %v1091
    %v1108 = vmul.f32 %v1060, %v1092
    %v1110 = vlaneseq
    %v1111 = vshrl.u32 %v1110, 7
    %v1112 = vsub.s32 0, %v1111
    %v1113 = vrot.slane %v899, %v1112
    %v1115 = vmul.f32 %v1093, %v1113
    %v1116 = vmul.f32 %v1094, %v1113
    %v1117 = vmul.f32 %v1095, %v1113
    %v1118 = vmul.f32 %v1096, %v1113
    %v1119 = vmul.f32 %v1097, %v1113
    %v1120 = vmul.f32 %v1098, %v1113
    %v1121 = vmul.f32 %v1099, %v1113
    %v1122 = vmul.f32 %v1100, %v1113
    %v1123 = vmul.f32 %v1101, %v1113
    %v1124 = vmul.f32 %v1102, %v1113
    %v1125 = vmul.f32 %v1103, %v1113
    %v1126 = vmul.f32 %v1104, %v1113
    %v1127 = vmul.f32 %v1105, %v1113
    %v1128 = vmul.f32 %v1106, %v1113
    %v1129 = vmul.f32 %v1107, %v1113
    %v1130 = vmul.f32 %v1108, %v1113
    %v1132 = vlaneseq
    %v1133 = vshrl.u32 %v1132, 7
    %v1134 = vsub.s32 0, %v1133
    %v1135 = vrot.slane %v900, %v1134
    %v1137 = vadd.f32 %v1115, %v1135
    %v1138 = vadd.f32 %v1116, %v1135
    %v1139 = vadd.f32 %v1117, %v1135
    %v1140 = vadd.f32 %v1118, %v1135
    %v1141 = vadd.f32 %v1119, %v1135
    %v1142 = vadd.f32 %v1120, %v1135
    %v1143 = vadd.f32 %v1121, %v1135
    %v1144 = vadd.f32 %v1122, %v1135
    %v1145 = vadd.f32 %v1123, %v1135
    %v1146 = vadd.f32 %v1124, %v1135
    %v1147 = vadd.f32 %v1125, %v1135
    %v1148 = vadd.f32 %v1126, %v1135
    %v1149 = vadd.f32 %v1127, %v1135
    %v1150 = vadd.f32 %v1128, %v1135
    %v1151 = vadd.f32 %v1129, %v1135
    %v1152 = vadd.f32 %v1130, %v1135
    %v1153 = vpack.c.bf16 %v1138, %v1137
    %v1154 = vpack.c.bf16 %v1140, %v1139
    %v1155 = vpack.c.bf16 %v1142, %v1141
    %v1156 = vpack.c.bf16 %v1144, %v1143
    %v1157 = vpack.c.bf16 %v1146, %v1145
    %v1158 = vpack.c.bf16 %v1148, %v1147
    %v1159 = vpack.c.bf16 %v1150, %v1149
    %v1160 = vpack.c.bf16 %v1152, %v1151
    %v1161 = vld [vmem:[#allocation8] sm:$0xf]
    %v1162 = vld [vmem:[#allocation8 + $0x4] sm:$0xf]
    %v1163 = vld [vmem:[#allocation8 + $0x8] sm:$0xf]
    %v1164 = vld [vmem:[#allocation8 + $0xc] sm:$0xf]
    %v1165 = vld [vmem:[#allocation8 + $0x10] sm:$0xf]
    %v1166 = vld [vmem:[#allocation8 + $0x14] sm:$0xf]
    %v1167 = vld [vmem:[#allocation8 + $0x18] sm:$0xf]
    %v1168 = vld [vmem:[#allocation8 + $0x1c] sm:$0xf]
    %v1169 = vld [vmem:[#allocation8 + $0x20] sm:$0xf]
    %v1170 = vld [vmem:[#allocation8 + $0x24] sm:$0xf]
    %v1171 = vld [vmem:[#allocation8 + $0x28] sm:$0xf]
    %v1172 = vld [vmem:[#allocation8 + $0x2c] sm:$0xf]
    %v1173 = vld [vmem:[#allocation8 + $0x30] sm:$0xf]
    %v1174 = vld [vmem:[#allocation8 + $0x34] sm:$0xf]
    %v1175 = vld [vmem:[#allocation8 + $0x38] sm:$0xf]
    %v1176 = vld [vmem:[#allocation8 + $0x3c] sm:$0xf]
    %v1177 = vld [vmem:[#allocation10] sm:$0x1]
    %v1179 = vlaneseq
    %v1180 = vshrl.u32 %v1179, 7
    %v1181 = vsub.s32 0, %v1180
    %v1182 = vrot.slane %v1177, %v1181
    %v1200 = vunpack.c.l.b16 %v1161
    %v1201 = vunpack.c.l.b16 %v1162
    %v1202 = vunpack.c.l.b16 %v1163
    %v1203 = vunpack.c.l.b16 %v1164
    %v1204 = vunpack.c.l.b16 %v1165
    %v1205 = vunpack.c.l.b16 %v1166
    %v1206 = vunpack.c.l.b16 %v1167
    %v1207 = vunpack.c.l.b16 %v1168
    %v1208 = vunpack.c.l.b16 %v1169
    %v1209 = vunpack.c.l.b16 %v1170
    %v1210 = vunpack.c.l.b16 %v1171
    %v1211 = vunpack.c.l.b16 %v1172
    %v1212 = vunpack.c.l.b16 %v1173
    %v1213 = vunpack.c.l.b16 %v1174
    %v1214 = vunpack.c.l.b16 %v1175
    %v1215 = vunpack.c.l.b16 %v1176
    %v1216 = vpack.c.b16 %v1201, %v1200
    %v1217 = vpack.c.b16 %v1203, %v1202
    %v1218 = vpack.c.b16 %v1205, %v1204
    %v1219 = vpack.c.b16 %v1207, %v1206
    %v1220 = vpack.c.b16 %v1209, %v1208
    %v1221 = vpack.c.b16 %v1211, %v1210
    %v1222 = vpack.c.b16 %v1213, %v1212
    %v1223 = vpack.c.b16 %v1215, %v1214
    %1232 = vmatprep.subr.bf16.mxu0 0
    %1233 = vmatpush1.bf16.msra.mxu0 %v1216
    %1234 = vmatprep.subr.bf16.mxu0 0
    %1235 = vmatpush1.bf16.msra.mxu0 %v1217
    %1236 = vmatprep.subr.bf16.mxu0 0
    %1237 = vmatpush1.bf16.msra.mxu0 %v1218
    %1238 = vmatprep.subr.bf16.mxu0 0
    %1239 = vmatpush1.bf16.msra.mxu0 %v1219
    %1240 = vmatprep.subr.bf16.mxu0 0
    %1241 = vmatpush1.bf16.msra.mxu0 %v1220
    %1242 = vmatprep.subr.bf16.mxu0 0
    %1243 = vmatpush1.bf16.msra.mxu0 %v1221
    %1244 = vmatprep.subr.bf16.mxu0 0
    %1245 = vmatpush1.bf16.msra.mxu0 %v1222
    %1246 = vmatprep.subr.bf16.mxu0 0
    %1247 = vmatpush1.bf16.msra.mxu0 %v1223
    %1248 = vmatprep.subr.bf16.mxu0 0
    %1249 = vmatpush1.bf16.msra.mxu0 0
    %1250 = vmatprep.subr.bf16.mxu0 0
    %1251 = vmatpush1.bf16.msra.mxu0 0
    %1252 = vmatprep.subr.bf16.mxu0 0
    %1253 = vmatpush1.bf16.msra.mxu0 0
    %1254 = vmatprep.subr.bf16.mxu0 0
    %1255 = vmatpush1.bf16.msra.mxu0 0
    %1256 = vmatprep.subr.bf16.mxu0 0
    %1257 = vmatpush1.bf16.msra.mxu0 0
    %1258 = vmatprep.subr.bf16.mxu0 0
    %1259 = vmatpush1.bf16.msra.mxu0 0
    %1260 = vmatprep.subr.bf16.mxu0 0
    %1261 = vmatpush1.bf16.msra.mxu0 0
    %1262 = vmatprep.subr.bf16.mxu0 0
    %1263 = vmatpush1.bf16.msra.mxu0 0
    %1264 = vmatprep.mubr.bf16.mxu0 0
    %1265 = vmatmul.mubr.bf16.gmra.mrb[0].mxu0 %v1153
    %v1266 = vpop.f32.mrb[0].mxu0
    %v1267 = vadd.f32 %v1182, %v1266
    %v1268 = vpop.f32.mrb[0].mxu0
    %v1269 = vpop.f32.mrb[0].mxu0
    %v1270 = vadd.f32 %v1182, %v1269
    %v1271 = vpop.f32.mrb[0].mxu0
    %1272 = vmatprep.mubr.bf16.mxu0 0
    %1273 = vmatmul.mubr.bf16.gmra.mrb[0].mxu0 %v1154
    %v1274 = vpop.f32.mrb[0].mxu0
    %v1275 = vadd.f32 %v1182, %v1274
    %v1276 = vpop.f32.mrb[0].mxu0
    %v1277 = vpop.f32.mrb[0].mxu0
    %v1278 = vadd.f32 %v1182, %v1277
    %v1279 = vpop.f32.mrb[0].mxu0
    %1280 = vmatprep.mubr.bf16.mxu0 0
    %1281 = vmatmul.mubr.bf16.gmra.mrb[0].mxu0 %v1155
    %v1282 = vpop.f32.mrb[0].mxu0
    %v1283 = vadd.f32 %v1182, %v1282
    %v1284 = vpop.f32.mrb[0].mxu0
    %v1285 = vpop.f32.mrb[0].mxu0
    %v1286 = vadd.f32 %v1182, %v1285
    %v1287 = vpop.f32.mrb[0].mxu0
    %1288 = vmatprep.mubr.bf16.mxu0 0
    %1289 = vmatmul.mubr.bf16.gmra.mrb[0].mxu0 %v1156
    %v1290 = vpop.f32.mrb[0].mxu0
    %v1291 = vadd.f32 %v1182, %v1290
    %v1292 = vpop.f32.mrb[0].mxu0
    %v1293 = vpop.f32.mrb[0].mxu0
    %v1294 = vadd.f32 %v1182, %v1293
    %v1295 = vpop.f32.mrb[0].mxu0
    %1296 = vmatprep.mubr.bf16.mxu0 0
    %1297 = vmatmul.mubr.bf16.gmra.mrb[0].mxu0 %v1157
    %v1298 = vpop.f32.mrb[0].mxu0
    %v1299 = vadd.f32 %v1182, %v1298
    %v1300 = vpop.f32.mrb[0].mxu0
    %v1301 = vpop.f32.mrb[0].mxu0
    %v1302 = vadd.f32 %v1182, %v1301
    %v1303 = vpop.f32.mrb[0].mxu0
    %1304 = vmatprep.mubr.bf16.mxu0 0
    %1305 = vmatmul.mubr.bf16.gmra.mrb[0].mxu0 %v1158
    %v1306 = vpop.f32.mrb[0].mxu0
    %v1307 = vadd.f32 %v1182, %v1306
    %v1308 = vpop.f32.mrb[0].mxu0
    %v1309 = vpop.f32.mrb[0].mxu0
    %v1310 = vadd.f32 %v1182, %v1309
    %v1311 = vpop.f32.mrb[0].mxu0
    %1312 = vmatprep.mubr.bf16.mxu0 0
    %1313 = vmatmul.mubr.bf16.gmra.mrb[0].mxu0 %v1159
    %v1314 = vpop.f32.mrb[0].mxu0
    %v1315 = vadd.f32 %v1182, %v1314
    %v1316 = vpop.f32.mrb[0].mxu0
    %v1317 = vpop.f32.mrb[0].mxu0
    %v1318 = vadd.f32 %v1182, %v1317
    %v1319 = vpop.f32.mrb[0].mxu0
    %1320 = vmatprep.mubr.bf16.mxu0 0
    %1321 = vmatmul.mubr.bf16.gmra.mrb[0].mxu0 %v1160
    %v1322 = vpop.f32.mrb[0].mxu0
    %v1323 = vadd.f32 %v1182, %v1322
    %v1324 = vpop.f32.mrb[0].mxu0
    %v1325 = vpop.f32.mrb[0].mxu0
    %v1326 = vadd.f32 %v1182, %v1325
    %v1327 = vpop.f32.mrb[0].mxu0
    %1328 = vdwg.mxu0
    %v1329 = vmul.f32 %v1267, %v1267
    %v1330 = vmul.f32 %v1270, %v1270
    %v1331 = vmul.f32 %v1275, %v1275
    %v1332 = vmul.f32 %v1278, %v1278
    %v1333 = vmul.f32 %v1283, %v1283
    %v1334 = vmul.f32 %v1286, %v1286
    %v1335 = vmul.f32 %v1291, %v1291
    %v1336 = vmul.f32 %v1294, %v1294
    %v1337 = vmul.f32 %v1299, %v1299
    %v1338 = vmul.f32 %v1302, %v1302
    %v1339 = vmul.f32 %v1307, %v1307
    %v1340 = vmul.f32 %v1310, %v1310
    %v1341 = vmul.f32 %v1315, %v1315
    %v1342 = vmul.f32 %v1318, %v1318
    %v1343 = vmul.f32 %v1323, %v1323
    %v1344 = vmul.f32 %v1326, %v1326
    %v1345 = vmul.f32 %v1267, %v1329
    %v1346 = vmul.f32 %v1270, %v1330
    %v1347 = vmul.f32 %v1275, %v1331
    %v1348 = vmul.f32 %v1278, %v1332
    %v1349 = vmul.f32 %v1283, %v1333
    %v1350 = vmul.f32 %v1286, %v1334
    %v1351 = vmul.f32 %v1291, %v1335
    %v1352 = vmul.f32 %v1294, %v1336
    %v1353 = vmul.f32 %v1299, %v1337
    %v1354 = vmul.f32 %v1302, %v1338
    %v1355 = vmul.f32 %v1307, %v1339
    %v1356 = vmul.f32 %v1310, %v1340
    %v1357 = vmul.f32 %v1315, %v1341
    %v1358 = vmul.f32 %v1318, %v1342
    %v1359 = vmul.f32 %v1323, %v1343
    %v1360 = vmul.f32 %v1326, %v1344
    %v1361 = vmul.f32 %v1345, 0.044715
    %v1362 = vmul.f32 %v1346, 0.044715
    %v1363 = vmul.f32 %v1347, 0.044715
    %v1364 = vmul.f32 %v1348, 0.044715
    %v1365 = vmul.f32 %v1349, 0.044715
    %v1366 = vmul.f32 %v1350, 0.044715
    %v1367 = vmul.f32 %v1351, 0.044715
    %v1368 = vmul.f32 %v1352, 0.044715
    %v1369 = vmul.f32 %v1353, 0.044715
    %v1370 = vmul.f32 %v1354, 0.044715
    %v1371 = vmul.f32 %v1355, 0.044715
    %v1372 = vmul.f32 %v1356, 0.044715
    %v1373 = vmul.f32 %v1357, 0.044715
    %v1374 = vmul.f32 %v1358, 0.044715
    %v1375 = vmul.f32 %v1359, 0.044715
    %v1376 = vmul.f32 %v1360, 0.044715
    %v1377 = vadd.f32 %v1267, %v1361
    %v1378 = vadd.f32 %v1270, %v1362
    %v1379 = vadd.f32 %v1275, %v1363
    %v1380 = vadd.f32 %v1278, %v1364
    %v1381 = vadd.f32 %v1283, %v1365
    %v1382 = vadd.f32 %v1286, %v1366
    %v1383 = vadd.f32 %v1291, %v1367
    %v1384 = vadd.f32 %v1294, %v1368
    %v1385 = vadd.f32 %v1299, %v1369
    %v1386 = vadd.f32 %v1302, %v1370
    %v1387 = vadd.f32 %v1307, %v1371
    %v1388 = vadd.f32 %v1310, %v1372
    %v1389 = vadd.f32 %v1315, %v1373
    %v1390 = vadd.f32 %v1318, %v1374
    %v1391 = vadd.f32 %v1323, %v1375
    %v1392 = vadd.f32 %v1326, %v1376
    %v1393 = vmul.f32 %v1377, 0.7978846
    %v1394 = vmul.f32 %v1378, 0.7978846
    %v1395 = vmul.f32 %v1379, 0.7978846
    %v1396 = vmul.f32 %v1380, 0.7978846
    %v1397 = vmul.f32 %v1381, 0.7978846
    %v1398 = vmul.f32 %v1382, 0.7978846
    %v1399 = vmul.f32 %v1383, 0.7978846
    %v1400 = vmul.f32 %v1384, 0.7978846
    %v1401 = vmul.f32 %v1385, 0.7978846
    %v1402 = vmul.f32 %v1386, 0.7978846
    %v1403 = vmul.f32 %v1387, 0.7978846
    %v1404 = vmul.f32 %v1388, 0.7978846
    %v1405 = vmul.f32 %v1389, 0.7978846
    %v1406 = vmul.f32 %v1390, 0.7978846
    %v1407 = vmul.f32 %v1391, 0.7978846
    %v1408 = vmul.f32 %v1392, 0.7978846
    %v1409 = vtanh.pop %v1393
    %v1410 = vtanh.pop %v1394
    %v1411 = vtanh.pop %v1395
    %v1412 = vtanh.pop %v1396
    %v1413 = vtanh.pop %v1397
    %v1414 = vtanh.pop %v1398
    %v1415 = vtanh.pop %v1399
    %v1416 = vtanh.pop %v1400
    %v1417 = vtanh.pop %v1401
    %v1418 = vtanh.pop %v1402
    %v1419 = vtanh.pop %v1403
    %v1420 = vtanh.pop %v1404
    %v1421 = vtanh.pop %v1405
    %v1422 = vtanh.pop %v1406
    %v1423 = vtanh.pop %v1407
    %v1424 = vtanh.pop %v1408
    %v1425 = vadd.f32 %v1409, 1.0
    %v1426 = vadd.f32 %v1410, 1.0
    %v1427 = vadd.f32 %v1411, 1.0
    %v1428 = vadd.f32 %v1412, 1.0
    %v1429 = vadd.f32 %v1413, 1.0
    %v1430 = vadd.f32 %v1414, 1.0
    %v1431 = vadd.f32 %v1415, 1.0
    %v1432 = vadd.f32 %v1416, 1.0
    %v1433 = vadd.f32 %v1417, 1.0
    %v1434 = vadd.f32 %v1418, 1.0
    %v1435 = vadd.f32 %v1419, 1.0
    %v1436 = vadd.f32 %v1420, 1.0
    %v1437 = vadd.f32 %v1421, 1.0
    %v1438 = vadd.f32 %v1422, 1.0
    %v1439 = vadd.f32 %v1423, 1.0
    %v1440 = vadd.f32 %v1424, 1.0
    %v1441 = vmul.f32 %v1425, 0.5
    %v1442 = vmul.f32 %v1426, 0.5
    %v1443 = vmul.f32 %v1427, 0.5
    %v1444 = vmul.f32 %v1428, 0.5
    %v1445 = vmul.f32 %v1429, 0.5
    %v1446 = vmul.f32 %v1430, 0.5
    %v1447 = vmul.f32 %v1431, 0.5
    %v1448 = vmul.f32 %v1432, 0.5
    %v1449 = vmul.f32 %v1433, 0.5
    %v1450 = vmul.f32 %v1434, 0.5
    %v1451 = vmul.f32 %v1435, 0.5
    %v1452 = vmul.f32 %v1436, 0.5
    %v1453 = vmul.f32 %v1437, 0.5
    %v1454 = vmul.f32 %v1438, 0.5
    %v1455 = vmul.f32 %v1439, 0.5
    %v1456 = vmul.f32 %v1440, 0.5
    %v1457 = vmul.f32 %v1267, %v1441
    %v1458 = vmul.f32 %v1270, %v1442
    %v1459 = vmul.f32 %v1275, %v1443
    %v1460 = vmul.f32 %v1278, %v1444
    %v1461 = vmul.f32 %v1283, %v1445
    %v1462 = vmul.f32 %v1286, %v1446
    %v1463 = vmul.f32 %v1291, %v1447
    %v1464 = vmul.f32 %v1294, %v1448
    %v1465 = vmul.f32 %v1299, %v1449
    %v1466 = vmul.f32 %v1302, %v1450
    %v1467 = vmul.f32 %v1307, %v1451
    %v1468 = vmul.f32 %v1310, %v1452
    %v1469 = vmul.f32 %v1315, %v1453
    %v1470 = vmul.f32 %v1318, %v1454
    %v1471 = vmul.f32 %v1323, %v1455
    %v1472 = vmul.f32 %v1326, %v1456
    %v1473 = vrot.slane %v1457, 7
    %v1474 = vrot.slane %v1458, 7
    %v1475 = vrot.slane %v1459, 7
    %v1476 = vrot.slane %v1460, 7
    %v1477 = vrot.slane %v1461, 7
    %v1478 = vrot.slane %v1462, 7
    %v1479 = vrot.slane %v1463, 7
    %v1480 = vrot.slane %v1464, 7
    %v1481 = vrot.slane %v1465, 7
    %v1482 = vrot.slane %v1466, 7
    %v1483 = vrot.slane %v1467, 7
    %v1484 = vrot.slane %v1468, 7
    %v1485 = vrot.slane %v1469, 7
    %v1486 = vrot.slane %v1470, 7
    %v1487 = vrot.slane %v1471, 7
    %v1488 = vrot.slane %v1472, 7
    %v1489 = vlaneseq
    %v1490 = vshrl.u32 %v1489, 7
    %vm1491 = vcmp.lt.s32.totalorder %v1490, 1
    %v1492 = vsel %vm1491, %v1487, %v1488
    %v1493 = vsel %vm1491, %v1486, %v1487
    %v1494 = vsel %vm1491, %v1485, %v1486
    %v1495 = vsel %vm1491, %v1484, %v1485
    %v1496 = vsel %vm1491, %v1483, %v1484
    %v1497 = vsel %vm1491, %v1482, %v1483
    %v1498 = vsel %vm1491, %v1481, %v1482
    %v1499 = vsel %vm1491, %v1480, %v1481
    %v1500 = vsel %vm1491, %v1479, %v1480
    %v1501 = vsel %vm1491, %v1478, %v1479
    %v1502 = vsel %vm1491, %v1477, %v1478
    %v1503 = vsel %vm1491, %v1476, %v1477
    %v1504 = vsel %vm1491, %v1475, %v1476
    %v1505 = vsel %vm1491, %v1474, %v1475
    %v1506 = vsel %vm1491, %v1473, %v1474
    %v1507 = vsel %vm1491, %v1488, %v1473
    %v1508 = vld [vmem:[%s15] sm:$0xff]
    %v1509 = vld [vmem:[%s15 + $0x8] sm:$0xff]
    %v1510 = vld [vmem:[%s15 + $0x10] sm:$0xff]
    %v1511 = vld [vmem:[%s15 + $0x18] sm:$0xff]
    %v1512 = vld [vmem:[%s15 + $0x20] sm:$0xff]
    %v1513 = vld [vmem:[%s15 + $0x28] sm:$0xff]
    %v1514 = vld [vmem:[%s15 + $0x30] sm:$0xff]
    %v1515 = vld [vmem:[%s15 + $0x38] sm:$0xff]
    %v1516 = vld [vmem:[%s15 + $0x40] sm:$0xff]
    %v1517 = vld [vmem:[%s15 + $0x48] sm:$0xff]
    %v1518 = vld [vmem:[%s15 + $0x50] sm:$0xff]
    %v1519 = vld [vmem:[%s15 + $0x58] sm:$0xff]
    %v1520 = vld [vmem:[%s15 + $0x60] sm:$0xff]
    %v1521 = vld [vmem:[%s15 + $0x68] sm:$0xff]
    %v1522 = vld [vmem:[%s15 + $0x70] sm:$0xff]
    %v1523 = vld [vmem:[%s15 + $0x78] sm:$0xff]
    %v1524 = vmul.f32 %v1492, %v1508
    %v1525 = vmul.f32 %v1507, %v1509
    %v1526 = vmul.f32 %v1506, %v1510
    %v1527 = vmul.f32 %v1505, %v1511
    %v1528 = vmul.f32 %v1504, %v1512
    %v1529 = vmul.f32 %v1503, %v1513
    %v1530 = vmul.f32 %v1502, %v1514
    %v1531 = vmul.f32 %v1501, %v1515
    %v1532 = vmul.f32 %v1500, %v1516
    %v1533 = vmul.f32 %v1499, %v1517
    %v1534 = vmul.f32 %v1498, %v1518
    %v1535 = vmul.f32 %v1497, %v1519
    %v1536 = vmul.f32 %v1496, %v1520
    %v1537 = vmul.f32 %v1495, %v1521
    %v1538 = vmul.f32 %v1494, %v1522
    %v1539 = vmul.f32 %v1493, %v1523
    %v1540 = vadd.f32 %v1524, 0.0
    %v1541 = vadd.f32 %v1525, 0.0
    %v1542 = vadd.f32 %v1526, 0.0
    %v1543 = vadd.f32 %v1527, 0.0
    %v1544 = vadd.f32 %v1528, 0.0
    %v1545 = vadd.f32 %v1529, 0.0
    %v1546 = vadd.f32 %v1530, 0.0
    %v1547 = vadd.f32 %v1531, 0.0
    %v1548 = vadd.f32 %v1532, 0.0
    %v1549 = vadd.f32 %v1533, 0.0
    %v1550 = vadd.f32 %v1534, 0.0
    %v1551 = vadd.f32 %v1535, 0.0
    %v1552 = vadd.f32 %v1536, 0.0
    %v1553 = vadd.f32 %v1537, 0.0
    %v1554 = vadd.f32 %v1538, 0.0
    %v1555 = vadd.f32 %v1539, 0.0
    %s1556 = scalar_lea.vmem %s15, 128
    %v1557 = vld [vmem:[%s1556] sm:$0xff]
    %v1558 = vld [vmem:[%s1556 + $0x8] sm:$0xff]
    %v1559 = vld [vmem:[%s1556 + $0x10] sm:$0xff]
    %v1560 = vld [vmem:[%s1556 + $0x18] sm:$0xff]
    %v1561 = vld [vmem:[%s1556 + $0x20] sm:$0xff]
    %v1562 = vld [vmem:[%s1556 + $0x28] sm:$0xff]
    %v1563 = vld [vmem:[%s1556 + $0x30] sm:$0xff]
    %v1564 = vld [vmem:[%s1556 + $0x38] sm:$0xff]
    %v1565 = vld [vmem:[%s1556 + $0x40] sm:$0xff]
    %v1566 = vld [vmem:[%s1556 + $0x48] sm:$0xff]
    %v1567 = vld [vmem:[%s1556 + $0x50] sm:$0xff]
    %v1568 = vld [vmem:[%s1556 + $0x58] sm:$0xff]
    %v1569 = vld [vmem:[%s1556 + $0x60] sm:$0xff]
    %v1570 = vld [vmem:[%s1556 + $0x68] sm:$0xff]
    %v1571 = vld [vmem:[%s1556 + $0x70] sm:$0xff]
    %v1572 = vld [vmem:[%s1556 + $0x78] sm:$0xff]
    %v1573 = vmul.f32 %v1472, %v1557
    %v1574 = vmul.f32 %v1457, %v1558
    %v1575 = vmul.f32 %v1458, %v1559
    %v1576 = vmul.f32 %v1459, %v1560
    %v1577 = vmul.f32 %v1460, %v1561
    %v1578 = vmul.f32 %v1461, %v1562
    %v1579 = vmul.f32 %v1462, %v1563
    %v1580 = vmul.f32 %v1463, %v1564
    %v1581 = vmul.f32 %v1464, %v1565
    %v1582 = vmul.f32 %v1465, %v1566
    %v1583 = vmul.f32 %v1466, %v1567
    %v1584 = vmul.f32 %v1467, %v1568
    %v1585 = vmul.f32 %v1468, %v1569
    %v1586 = vmul.f32 %v1469, %v1570
    %v1587 = vmul.f32 %v1470, %v1571
    %v1588 = vmul.f32 %v1471, %v1572
    %v1589 = vadd.f32 %v1540, %v1573
    %v1590 = vadd.f32 %v1541, %v1574
    %v1591 = vadd.f32 %v1542, %v1575
    %v1592 = vadd.f32 %v1543, %v1576
    %v1593 = vadd.f32 %v1544, %v1577
    %v1594 = vadd.f32 %v1545, %v1578
    %v1595 = vadd.f32 %v1546, %v1579
    %v1596 = vadd.f32 %v1547, %v1580
    %v1597 = vadd.f32 %v1548, %v1581
    %v1598 = vadd.f32 %v1549, %v1582
    %v1599 = vadd.f32 %v1550, %v1583
    %v1600 = vadd.f32 %v1551, %v1584
    %v1601 = vadd.f32 %v1552, %v1585
    %v1602 = vadd.f32 %v1553, %v1586
    %v1603 = vadd.f32 %v1554, %v1587
    %v1604 = vadd.f32 %v1555, %v1588
    %v1605 = vrot.slane %v1457, 1
    %v1606 = vrot.slane %v1458, 1
    %v1607 = vrot.slane %v1459, 1
    %v1608 = vrot.slane %v1460, 1
    %v1609 = vrot.slane %v1461, 1
    %v1610 = vrot.slane %v1462, 1
    %v1611 = vrot.slane %v1463, 1
    %v1612 = vrot.slane %v1464, 1
    %v1613 = vrot.slane %v1465, 1
    %v1614 = vrot.slane %v1466, 1
    %v1615 = vrot.slane %v1467, 1
    %v1616 = vrot.slane %v1468, 1
    %v1617 = vrot.slane %v1469, 1
    %v1618 = vrot.slane %v1470, 1
    %v1619 = vrot.slane %v1471, 1
    %v1620 = vrot.slane %v1472, 1
    %vm1621 = vcmp.lt.s32.totalorder %v1490, 7
    %v1622 = vsel %vm1621, %v1619, %v1620
    %v1623 = vsel %vm1621, %v1618, %v1619
    %v1624 = vsel %vm1621, %v1617, %v1618
    %v1625 = vsel %vm1621, %v1616, %v1617
    %v1626 = vsel %vm1621, %v1615, %v1616
    %v1627 = vsel %vm1621, %v1614, %v1615
    %v1628 = vsel %vm1621, %v1613, %v1614
    %v1629 = vsel %vm1621, %v1612, %v1613
    %v1630 = vsel %vm1621, %v1611, %v1612
    %v1631 = vsel %vm1621, %v1610, %v1611
    %v1632 = vsel %vm1621, %v1609, %v1610
    %v1633 = vsel %vm1621, %v1608, %v1609
    %v1634 = vsel %vm1621, %v1607, %v1608
    %v1635 = vsel %vm1621, %v1606, %v1607
    %v1636 = vsel %vm1621, %v1605, %v1606
    %v1637 = vsel %vm1621, %v1620, %v1605
    %s1638 = scalar_lea.vmem %s15, 256
    %v1639 = vld [vmem:[%s1638] sm:$0xff]
    %v1640 = vld [vmem:[%s1638 + $0x8] sm:$0xff]
    %v1641 = vld [vmem:[%s1638 + $0x10] sm:$0xff]
    %v1642 = vld [vmem:[%s1638 + $0x18] sm:$0xff]
    %v1643 = vld [vmem:[%s1638 + $0x20] sm:$0xff]
    %v1644 = vld [vmem:[%s1638 + $0x28] sm:$0xff]
    %v1645 = vld [vmem:[%s1638 + $0x30] sm:$0xff]
    %v1646 = vld [vmem:[%s1638 + $0x38] sm:$0xff]
    %v1647 = vld [vmem:[%s1638 + $0x40] sm:$0xff]
    %v1648 = vld [vmem:[%s1638 + $0x48] sm:$0xff]
    %v1649 = vld [vmem:[%s1638 + $0x50] sm:$0xff]
    %v1650 = vld [vmem:[%s1638 + $0x58] sm:$0xff]
    %v1651 = vld [vmem:[%s1638 + $0x60] sm:$0xff]
    %v1652 = vld [vmem:[%s1638 + $0x68] sm:$0xff]
    %v1653 = vld [vmem:[%s1638 + $0x70] sm:$0xff]
    %v1654 = vld [vmem:[%s1638 + $0x78] sm:$0xff]
    %v1655 = vmul.f32 %v1637, %v1639
    %v1656 = vmul.f32 %v1636, %v1640
    %v1657 = vmul.f32 %v1635, %v1641
    %v1658 = vmul.f32 %v1634, %v1642
    %v1659 = vmul.f32 %v1633, %v1643
    %v1660 = vmul.f32 %v1632, %v1644
    %v1661 = vmul.f32 %v1631, %v1645
    %v1662 = vmul.f32 %v1630, %v1646
    %v1663 = vmul.f32 %v1629, %v1647
    %v1664 = vmul.f32 %v1628, %v1648
    %v1665 = vmul.f32 %v1627, %v1649
    %v1666 = vmul.f32 %v1626, %v1650
    %v1667 = vmul.f32 %v1625, %v1651
    %v1668 = vmul.f32 %v1624, %v1652
    %v1669 = vmul.f32 %v1623, %v1653
    %v1670 = vmul.f32 %v1622, %v1654
    %v1671 = vadd.f32 %v1589, %v1655
    %v1672 = vadd.f32 %v1590, %v1656
    %v1673 = vadd.f32 %v1591, %v1657
    %v1674 = vadd.f32 %v1592, %v1658
    %v1675 = vadd.f32 %v1593, %v1659
    %v1676 = vadd.f32 %v1594, %v1660
    %v1677 = vadd.f32 %v1595, %v1661
    %v1678 = vadd.f32 %v1596, %v1662
    %v1679 = vadd.f32 %v1597, %v1663
    %v1680 = vadd.f32 %v1598, %v1664
    %v1681 = vadd.f32 %v1599, %v1665
    %v1682 = vadd.f32 %v1600, %v1666
    %v1683 = vadd.f32 %v1601, %v1667
    %v1684 = vadd.f32 %v1602, %v1668
    %v1685 = vadd.f32 %v1603, %v1669
    %v1686 = vadd.f32 %v1604, %v1670
    %s1687 = scalar_lea.vmem %s15, 384
    %v1688 = vld [vmem:[%s1687] sm:$0xff]
    %v1689 = vld [vmem:[%s1687 + $0x8] sm:$0xff]
    %v1690 = vld [vmem:[%s1687 + $0x10] sm:$0xff]
    %v1691 = vld [vmem:[%s1687 + $0x18] sm:$0xff]
    %v1692 = vld [vmem:[%s1687 + $0x20] sm:$0xff]
    %v1693 = vld [vmem:[%s1687 + $0x28] sm:$0xff]
    %v1694 = vld [vmem:[%s1687 + $0x30] sm:$0xff]
    %v1695 = vld [vmem:[%s1687 + $0x38] sm:$0xff]
    %v1696 = vld [vmem:[%s1687 + $0x40] sm:$0xff]
    %v1697 = vld [vmem:[%s1687 + $0x48] sm:$0xff]
    %v1698 = vld [vmem:[%s1687 + $0x50] sm:$0xff]
    %v1699 = vld [vmem:[%s1687 + $0x58] sm:$0xff]
    %v1700 = vld [vmem:[%s1687 + $0x60] sm:$0xff]
    %v1701 = vld [vmem:[%s1687 + $0x68] sm:$0xff]
    %v1702 = vld [vmem:[%s1687 + $0x70] sm:$0xff]
    %v1703 = vld [vmem:[%s1687 + $0x78] sm:$0xff]
    %v1704 = vmul.f32 %v1507, %v1688
    %v1705 = vmul.f32 %v1506, %v1689
    %v1706 = vmul.f32 %v1505, %v1690
    %v1707 = vmul.f32 %v1504, %v1691
    %v1708 = vmul.f32 %v1503, %v1692
    %v1709 = vmul.f32 %v1502, %v1693
    %v1710 = vmul.f32 %v1501, %v1694
    %v1711 = vmul.f32 %v1500, %v1695
    %v1712 = vmul.f32 %v1499, %v1696
    %v1713 = vmul.f32 %v1498, %v1697
    %v1714 = vmul.f32 %v1497, %v1698
    %v1715 = vmul.f32 %v1496, %v1699
    %v1716 = vmul.f32 %v1495, %v1700
    %v1717 = vmul.f32 %v1494, %v1701
    %v1718 = vmul.f32 %v1493, %v1702
    %v1719 = vmul.f32 %v1492, %v1703
    %v1720 = vadd.f32 %v1671, %v1704
    %v1721 = vadd.f32 %v1672, %v1705
    %v1722 = vadd.f32 %v1673, %v1706
    %v1723 = vadd.f32 %v1674, %v1707
    %v1724 = vadd.f32 %v1675, %v1708
    %v1725 = vadd.f32 %v1676, %v1709
    %v1726 = vadd.f32 %v1677, %v1710
    %v1727 = vadd.f32 %v1678, %v1711
    %v1728 = vadd.f32 %v1679, %v1712
    %v1729 = vadd.f32 %v1680, %v1713
    %v1730 = vadd.f32 %v1681, %v1714
    %v1731 = vadd.f32 %v1682, %v1715
    %v1732 = vadd.f32 %v1683, %v1716
    %v1733 = vadd.f32 %v1684, %v1717
    %v1734 = vadd.f32 %v1685, %v1718
    %v1735 = vadd.f32 %v1686, %v1719
    %s1736 = scalar_lea.vmem %s15, 512
    %v1737 = vld [vmem:[%s1736] sm:$0xff]
    %v1738 = vld [vmem:[%s1736 + $0x8] sm:$0xff]
    %v1739 = vld [vmem:[%s1736 + $0x10] sm:$0xff]
    %v1740 = vld [vmem:[%s1736 + $0x18] sm:$0xff]
    %v1741 = vld [vmem:[%s1736 + $0x20] sm:$0xff]
    %v1742 = vld [vmem:[%s1736 + $0x28] sm:$0xff]
    %v1743 = vld [vmem:[%s1736 + $0x30] sm:$0xff]
    %v1744 = vld [vmem:[%s1736 + $0x38] sm:$0xff]
    %v1745 = vld [vmem:[%s1736 + $0x40] sm:$0xff]
    %v1746 = vld [vmem:[%s1736 + $0x48] sm:$0xff]
    %v1747 = vld [vmem:[%s1736 + $0x50] sm:$0xff]
    %v1748 = vld [vmem:[%s1736 + $0x58] sm:$0xff]
    %v1749 = vld [vmem:[%s1736 + $0x60] sm:$0xff]
    %v1750 = vld [vmem:[%s1736 + $0x68] sm:$0xff]
    %v1751 = vld [vmem:[%s1736 + $0x70] sm:$0xff]
    %v1752 = vld [vmem:[%s1736 + $0x78] sm:$0xff]
    %v1753 = vmul.f32 %v1457, %v1737
    %v1754 = vmul.f32 %v1458, %v1738
    %v1755 = vmul.f32 %v1459, %v1739
    %v1756 = vmul.f32 %v1460, %v1740
    %v1757 = vmul.f32 %v1461, %v1741
    %v1758 = vmul.f32 %v1462, %v1742
    %v1759 = vmul.f32 %v1463, %v1743
    %v1760 = vmul.f32 %v1464, %v1744
    %v1761 = vmul.f32 %v1465, %v1745
    %v1762 = vmul.f32 %v1466, %v1746
    %v1763 = vmul.f32 %v1467, %v1747
    %v1764 = vmul.f32 %v1468, %v1748
    %v1765 = vmul.f32 %v1469, %v1749
    %v1766 = vmul.f32 %v1470, %v1750
    %v1767 = vmul.f32 %v1471, %v1751
    %v1768 = vmul.f32 %v1472, %v1752
    %v1769 = vadd.f32 %v1720, %v1753
    %v1770 = vadd.f32 %v1721, %v1754
    %v1771 = vadd.f32 %v1722, %v1755
    %v1772 = vadd.f32 %v1723, %v1756
    %v1773 = vadd.f32 %v1724, %v1757
    %v1774 = vadd.f32 %v1725, %v1758
    %v1775 = vadd.f32 %v1726, %v1759
    %v1776 = vadd.f32 %v1727, %v1760
    %v1777 = vadd.f32 %v1728, %v1761
    %v1778 = vadd.f32 %v1729, %v1762
    %v1779 = vadd.f32 %v1730, %v1763
    %v1780 = vadd.f32 %v1731, %v1764
    %v1781 = vadd.f32 %v1732, %v1765
    %v1782 = vadd.f32 %v1733, %v1766
    %v1783 = vadd.f32 %v1734, %v1767
    %v1784 = vadd.f32 %v1735, %v1768
    %s1785 = scalar_lea.vmem %s15, 640
    %v1786 = vld [vmem:[%s1785] sm:$0xff]
    %v1787 = vld [vmem:[%s1785 + $0x8] sm:$0xff]
    %v1788 = vld [vmem:[%s1785 + $0x10] sm:$0xff]
    %v1789 = vld [vmem:[%s1785 + $0x18] sm:$0xff]
    %v1790 = vld [vmem:[%s1785 + $0x20] sm:$0xff]
    %v1791 = vld [vmem:[%s1785 + $0x28] sm:$0xff]
    %v1792 = vld [vmem:[%s1785 + $0x30] sm:$0xff]
    %v1793 = vld [vmem:[%s1785 + $0x38] sm:$0xff]
    %v1794 = vld [vmem:[%s1785 + $0x40] sm:$0xff]
    %v1795 = vld [vmem:[%s1785 + $0x48] sm:$0xff]
    %v1796 = vld [vmem:[%s1785 + $0x50] sm:$0xff]
    %v1797 = vld [vmem:[%s1785 + $0x58] sm:$0xff]
    %v1798 = vld [vmem:[%s1785 + $0x60] sm:$0xff]
    %v1799 = vld [vmem:[%s1785 + $0x68] sm:$0xff]
    %v1800 = vld [vmem:[%s1785 + $0x70] sm:$0xff]
    %v1801 = vld [vmem:[%s1785 + $0x78] sm:$0xff]
    %v1802 = vmul.f32 %v1636, %v1786
    %v1803 = vmul.f32 %v1635, %v1787
    %v1804 = vmul.f32 %v1634, %v1788
    %v1805 = vmul.f32 %v1633, %v1789
    %v1806 = vmul.f32 %v1632, %v1790
    %v1807 = vmul.f32 %v1631, %v1791
    %v1808 = vmul.f32 %v1630, %v1792
    %v1809 = vmul.f32 %v1629, %v1793
    %v1810 = vmul.f32 %v1628, %v1794
    %v1811 = vmul.f32 %v1627, %v1795
    %v1812 = vmul.f32 %v1626, %v1796
    %v1813 = vmul.f32 %v1625, %v1797
    %v1814 = vmul.f32 %v1624, %v1798
    %v1815 = vmul.f32 %v1623, %v1799
    %v1816 = vmul.f32 %v1622, %v1800
    %v1817 = vmul.f32 %v1637, %v1801
    %v1818 = vadd.f32 %v1769, %v1802
    %v1819 = vadd.f32 %v1770, %v1803
    %v1820 = vadd.f32 %v1771, %v1804
    %v1821 = vadd.f32 %v1772, %v1805
    %v1822 = vadd.f32 %v1773, %v1806
    %v1823 = vadd.f32 %v1774, %v1807
    %v1824 = vadd.f32 %v1775, %v1808
    %v1825 = vadd.f32 %v1776, %v1809
    %v1826 = vadd.f32 %v1777, %v1810
    %v1827 = vadd.f32 %v1778, %v1811
    %v1828 = vadd.f32 %v1779, %v1812
    %v1829 = vadd.f32 %v1780, %v1813
    %v1830 = vadd.f32 %v1781, %v1814
    %v1831 = vadd.f32 %v1782, %v1815
    %v1832 = vadd.f32 %v1783, %v1816
    %v1833 = vadd.f32 %v1784, %v1817
    %s1834 = scalar_lea.vmem %s15, 768
    %v1835 = vld [vmem:[%s1834] sm:$0xff]
    %v1836 = vld [vmem:[%s1834 + $0x8] sm:$0xff]
    %v1837 = vld [vmem:[%s1834 + $0x10] sm:$0xff]
    %v1838 = vld [vmem:[%s1834 + $0x18] sm:$0xff]
    %v1839 = vld [vmem:[%s1834 + $0x20] sm:$0xff]
    %v1840 = vld [vmem:[%s1834 + $0x28] sm:$0xff]
    %v1841 = vld [vmem:[%s1834 + $0x30] sm:$0xff]
    %v1842 = vld [vmem:[%s1834 + $0x38] sm:$0xff]
    %v1843 = vld [vmem:[%s1834 + $0x40] sm:$0xff]
    %v1844 = vld [vmem:[%s1834 + $0x48] sm:$0xff]
    %v1845 = vld [vmem:[%s1834 + $0x50] sm:$0xff]
    %v1846 = vld [vmem:[%s1834 + $0x58] sm:$0xff]
    %v1847 = vld [vmem:[%s1834 + $0x60] sm:$0xff]
    %v1848 = vld [vmem:[%s1834 + $0x68] sm:$0xff]
    %v1849 = vld [vmem:[%s1834 + $0x70] sm:$0xff]
    %v1850 = vld [vmem:[%s1834 + $0x78] sm:$0xff]
    %v1851 = vmul.f32 %v1506, %v1835
    %v1852 = vmul.f32 %v1505, %v1836
    %v1853 = vmul.f32 %v1504, %v1837
    %v1854 = vmul.f32 %v1503, %v1838
    %v1855 = vmul.f32 %v1502, %v1839
    %v1856 = vmul.f32 %v1501, %v1840
    %v1857 = vmul.f32 %v1500, %v1841
    %v1858 = vmul.f32 %v1499, %v1842
    %v1859 = vmul.f32 %v1498, %v1843
    %v1860 = vmul.f32 %v1497, %v1844
    %v1861 = vmul.f32 %v1496, %v1845
    %v1862 = vmul.f32 %v1495, %v1846
    %v1863 = vmul.f32 %v1494, %v1847
    %v1864 = vmul.f32 %v1493, %v1848
    %v1865 = vmul.f32 %v1492, %v1849
    %v1866 = vmul.f32 %v1507, %v1850
    %v1867 = vadd.f32 %v1818, %v1851
    %v1868 = vadd.f32 %v1819, %v1852
    %v1869 = vadd.f32 %v1820, %v1853
    %v1870 = vadd.f32 %v1821, %v1854
    %v1871 = vadd.f32 %v1822, %v1855
    %v1872 = vadd.f32 %v1823, %v1856
    %v1873 = vadd.f32 %v1824, %v1857
    %v1874 = vadd.f32 %v1825, %v1858
    %v1875 = vadd.f32 %v1826, %v1859
    %v1876 = vadd.f32 %v1827, %v1860
    %v1877 = vadd.f32 %v1828, %v1861
    %v1878 = vadd.f32 %v1829, %v1862
    %v1879 = vadd.f32 %v1830, %v1863
    %v1880 = vadd.f32 %v1831, %v1864
    %v1881 = vadd.f32 %v1832, %v1865
    %v1882 = vadd.f32 %v1833, %v1866
    %s1883 = scalar_lea.vmem %s15, 896
    %v1884 = vld [vmem:[%s1883] sm:$0xff]
    %v1885 = vld [vmem:[%s1883 + $0x8] sm:$0xff]
    %v1886 = vld [vmem:[%s1883 + $0x10] sm:$0xff]
    %v1887 = vld [vmem:[%s1883 + $0x18] sm:$0xff]
    %v1888 = vld [vmem:[%s1883 + $0x20] sm:$0xff]
    %v1889 = vld [vmem:[%s1883 + $0x28] sm:$0xff]
    %v1890 = vld [vmem:[%s1883 + $0x30] sm:$0xff]
    %v1891 = vld [vmem:[%s1883 + $0x38] sm:$0xff]
    %v1892 = vld [vmem:[%s1883 + $0x40] sm:$0xff]
    %v1893 = vld [vmem:[%s1883 + $0x48] sm:$0xff]
    %v1894 = vld [vmem:[%s1883 + $0x50] sm:$0xff]
    %v1895 = vld [vmem:[%s1883 + $0x58] sm:$0xff]
    %v1896 = vld [vmem:[%s1883 + $0x60] sm:$0xff]
    %v1897 = vld [vmem:[%s1883 + $0x68] sm:$0xff]
    %v1898 = vld [vmem:[%s1883 + $0x70] sm:$0xff]
    %v1899 = vld [vmem:[%s1883 + $0x78] sm:$0xff]
    %v1900 = vmul.f32 %v1458, %v1884
    %v1901 = vmul.f32 %v1459, %v1885
    %v1902 = vmul.f32 %v1460, %v1886
    %v1903 = vmul.f32 %v1461, %v1887
    %v1904 = vmul.f32 %v1462, %v1888
    %v1905 = vmul.f32 %v1463, %v1889
    %v1906 = vmul.f32 %v1464, %v1890
    %v1907 = vmul.f32 %v1465, %v1891
    %v1908 = vmul.f32 %v1466, %v1892
    %v1909 = vmul.f32 %v1467, %v1893
    %v1910 = vmul.f32 %v1468, %v1894
    %v1911 = vmul.f32 %v1469, %v1895
    %v1912 = vmul.f32 %v1470, %v1896
    %v1913 = vmul.f32 %v1471, %v1897
    %v1914 = vmul.f32 %v1472, %v1898
    %v1915 = vmul.f32 %v1457, %v1899
    %v1916 = vadd.f32 %v1867, %v1900
    %v1917 = vadd.f32 %v1868, %v1901
    %v1918 = vadd.f32 %v1869, %v1902
    %v1919 = vadd.f32 %v1870, %v1903
    %v1920 = vadd.f32 %v1871, %v1904
    %v1921 = vadd.f32 %v1872, %v1905
    %v1922 = vadd.f32 %v1873, %v1906
    %v1923 = vadd.f32 %v1874, %v1907
    %v1924 = vadd.f32 %v1875, %v1908
    %v1925 = vadd.f32 %v1876, %v1909
    %v1926 = vadd.f32 %v1877, %v1910
    %v1927 = vadd.f32 %v1878, %v1911
    %v1928 = vadd.f32 %v1879, %v1912
    %v1929 = vadd.f32 %v1880, %v1913
    %v1930 = vadd.f32 %v1881, %v1914
    %v1931 = vadd.f32 %v1882, %v1915
    %s1932 = scalar_lea.vmem %s15, 1024
    %v1933 = vld [vmem:[%s1932] sm:$0xff]
    %v1934 = vld [vmem:[%s1932 + $0x8] sm:$0xff]
    %v1935 = vld [vmem:[%s1932 + $0x10] sm:$0xff]
    %v1936 = vld [vmem:[%s1932 + $0x18] sm:$0xff]
    %v1937 = vld [vmem:[%s1932 + $0x20] sm:$0xff]
    %v1938 = vld [vmem:[%s1932 + $0x28] sm:$0xff]
    %v1939 = vld [vmem:[%s1932 + $0x30] sm:$0xff]
    %v1940 = vld [vmem:[%s1932 + $0x38] sm:$0xff]
    %v1941 = vld [vmem:[%s1932 + $0x40] sm:$0xff]
    %v1942 = vld [vmem:[%s1932 + $0x48] sm:$0xff]
    %v1943 = vld [vmem:[%s1932 + $0x50] sm:$0xff]
    %v1944 = vld [vmem:[%s1932 + $0x58] sm:$0xff]
    %v1945 = vld [vmem:[%s1932 + $0x60] sm:$0xff]
    %v1946 = vld [vmem:[%s1932 + $0x68] sm:$0xff]
    %v1947 = vld [vmem:[%s1932 + $0x70] sm:$0xff]
    %v1948 = vld [vmem:[%s1932 + $0x78] sm:$0xff]
    %v1949 = vmul.f32 %v1635, %v1933
    %v1950 = vmul.f32 %v1634, %v1934
    %v1951 = vmul.f32 %v1633, %v1935
    %v1952 = vmul.f32 %v1632, %v1936
    %v1953 = vmul.f32 %v1631, %v1937
    %v1954 = vmul.f32 %v1630, %v1938
    %v1955 = vmul.f32 %v1629, %v1939
    %v1956 = vmul.f32 %v1628, %v1940
    %v1957 = vmul.f32 %v1627, %v1941
    %v1958 = vmul.f32 %v1626, %v1942
    %v1959 = vmul.f32 %v1625, %v1943
    %v1960 = vmul.f32 %v1624, %v1944
    %v1961 = vmul.f32 %v1623, %v1945
    %v1962 = vmul.f32 %v1622, %v1946
    %v1963 = vmul.f32 %v1637, %v1947
    %v1964 = vmul.f32 %v1636, %v1948
    %v1965 = vadd.f32 %v1916, %v1949
    %v1966 = vadd.f32 %v1917, %v1950
    %v1967 = vadd.f32 %v1918, %v1951
    %v1968 = vadd.f32 %v1919, %v1952
    %v1969 = vadd.f32 %v1920, %v1953
    %v1970 = vadd.f32 %v1921, %v1954
    %v1971 = vadd.f32 %v1922, %v1955
    %v1972 = vadd.f32 %v1923, %v1956
    %v1973 = vadd.f32 %v1924, %v1957
    %v1974 = vadd.f32 %v1925, %v1958
    %v1975 = vadd.f32 %v1926, %v1959
    %v1976 = vadd.f32 %v1927, %v1960
    %v1977 = vadd.f32 %v1928, %v1961
    %v1978 = vadd.f32 %v1929, %v1962
    %v1979 = vadd.f32 %v1930, %v1963
    %v1980 = vadd.f32 %v1931, %v1964
    %v1981 = vld [vmem:[#allocation11] sm:$0x1]
    %v1983 = vlaneseq
    %v1984 = vshrl.u32 %v1983, 7
    %v1985 = vsub.s32 0, %v1984
    %v1986 = vrot.slane %v1981, %v1985
    %v1988 = vadd.f32 %v1965, %v1986
    %v1989 = vadd.f32 %v1966, %v1986
    %v1990 = vadd.f32 %v1967, %v1986
    %v1991 = vadd.f32 %v1968, %v1986
    %v1992 = vadd.f32 %v1969, %v1986
    %v1993 = vadd.f32 %v1970, %v1986
    %v1994 = vadd.f32 %v1971, %v1986
    %v1995 = vadd.f32 %v1972, %v1986
    %v1996 = vadd.f32 %v1973, %v1986
    %v1997 = vadd.f32 %v1974, %v1986
    %v1998 = vadd.f32 %v1975, %v1986
    %v1999 = vadd.f32 %v1976, %v1986
    %v2000 = vadd.f32 %v1977, %v1986
    %v2001 = vadd.f32 %v1978, %v1986
    %v2002 = vadd.f32 %v1979, %v1986
    %v2003 = vadd.f32 %v1980, %v1986
    %v2004 = vmul.f32 %v1988, %v1988
    %v2005 = vmul.f32 %v1989, %v1989
    %v2006 = vmul.f32 %v1990, %v1990
    %v2007 = vmul.f32 %v1991, %v1991
    %v2008 = vmul.f32 %v1992, %v1992
    %v2009 = vmul.f32 %v1993, %v1993
    %v2010 = vmul.f32 %v1994, %v1994
    %v2011 = vmul.f32 %v1995, %v1995
    %v2012 = vmul.f32 %v1996, %v1996
    %v2013 = vmul.f32 %v1997, %v1997
    %v2014 = vmul.f32 %v1998, %v1998
    %v2015 = vmul.f32 %v1999, %v1999
    %v2016 = vmul.f32 %v2000, %v2000
    %v2017 = vmul.f32 %v2001, %v2001
    %v2018 = vmul.f32 %v2002, %v2002
    %v2019 = vmul.f32 %v2003, %v2003
    %v2020 = vmul.f32 %v1988, %v2004
    %v2021 = vmul.f32 %v1989, %v2005
    %v2022 = vmul.f32 %v1990, %v2006
    %v2023 = vmul.f32 %v1991, %v2007
    %v2024 = vmul.f32 %v1992, %v2008
    %v2025 = vmul.f32 %v1993, %v2009
    %v2026 = vmul.f32 %v1994, %v2010
    %v2027 = vmul.f32 %v1995, %v2011
    %v2028 = vmul.f32 %v1996, %v2012
    %v2029 = vmul.f32 %v1997, %v2013
    %v2030 = vmul.f32 %v1998, %v2014
    %v2031 = vmul.f32 %v1999, %v2015
    %v2032 = vmul.f32 %v2000, %v2016
    %v2033 = vmul.f32 %v2001, %v2017
    %v2034 = vmul.f32 %v2002, %v2018
    %v2035 = vmul.f32 %v2003, %v2019
    %v2036 = vmul.f32 %v2020, 0.044715
    %v2037 = vmul.f32 %v2021, 0.044715
    %v2038 = vmul.f32 %v2022, 0.044715
    %v2039 = vmul.f32 %v2023, 0.044715
    %v2040 = vmul.f32 %v2024, 0.044715
    %v2041 = vmul.f32 %v2025, 0.044715
    %v2042 = vmul.f32 %v2026, 0.044715
    %v2043 = vmul.f32 %v2027, 0.044715
    %v2044 = vmul.f32 %v2028, 0.044715
    %v2045 = vmul.f32 %v2029, 0.044715
    %v2046 = vmul.f32 %v2030, 0.044715
    %v2047 = vmul.f32 %v2031, 0.044715
    %v2048 = vmul.f32 %v2032, 0.044715
    %v2049 = vmul.f32 %v2033, 0.044715
    %v2050 = vmul.f32 %v2034, 0.044715
    %v2051 = vmul.f32 %v2035, 0.044715
    %v2052 = vadd.f32 %v1988, %v2036
    %v2053 = vadd.f32 %v1989, %v2037
    %v2054 = vadd.f32 %v1990, %v2038
    %v2055 = vadd.f32 %v1991, %v2039
    %v2056 = vadd.f32 %v1992, %v2040
    %v2057 = vadd.f32 %v1993, %v2041
    %v2058 = vadd.f32 %v1994, %v2042
    %v2059 = vadd.f32 %v1995, %v2043
    %v2060 = vadd.f32 %v1996, %v2044
    %v2061 = vadd.f32 %v1997, %v2045
    %v2062 = vadd.f32 %v1998, %v2046
    %v2063 = vadd.f32 %v1999, %v2047
    %v2064 = vadd.f32 %v2000, %v2048
    %v2065 = vadd.f32 %v2001, %v2049
    %v2066 = vadd.f32 %v2002, %v2050
    %v2067 = vadd.f32 %v2003, %v2051
    %v2068 = vmul.f32 %v2052, 0.7978846
    %v2069 = vmul.f32 %v2053, 0.7978846
    %v2070 = vmul.f32 %v2054, 0.7978846
    %v2071 = vmul.f32 %v2055, 0.7978846
    %v2072 = vmul.f32 %v2056, 0.7978846
    %v2073 = vmul.f32 %v2057, 0.7978846
    %v2074 = vmul.f32 %v2058, 0.7978846
    %v2075 = vmul.f32 %v2059, 0.7978846
    %v2076 = vmul.f32 %v2060, 0.7978846
    %v2077 = vmul.f32 %v2061, 0.7978846
    %v2078 = vmul.f32 %v2062, 0.7978846
    %v2079 = vmul.f32 %v2063, 0.7978846
    %v2080 = vmul.f32 %v2064, 0.7978846
    %v2081 = vmul.f32 %v2065, 0.7978846
    %v2082 = vmul.f32 %v2066, 0.7978846
    %v2083 = vmul.f32 %v2067, 0.7978846
    %v2084 = vtanh.pop %v2068
    %v2085 = vtanh.pop %v2069
    %v2086 = vtanh.pop %v2070
    %v2087 = vtanh.pop %v2071
    %v2088 = vtanh.pop %v2072
    %v2089 = vtanh.pop %v2073
    %v2090 = vtanh.pop %v2074
    %v2091 = vtanh.pop %v2075
    %v2092 = vtanh.pop %v2076
    %v2093 = vtanh.pop %v2077
    %v2094 = vtanh.pop %v2078
    %v2095 = vtanh.pop %v2079
    %v2096 = vtanh.pop %v2080
    %v2097 = vtanh.pop %v2081
    %v2098 = vtanh.pop %v2082
    %v2099 = vtanh.pop %v2083
    %v2100 = vadd.f32 %v2084, 1.0
    %v2101 = vadd.f32 %v2085, 1.0
    %v2102 = vadd.f32 %v2086, 1.0
    %v2103 = vadd.f32 %v2087, 1.0
    %v2104 = vadd.f32 %v2088, 1.0
    %v2105 = vadd.f32 %v2089, 1.0
    %v2106 = vadd.f32 %v2090, 1.0
    %v2107 = vadd.f32 %v2091, 1.0
    %v2108 = vadd.f32 %v2092, 1.0
    %v2109 = vadd.f32 %v2093, 1.0
    %v2110 = vadd.f32 %v2094, 1.0
    %v2111 = vadd.f32 %v2095, 1.0
    %v2112 = vadd.f32 %v2096, 1.0
    %v2113 = vadd.f32 %v2097, 1.0
    %v2114 = vadd.f32 %v2098, 1.0
    %v2115 = vadd.f32 %v2099, 1.0
    %v2116 = vmul.f32 %v2100, 0.5
    %v2117 = vmul.f32 %v2101, 0.5
    %v2118 = vmul.f32 %v2102, 0.5
    %v2119 = vmul.f32 %v2103, 0.5
    %v2120 = vmul.f32 %v2104, 0.5
    %v2121 = vmul.f32 %v2105, 0.5
    %v2122 = vmul.f32 %v2106, 0.5
    %v2123 = vmul.f32 %v2107, 0.5
    %v2124 = vmul.f32 %v2108, 0.5
    %v2125 = vmul.f32 %v2109, 0.5
    %v2126 = vmul.f32 %v2110, 0.5
    %v2127 = vmul.f32 %v2111, 0.5
    %v2128 = vmul.f32 %v2112, 0.5
    %v2129 = vmul.f32 %v2113, 0.5
    %v2130 = vmul.f32 %v2114, 0.5
    %v2131 = vmul.f32 %v2115, 0.5
    %v2132 = vmul.f32 %v1988, %v2116
    %v2133 = vmul.f32 %v1989, %v2117
    %v2134 = vmul.f32 %v1990, %v2118
    %v2135 = vmul.f32 %v1991, %v2119
    %v2136 = vmul.f32 %v1992, %v2120
    %v2137 = vmul.f32 %v1993, %v2121
    %v2138 = vmul.f32 %v1994, %v2122
    %v2139 = vmul.f32 %v1995, %v2123
    %v2140 = vmul.f32 %v1996, %v2124
    %v2141 = vmul.f32 %v1997, %v2125
    %v2142 = vmul.f32 %v1998, %v2126
    %v2143 = vmul.f32 %v1999, %v2127
    %v2144 = vmul.f32 %v2000, %v2128
    %v2145 = vmul.f32 %v2001, %v2129
    %v2146 = vmul.f32 %v2002, %v2130
    %v2147 = vmul.f32 %v2003, %v2131
    %v2148 = vpack.c.bf16 %v2133, %v2132
    %v2149 = vpack.c.bf16 %v2135, %v2134
    %v2150 = vpack.c.bf16 %v2137, %v2136
    %v2151 = vpack.c.bf16 %v2139, %v2138
    %v2152 = vpack.c.bf16 %v2141, %v2140
    %v2153 = vpack.c.bf16 %v2143, %v2142
    %v2154 = vpack.c.bf16 %v2145, %v2144
    %v2155 = vpack.c.bf16 %v2147, %v2146
    %v2156 = vld [vmem:[#allocation13] sm:$0xf]
    %v2157 = vld [vmem:[#allocation13 + $0x4] sm:$0xf]
    %v2158 = vld [vmem:[#allocation13 + $0x8] sm:$0xf]
    %v2159 = vld [vmem:[#allocation13 + $0xc] sm:$0xf]
    %v2160 = vld [vmem:[#allocation13 + $0x10] sm:$0xf]
    %v2161 = vld [vmem:[#allocation13 + $0x14] sm:$0xf]
    %v2162 = vld [vmem:[#allocation13 + $0x18] sm:$0xf]
    %v2163 = vld [vmem:[#allocation13 + $0x1c] sm:$0xf]
    %v2164 = vld [vmem:[#allocation13 + $0x20] sm:$0xf]
    %v2165 = vld [vmem:[#allocation13 + $0x24] sm:$0xf]
    %v2166 = vld [vmem:[#allocation13 + $0x28] sm:$0xf]
    %v2167 = vld [vmem:[#allocation13 + $0x2c] sm:$0xf]
    %v2168 = vld [vmem:[#allocation13 + $0x30] sm:$0xf]
    %v2169 = vld [vmem:[#allocation13 + $0x34] sm:$0xf]
    %v2170 = vld [vmem:[#allocation13 + $0x38] sm:$0xf]
    %v2171 = vld [vmem:[#allocation13 + $0x3c] sm:$0xf]
    %v2188 = vunpack.c.l.b16 %v2156
    %v2189 = vunpack.c.l.b16 %v2157
    %v2190 = vunpack.c.l.b16 %v2158
    %v2191 = vunpack.c.l.b16 %v2159
    %v2192 = vunpack.c.l.b16 %v2160
    %v2193 = vunpack.c.l.b16 %v2161
    %v2194 = vunpack.c.l.b16 %v2162
    %v2195 = vunpack.c.l.b16 %v2163
    %v2196 = vunpack.c.l.b16 %v2164
    %v2197 = vunpack.c.l.b16 %v2165
    %v2198 = vunpack.c.l.b16 %v2166
    %v2199 = vunpack.c.l.b16 %v2167
    %v2200 = vunpack.c.l.b16 %v2168
    %v2201 = vunpack.c.l.b16 %v2169
    %v2202 = vunpack.c.l.b16 %v2170
    %v2203 = vunpack.c.l.b16 %v2171
    %v2204 = vpack.c.b16 %v2189, %v2188
    %v2205 = vpack.c.b16 %v2191, %v2190
    %v2206 = vpack.c.b16 %v2193, %v2192
    %v2207 = vpack.c.b16 %v2195, %v2194
    %v2208 = vpack.c.b16 %v2197, %v2196
    %v2209 = vpack.c.b16 %v2199, %v2198
    %v2210 = vpack.c.b16 %v2201, %v2200
    %v2211 = vpack.c.b16 %v2203, %v2202
    %2220 = vmatprep.subr.bf16.mxu0 0
    %2221 = vmatpush1.bf16.msra.mxu0 %v2204
    %2222 = vmatprep.subr.bf16.mxu0 0
    %2223 = vmatpush1.bf16.msra.mxu0 %v2205
    %2224 = vmatprep.subr.bf16.mxu0 0
    %2225 = vmatpush1.bf16.msra.mxu0 %v2206
    %2226 = vmatprep.subr.bf16.mxu0 0
    %2227 = vmatpush1.bf16.msra.mxu0 %v2207
    %2228 = vmatprep.subr.bf16.mxu0 0
    %2229 = vmatpush1.bf16.msra.mxu0 %v2208
    %2230 = vmatprep.subr.bf16.mxu0 0
    %2231 = vmatpush1.bf16.msra.mxu0 %v2209
    %2232 = vmatprep.subr.bf16.mxu0 0
    %2233 = vmatpush1.bf16.msra.mxu0 %v2210
    %2234 = vmatprep.subr.bf16.mxu0 0
    %2235 = vmatpush1.bf16.msra.mxu0 %v2211
    %2236 = vmatprep.subr.bf16.mxu0 0
    %2237 = vmatpush1.bf16.msra.mxu0 0
    %2238 = vmatprep.subr.bf16.mxu0 0
    %2239 = vmatpush1.bf16.msra.mxu0 0
    %2240 = vmatprep.subr.bf16.mxu0 0
    %2241 = vmatpush1.bf16.msra.mxu0 0
    %2242 = vmatprep.subr.bf16.mxu0 0
    %2243 = vmatpush1.bf16.msra.mxu0 0
    %2244 = vmatprep.subr.bf16.mxu0 0
    %2245 = vmatpush1.bf16.msra.mxu0 0
    %2246 = vmatprep.subr.bf16.mxu0 0
    %2247 = vmatpush1.bf16.msra.mxu0 0
    %2248 = vmatprep.subr.bf16.mxu0 0
    %2249 = vmatpush1.bf16.msra.mxu0 0
    %2250 = vmatprep.subr.bf16.mxu0 0
    %2251 = vmatpush1.bf16.msra.mxu0 0
    %2252 = vmatprep.mubr.bf16.mxu0 0
    %2253 = vmatmul.mubr.bf16.gmra.mrb[0].mxu0 %v2148
    %v2254 = vpop.f32.mrb[0].mxu0
    %v2255 = vadd.f32 0.0, %v2254
    %v2256 = vpop.f32.mrb[0].mxu0
    %v2257 = vpop.f32.mrb[0].mxu0
    %v2258 = vadd.f32 0.0, %v2257
    %v2259 = vpop.f32.mrb[0].mxu0
    %2260 = vmatprep.mubr.bf16.mxu0 0
    %2261 = vmatmul.mubr.bf16.gmra.mrb[0].mxu0 %v2149
    %v2262 = vpop.f32.mrb[0].mxu0
    %v2263 = vadd.f32 0.0, %v2262
    %v2264 = vpop.f32.mrb[0].mxu0
    %v2265 = vpop.f32.mrb[0].mxu0
    %v2266 = vadd.f32 0.0, %v2265
    %v2267 = vpop.f32.mrb[0].mxu0
    %2268 = vmatprep.mubr.bf16.mxu0 0
    %2269 = vmatmul.mubr.bf16.gmra.mrb[0].mxu0 %v2150
    %v2270 = vpop.f32.mrb[0].mxu0
    %v2271 = vadd.f32 0.0, %v2270
    %v2272 = vpop.f32.mrb[0].mxu0
    %v2273 = vpop.f32.mrb[0].mxu0
    %v2274 = vadd.f32 0.0, %v2273
    %v2275 = vpop.f32.mrb[0].mxu0
    %2276 = vmatprep.mubr.bf16.mxu0 0
    %2277 = vmatmul.mubr.bf16.gmra.mrb[0].mxu0 %v2151
    %v2278 = vpop.f32.mrb[0].mxu0
    %v2279 = vadd.f32 0.0, %v2278
    %v2280 = vpop.f32.mrb[0].mxu0
    %v2281 = vpop.f32.mrb[0].mxu0
    %v2282 = vadd.f32 0.0, %v2281
    %v2283 = vpop.f32.mrb[0].mxu0
    %2284 = vmatprep.mubr.bf16.mxu0 0
    %2285 = vmatmul.mubr.bf16.gmra.mrb[0].mxu0 %v2152
    %v2286 = vpop.f32.mrb[0].mxu0
    %v2287 = vadd.f32 0.0, %v2286
    %v2288 = vpop.f32.mrb[0].mxu0
    %v2289 = vpop.f32.mrb[0].mxu0
    %v2290 = vadd.f32 0.0, %v2289
    %v2291 = vpop.f32.mrb[0].mxu0
    %2292 = vmatprep.mubr.bf16.mxu0 0
    %2293 = vmatmul.mubr.bf16.gmra.mrb[0].mxu0 %v2153
    %v2294 = vpop.f32.mrb[0].mxu0
    %v2295 = vadd.f32 0.0, %v2294
    %v2296 = vpop.f32.mrb[0].mxu0
    %v2297 = vpop.f32.mrb[0].mxu0
    %v2298 = vadd.f32 0.0, %v2297
    %v2299 = vpop.f32.mrb[0].mxu0
    %2300 = vmatprep.mubr.bf16.mxu0 0
    %2301 = vmatmul.mubr.bf16.gmra.mrb[0].mxu0 %v2154
    %v2302 = vpop.f32.mrb[0].mxu0
    %v2303 = vadd.f32 0.0, %v2302
    %v2304 = vpop.f32.mrb[0].mxu0
    %v2305 = vpop.f32.mrb[0].mxu0
    %v2306 = vadd.f32 0.0, %v2305
    %v2307 = vpop.f32.mrb[0].mxu0
    %2308 = vmatprep.mubr.bf16.mxu0 0
    %2309 = vmatmul.mubr.bf16.gmra.mrb[0].mxu0 %v2155
    %v2310 = vpop.f32.mrb[0].mxu0
    %v2311 = vadd.f32 0.0, %v2310
    %v2312 = vpop.f32.mrb[0].mxu0
    %v2313 = vpop.f32.mrb[0].mxu0
    %v2314 = vadd.f32 0.0, %v2313
    %v2315 = vpop.f32.mrb[0].mxu0
    %2316 = vdwg.mxu0
    %v2317 = vadd.f32 %v883, %v2255
    %v2318 = vadd.f32 %v884, %v2258
    %v2319 = vadd.f32 %v885, %v2263
    %v2320 = vadd.f32 %v886, %v2266
    %v2321 = vadd.f32 %v887, %v2271
    %v2322 = vadd.f32 %v888, %v2274
    %v2323 = vadd.f32 %v889, %v2279
    %v2324 = vadd.f32 %v890, %v2282
    %v2325 = vadd.f32 %v891, %v2287
    %v2326 = vadd.f32 %v892, %v2290
    %v2327 = vadd.f32 %v893, %v2295
    %v2328 = vadd.f32 %v894, %v2298
    %v2329 = vadd.f32 %v895, %v2303
    %v2330 = vadd.f32 %v896, %v2306
    %v2331 = vadd.f32 %v897, %v2311
    %v2332 = vadd.f32 %v898, %v2314
    %v2333 = vld [vmem:[#allocation14] sm:$0x1]
    %v2335 = vlaneseq
    %v2336 = vshrl.u32 %v2335, 7
    %v2337 = vsub.s32 0, %v2336
    %v2338 = vrot.slane %v2333, %v2337
    %v2340 = vadd.f32 %v2317, %v2338
    %v2341 = vadd.f32 %v2318, %v2338
    %v2342 = vadd.f32 %v2319, %v2338
    %v2343 = vadd.f32 %v2320, %v2338
    %v2344 = vadd.f32 %v2321, %v2338
    %v2345 = vadd.f32 %v2322, %v2338
    %v2346 = vadd.f32 %v2323, %v2338
    %v2347 = vadd.f32 %v2324, %v2338
    %v2348 = vadd.f32 %v2325, %v2338
    %v2349 = vadd.f32 %v2326, %v2338
    %v2350 = vadd.f32 %v2327, %v2338
    %v2351 = vadd.f32 %v2328, %v2338
    %v2352 = vadd.f32 %v2329, %v2338
    %v2353 = vadd.f32 %v2330, %v2338
    %v2354 = vadd.f32 %v2331, %v2338
    %v2355 = vadd.f32 %v2332, %v2338
    %v2356 = vld [vmem:[#allocation16] sm:$0xf]
    %v2357 = vld [vmem:[#allocation16 + $0x4] sm:$0xf]
    %v2358 = vld [vmem:[#allocation16 + $0x8] sm:$0xf]
    %v2359 = vld [vmem:[#allocation16 + $0xc] sm:$0xf]
    %v2360 = vpack.c.bf16 %v2341, %v2340
    %v2361 = vpack.c.bf16 %v2343, %v2342
    %v2362 = vpack.c.bf16 %v2345, %v2344
    %v2363 = vpack.c.bf16 %v2347, %v2346
    %v2364 = vpack.c.bf16 %v2349, %v2348
    %v2365 = vpack.c.bf16 %v2351, %v2350
    %v2366 = vpack.c.bf16 %v2353, %v2352
    %v2367 = vpack.c.bf16 %v2355, %v2354
    %v2372 = vunpack.c.l.b16 %v2356
    %v2373 = vunpack.c.l.b16 %v2357
    %v2374 = vunpack.c.l.b16 %v2358
    %v2375 = vunpack.c.l.b16 %v2359
    %v2376 = vpack.c.b16 %v2373, %v2372
    %v2377 = vpack.c.b16 %v2375, %v2374
    %2380 = vmatprep.subr.bf16.mxu0 0
    %2381 = vmatpush1.bf16.msra.mxu0 %v2360
    %2382 = vmatprep.subr.bf16.mxu0 0
    %2383 = vmatpush1.bf16.msra.mxu0 %v2361
    %2384 = vmatprep.subr.bf16.mxu0 0
    %2385 = vmatpush1.bf16.msra.mxu0 %v2362
    %2386 = vmatprep.subr.bf16.mxu0 0
    %2387 = vmatpush1.bf16.msra.mxu0 %v2363
    %2388 = vmatprep.subr.bf16.mxu0 0
    %2389 = vmatpush1.bf16.msra.mxu0 %v2364
    %2390 = vmatprep.subr.bf16.mxu0 0
    %2391 = vmatpush1.bf16.msra.mxu0 %v2365
    %2392 = vmatprep.subr.bf16.mxu0 0
    %2393 = vmatpush1.bf16.msra.mxu0 %v2366
    %2394 = vmatprep.subr.bf16.mxu0 0
    %2395 = vmatpush1.bf16.msra.mxu0 %v2367
    %2396 = vmatprep.subr.bf16.mxu0 0
    %2397 = vmatpush1.bf16.msra.mxu0 0
    %2398 = vmatprep.subr.bf16.mxu0 0
    %2399 = vmatpush1.bf16.msra.mxu0 0
    %2400 = vmatprep.subr.bf16.mxu0 0
    %2401 = vmatpush1.bf16.msra.mxu0 0
    %2402 = vmatprep.subr.bf16.mxu0 0
    %2403 = vmatpush1.bf16.msra.mxu0 0
    %2404 = vmatprep.subr.bf16.mxu0 0
    %2405 = vmatpush1.bf16.msra.mxu0 0
    %2406 = vmatprep.subr.bf16.mxu0 0
    %2407 = vmatpush1.bf16.msra.mxu0 0
    %2408 = vmatprep.subr.bf16.mxu0 0
    %2409 = vmatpush1.bf16.msra.mxu0 0
    %2410 = vmatprep.subr.bf16.mxu0 0
    %2411 = vmatpush1.bf16.msra.mxu0 0
    %2412 = vmatprep.mubr.bf16.mxu0 0
    %2413 = vmatmul.mubr.bf16.gmra.mrb[0].mxu0 %v2376
    %v2414 = vpop.f32.mrb[0].mxu0
    %v2415 = vadd.f32 0.0, %v2414
    %v2416 = vpop.f32.mrb[0].mxu0
    %v2417 = vpop.f32.mrb[0].mxu0
    %v2418 = vadd.f32 0.0, %v2417
    %v2419 = vpop.f32.mrb[0].mxu0
    %2420 = vmatprep.mubr.bf16.mxu0 0
    %2421 = vmatmul.mubr.bf16.gmra.mrb[0].mxu0 %v2377
    %v2422 = vpop.f32.mrb[0].mxu0
    %v2423 = vadd.f32 0.0, %v2422
    %v2424 = vpop.f32.mrb[0].mxu0
    %v2425 = vpop.f32.mrb[0].mxu0
    %v2426 = vadd.f32 0.0, %v2425
    %v2427 = vpop.f32.mrb[0].mxu0
    %2428 = vdwg.mxu0
    %v2429 = vpack.c.bf16 %v2418, %v2415
    %v2430 = vpack.c.bf16 %v2426, %v2423
    %v2431 = vld [vmem:[#allocation17] sm:$0xf]
    %v2432 = vld [vmem:[#allocation17 + $0x4] sm:$0xf]
    %v2433 = vld [vmem:[#allocation17 + $0x8] sm:$0xf]
    %v2434 = vld [vmem:[#allocation17 + $0xc] sm:$0xf]
    %v2435 = vld [vmem:[#allocation17 + $0x10] sm:$0xf]
    %v2436 = vld [vmem:[#allocation17 + $0x14] sm:$0xf]
    %v2437 = vld [vmem:[#allocation17 + $0x18] sm:$0xf]
    %v2438 = vld [vmem:[#allocation17 + $0x1c] sm:$0xf]
    %v2439 = vld [vmem:[#allocation17 + $0x20] sm:$0xf]
    %v2440 = vld [vmem:[#allocation17 + $0x24] sm:$0xf]
    %v2441 = vld [vmem:[#allocation17 + $0x28] sm:$0xf]
    %v2442 = vld [vmem:[#allocation17 + $0x2c] sm:$0xf]
    %v2443 = vld [vmem:[#allocation17 + $0x30] sm:$0xf]
    %v2444 = vld [vmem:[#allocation17 + $0x34] sm:$0xf]
    %v2445 = vld [vmem:[#allocation17 + $0x38] sm:$0xf]
    %v2446 = vld [vmem:[#allocation17 + $0x3c] sm:$0xf]
    %v2447 = vld [vmem:[#allocation19] sm:$0x1]
    %v2449 = vlaneseq
    %v2450 = vshrl.u32 %v2449, 7
    %v2451 = vsub.s32 0, %v2450
    %v2452 = vrot.slane %v2447, %v2451
    %v2470 = vunpack.c.l.b16 %v2431
    %v2471 = vunpack.c.l.b16 %v2432
    %v2472 = vunpack.c.l.b16 %v2433
    %v2473 = vunpack.c.l.b16 %v2434
    %v2474 = vunpack.c.l.b16 %v2435
    %v2475 = vunpack.c.l.b16 %v2436
    %v2476 = vunpack.c.l.b16 %v2437
    %v2477 = vunpack.c.l.b16 %v2438
    %v2478 = vunpack.c.l.b16 %v2439
    %v2479 = vunpack.c.l.b16 %v2440
    %v2480 = vunpack.c.l.b16 %v2441
    %v2481 = vunpack.c.l.b16 %v2442
    %v2482 = vunpack.c.l.b16 %v2443
    %v2483 = vunpack.c.l.b16 %v2444
    %v2484 = vunpack.c.l.b16 %v2445
    %v2485 = vunpack.c.l.b16 %v2446
    %v2486 = vpack.c.b16 %v2471, %v2470
    %v2487 = vpack.c.b16 %v2473, %v2472
    %v2488 = vpack.c.b16 %v2475, %v2474
    %v2489 = vpack.c.b16 %v2477, %v2476
    %v2490 = vpack.c.b16 %v2479, %v2478
    %v2491 = vpack.c.b16 %v2481, %v2480
    %v2492 = vpack.c.b16 %v2483, %v2482
    %v2493 = vpack.c.b16 %v2485, %v2484
    %2502 = vmatprep.subr.bf16.mxu0 0
    %2503 = vmatpush1.bf16.msra.mxu0 %v2486
    %2504 = vmatprep.subr.bf16.mxu0 0
    %2505 = vmatpush1.bf16.msra.mxu0 %v2487
    %2506 = vmatprep.subr.bf16.mxu0 0
    %2507 = vmatpush1.bf16.msra.mxu0 %v2488
    %2508 = vmatprep.subr.bf16.mxu0 0
    %2509 = vmatpush1.bf16.msra.mxu0 %v2489
    %2510 = vmatprep.subr.bf16.mxu0 0
    %2511 = vmatpush1.bf16.msra.mxu0 %v2490
    %2512 = vmatprep.subr.bf16.mxu0 0
    %2513 = vmatpush1.bf16.msra.mxu0 %v2491
    %2514 = vmatprep.subr.bf16.mxu0 0
    %2515 = vmatpush1.bf16.msra.mxu0 %v2492
    %2516 = vmatprep.subr.bf16.mxu0 0
    %2517 = vmatpush1.bf16.msra.mxu0 %v2493
    %2518 = vmatprep.subr.bf16.mxu0 0
    %2519 = vmatpush1.bf16.msra.mxu0 0
    %2520 = vmatprep.subr.bf16.mxu0 0
    %2521 = vmatpush1.bf16.msra.mxu0 0
    %2522 = vmatprep.subr.bf16.mxu0 0
    %2523 = vmatpush1.bf16.msra.mxu0 0
    %2524 = vmatprep.subr.bf16.mxu0 0
    %2525 = vmatpush1.bf16.msra.mxu0 0
    %2526 = vmatprep.subr.bf16.mxu0 0
    %2527 = vmatpush1.bf16.msra.mxu0 0
    %2528 = vmatprep.subr.bf16.mxu0 0
    %2529 = vmatpush1.bf16.msra.mxu0 0
    %2530 = vmatprep.subr.bf16.mxu0 0
    %2531 = vmatpush1.bf16.msra.mxu0 0
    %2532 = vmatprep.subr.bf16.mxu0 0
    %2533 = vmatpush1.bf16.msra.mxu0 0
    %2534 = vmatprep.mubr.bf16.mxu0 0
    %2535 = vmatmul.mubr.bf16.gmra.mrb[0].mxu0 %v2429
    %v2536 = vpop.f32.mrb[0].mxu0
    %v2537 = vadd.f32 %v2452, %v2536
    %v2538 = vpop.f32.mrb[0].mxu0
    %v2539 = vpop.f32.mrb[0].mxu0
    %v2540 = vadd.f32 %v2452, %v2539
    %v2541 = vpop.f32.mrb[0].mxu0
    %2542 = vmatprep.mubr.bf16.mxu0 0
    %2543 = vmatmul.mubr.bf16.gmra.mrb[0].mxu0 %v2430
    %v2544 = vpop.f32.mrb[0].mxu0
    %v2545 = vadd.f32 %v2452, %v2544
    %v2546 = vpop.f32.mrb[0].mxu0
    %v2547 = vpop.f32.mrb[0].mxu0
    %v2548 = vadd.f32 %v2452, %v2547
    %v2549 = vpop.f32.mrb[0].mxu0
    %2550 = vdwg.mxu0
    %v2551 = vmul.f32 %v2537, %v2537
    %v2552 = vmul.f32 %v2540, %v2540
    %v2553 = vmul.f32 %v2545, %v2545
    %v2554 = vmul.f32 %v2548, %v2548
    %v2555 = vmul.f32 %v2537, %v2551
    %v2556 = vmul.f32 %v2540, %v2552
    %v2557 = vmul.f32 %v2545, %v2553
    %v2558 = vmul.f32 %v2548, %v2554
    %v2559 = vmul.f32 %v2555, 0.044715
    %v2560 = vmul.f32 %v2556, 0.044715
    %v2561 = vmul.f32 %v2557, 0.044715
    %v2562 = vmul.f32 %v2558, 0.044715
    %v2563 = vadd.f32 %v2537, %v2559
    %v2564 = vadd.f32 %v2540, %v2560
    %v2565 = vadd.f32 %v2545, %v2561
    %v2566 = vadd.f32 %v2548, %v2562
    %v2567 = vmul.f32 %v2563, 0.7978846
    %v2568 = vmul.f32 %v2564, 0.7978846
    %v2569 = vmul.f32 %v2565, 0.7978846
    %v2570 = vmul.f32 %v2566, 0.7978846
    %v2571 = vtanh.pop %v2567
    %v2572 = vtanh.pop %v2568
    %v2573 = vtanh.pop %v2569
    %v2574 = vtanh.pop %v2570
    %v2575 = vadd.f32 %v2571, 1.0
    %v2576 = vadd.f32 %v2572, 1.0
    %v2577 = vadd.f32 %v2573, 1.0
    %v2578 = vadd.f32 %v2574, 1.0
    %v2579 = vmul.f32 %v2575, 0.5
    %v2580 = vmul.f32 %v2576, 0.5
    %v2581 = vmul.f32 %v2577, 0.5
    %v2582 = vmul.f32 %v2578, 0.5
    %v2583 = vmul.f32 %v2537, %v2579
    %v2584 = vmul.f32 %v2540, %v2580
    %v2585 = vmul.f32 %v2545, %v2581
    %v2586 = vmul.f32 %v2548, %v2582
    %v2587 = vld [vmem:[#allocation20] sm:$0x1]
    %v2588 = vld [vmem:[#allocation22] sm:$0x1]
    %2589 = vadd.xlane.f32.xlu0 %v2583
    %v2590 = vpop.xlane.xlu0 %2589
    %2591 = vadd.xlane.f32.xlu0 %v2584
    %v2592 = vpop.xlane.xlu0 %2591
    %2593 = vadd.xlane.f32.xlu0 %v2585
    %v2594 = vpop.xlane.xlu0 %2593
    %2595 = vadd.xlane.f32.xlu0 %v2586
    %v2596 = vpop.xlane.xlu0 %2595
    %v2597 = vmul.f32 %v2590, 0.0078125
    %v2598 = vmul.f32 %v2592, 0.0078125
    %v2599 = vmul.f32 %v2594, 0.0078125
    %v2600 = vmul.f32 %v2596, 0.0078125
    %v2601 = vmul.f32 %v2583, %v2583
    %v2602 = vmul.f32 %v2584, %v2584
    %v2603 = vmul.f32 %v2585, %v2585
    %v2604 = vmul.f32 %v2586, %v2586
    %2605 = vadd.xlane.f32.xlu0 %v2601
    %v2606 = vpop.xlane.xlu0 %2605
    %2607 = vadd.xlane.f32.xlu0 %v2602
    %v2608 = vpop.xlane.xlu0 %2607
    %2609 = vadd.xlane.f32.xlu0 %v2603
    %v2610 = vpop.xlane.xlu0 %2609
    %2611 = vadd.xlane.f32.xlu0 %v2604
    %v2612 = vpop.xlane.xlu0 %2611
    %v2613 = vmul.f32 %v2606, 0.0078125
    %v2614 = vmul.f32 %v2608, 0.0078125
    %v2615 = vmul.f32 %v2610, 0.0078125
    %v2616 = vmul.f32 %v2612, 0.0078125
    %v2617 = vmul.f32 %v2597, %v2597
    %v2618 = vmul.f32 %v2598, %v2598
    %v2619 = vmul.f32 %v2599, %v2599
    %v2620 = vmul.f32 %v2600, %v2600
    %v2621 = vsub.f32 %v2613, %v2617
    %v2622 = vsub.f32 %v2614, %v2618
    %v2623 = vsub.f32 %v2615, %v2619
    %v2624 = vsub.f32 %v2616, %v2620
    %v2625 = vsub.f32 %v2583, %v2597
    %v2626 = vsub.f32 %v2584, %v2598
    %v2627 = vsub.f32 %v2585, %v2599
    %v2628 = vsub.f32 %v2586, %v2600
    %v2629 = vadd.f32 %v2621, 1e-05
    %v2630 = vadd.f32 %v2622, 1e-05
    %v2631 = vadd.f32 %v2623, 1e-05
    %v2632 = vadd.f32 %v2624, 1e-05
    %v2633 = vrsqrt.pop %v2629
    %v2634 = vrsqrt.pop %v2630
    %v2635 = vrsqrt.pop %v2631
    %v2636 = vrsqrt.pop %v2632
    %v2637 = vmul.f32 %v2625, %v2633
    %v2638 = vmul.f32 %v2626, %v2634
    %v2639 = vmul.f32 %v2627, %v2635
    %v2640 = vmul.f32 %v2628, %v2636
    %v2642 = vlaneseq
    %v2643 = vshrl.u32 %v2642, 7
    %v2644 = vsub.s32 0, %v2643
    %v2645 = vrot.slane %v2587, %v2644
    %v2647 = vmul.f32 %v2637, %v2645
    %v2648 = vmul.f32 %v2638, %v2645
    %v2649 = vmul.f32 %v2639, %v2645
    %v2650 = vmul.f32 %v2640, %v2645
    %v2652 = vlaneseq
    %v2653 = vshrl.u32 %v2652, 7
    %v2654 = vsub.s32 0, %v2653
    %v2655 = vrot.slane %v2588, %v2654
    %v2657 = vadd.f32 %v2647, %v2655
    %v2658 = vadd.f32 %v2648, %v2655
    %v2659 = vadd.f32 %v2649, %v2655
    %v2660 = vadd.f32 %v2650, %v2655
    %v2661 = vpack.c.bf16 %v2658, %v2657
    %v2662 = vpack.c.bf16 %v2660, %v2659
    %v2663 = vld [vmem:[#allocation23] sm:$0xf]
    %v2664 = vld [vmem:[#allocation23 + $0x4] sm:$0xf]
    %v2665 = vld [vmem:[#allocation23 + $0x8] sm:$0xf]
    %v2666 = vld [vmem:[#allocation23 + $0xc] sm:$0xf]
    %v2667 = vld [vmem:[#allocation23 + $0x10] sm:$0xf]
    %v2668 = vld [vmem:[#allocation23 + $0x14] sm:$0xf]
    %v2669 = vld [vmem:[#allocation23 + $0x18] sm:$0xf]
    %v2670 = vld [vmem:[#allocation23 + $0x1c] sm:$0xf]
    %v2671 = vld [vmem:[#allocation23 + $0x20] sm:$0xf]
    %v2672 = vld [vmem:[#allocation23 + $0x24] sm:$0xf]
    %v2673 = vld [vmem:[#allocation23 + $0x28] sm:$0xf]
    %v2674 = vld [vmem:[#allocation23 + $0x2c] sm:$0xf]
    %v2675 = vld [vmem:[#allocation23 + $0x30] sm:$0xf]
    %v2676 = vld [vmem:[#allocation23 + $0x34] sm:$0xf]
    %v2677 = vld [vmem:[#allocation23 + $0x38] sm:$0xf]
    %v2678 = vld [vmem:[#allocation23 + $0x3c] sm:$0xf]
    %v2679 = vld [vmem:[#allocation25] sm:$0x1]
    %v2681 = vlaneseq
    %v2682 = vshrl.u32 %v2681, 7
    %v2683 = vsub.s32 0, %v2682
    %v2684 = vrot.slane %v2679, %v2683
    %v2702 = vunpack.c.l.b16 %v2663
    %v2703 = vunpack.c.l.b16 %v2664
    %v2704 = vunpack.c.l.b16 %v2665
    %v2705 = vunpack.c.l.b16 %v2666
    %v2706 = vunpack.c.l.b16 %v2667
    %v2707 = vunpack.c.l.b16 %v2668
    %v2708 = vunpack.c.l.b16 %v2669
    %v2709 = vunpack.c.l.b16 %v2670
    %v2710 = vunpack.c.l.b16 %v2671
    %v2711 = vunpack.c.l.b16 %v2672
    %v2712 = vunpack.c.l.b16 %v2673
    %v2713 = vunpack.c.l.b16 %v2674
    %v2714 = vunpack.c.l.b16 %v2675
    %v2715 = vunpack.c.l.b16 %v2676
    %v2716 = vunpack.c.l.b16 %v2677
    %v2717 = vunpack.c.l.b16 %v2678
    %v2718 = vpack.c.b16 %v2703, %v2702
    %v2719 = vpack.c.b16 %v2705, %v2704
    %v2720 = vpack.c.b16 %v2707, %v2706
    %v2721 = vpack.c.b16 %v2709, %v2708
    %v2722 = vpack.c.b16 %v2711, %v2710
    %v2723 = vpack.c.b16 %v2713, %v2712
    %v2724 = vpack.c.b16 %v2715, %v2714
    %v2725 = vpack.c.b16 %v2717, %v2716
    %2734 = vmatprep.subr.bf16.mxu0 0
    %2735 = vmatpush1.bf16.msra.mxu0 %v2718
    %2736 = vmatprep.subr.bf16.mxu0 0
    %2737 = vmatpush1.bf16.msra.mxu0 %v2719
    %2738 = vmatprep.subr.bf16.mxu0 0
    %2739 = vmatpush1.bf16.msra.mxu0 %v2720
    %2740 = vmatprep.subr.bf16.mxu0 0
    %2741 = vmatpush1.bf16.msra.mxu0 %v2721
    %2742 = vmatprep.subr.bf16.mxu0 0
    %2743 = vmatpush1.bf16.msra.mxu0 %v2722
    %2744 = vmatprep.subr.bf16.mxu0 0
    %2745 = vmatpush1.bf16.msra.mxu0 %v2723
    %2746 = vmatprep.subr.bf16.mxu0 0
    %2747 = vmatpush1.bf16.msra.mxu0 %v2724
    %2748 = vmatprep.subr.bf16.mxu0 0
    %2749 = vmatpush1.bf16.msra.mxu0 %v2725
    %2750 = vmatprep.subr.bf16.mxu0 0
    %2751 = vmatpush1.bf16.msra.mxu0 0
    %2752 = vmatprep.subr.bf16.mxu0 0
    %2753 = vmatpush1.bf16.msra.mxu0 0
    %2754 = vmatprep.subr.bf16.mxu0 0
    %2755 = vmatpush1.bf16.msra.mxu0 0
    %2756 = vmatprep.subr.bf16.mxu0 0
    %2757 = vmatpush1.bf16.msra.mxu0 0
    %2758 = vmatprep.subr.bf16.mxu0 0
    %2759 = vmatpush1.bf16.msra.mxu0 0
    %2760 = vmatprep.subr.bf16.mxu0 0
    %2761 = vmatpush1.bf16.msra.mxu0 0
    %2762 = vmatprep.subr.bf16.mxu0 0
    %2763 = vmatpush1.bf16.msra.mxu0 0
    %2764 = vmatprep.subr.bf16.mxu0 0
    %2765 = vmatpush1.bf16.msra.mxu0 0
    %2766 = vmatprep.mubr.bf16.mxu0 0
    %2767 = vmatmul.mubr.bf16.gmra.mrb[0].mxu0 %v2661
    %v2768 = vpop.f32.mrb[0].mxu0
    %v2769 = vadd.f32 %v2684, %v2768
    %v2770 = vpop.f32.mrb[0].mxu0
    %v2771 = vpop.f32.mrb[0].mxu0
    %v2772 = vadd.f32 %v2684, %v2771
    %v2773 = vpop.f32.mrb[0].mxu0
    %2774 = vmatprep.mubr.bf16.mxu0 0
    %2775 = vmatmul.mubr.bf16.gmra.mrb[0].mxu0 %v2662
    %v2776 = vpop.f32.mrb[0].mxu0
    %v2777 = vadd.f32 %v2684, %v2776
    %v2778 = vpop.f32.mrb[0].mxu0
    %v2779 = vpop.f32.mrb[0].mxu0
    %v2780 = vadd.f32 %v2684, %v2779
    %v2781 = vpop.f32.mrb[0].mxu0
    %2782 = vdwg.mxu0
    %v2783 = vld [vmem:[#allocation26] sm:$0xf]
    %v2784 = vld [vmem:[#allocation26 + $0x4] sm:$0xf]
    %v2785 = vld [vmem:[#allocation26 + $0x8] sm:$0xf]
    %v2786 = vld [vmem:[#allocation26 + $0xc] sm:$0xf]
    %v2787 = vld [vmem:[#allocation26 + $0x10] sm:$0xf]
    %v2788 = vld [vmem:[#allocation26 + $0x14] sm:$0xf]
    %v2789 = vld [vmem:[#allocation26 + $0x18] sm:$0xf]
    %v2790 = vld [vmem:[#allocation26 + $0x1c] sm:$0xf]
    %v2791 = vld [vmem:[#allocation26 + $0x20] sm:$0xf]
    %v2792 = vld [vmem:[#allocation26 + $0x24] sm:$0xf]
    %v2793 = vld [vmem:[#allocation26 + $0x28] sm:$0xf]
    %v2794 = vld [vmem:[#allocation26 + $0x2c] sm:$0xf]
    %v2795 = vld [vmem:[#allocation26 + $0x30] sm:$0xf]
    %v2796 = vld [vmem:[#allocation26 + $0x34] sm:$0xf]
    %v2797 = vld [vmem:[#allocation26 + $0x38] sm:$0xf]
    %v2798 = vld [vmem:[#allocation26 + $0x3c] sm:$0xf]
    %v2799 = vld [vmem:[#allocation28] sm:$0x1]
    %v2801 = vlaneseq
    %v2802 = vshrl.u32 %v2801, 7
    %v2803 = vsub.s32 0, %v2802
    %v2804 = vrot.slane %v2799, %v2803
    %v2822 = vunpack.c.l.b16 %v2783
    %v2823 = vunpack.c.l.b16 %v2784
    %v2824 = vunpack.c.l.b16 %v2785
    %v2825 = vunpack.c.l.b16 %v2786
    %v2826 = vunpack.c.l.b16 %v2787
    %v2827 = vunpack.c.l.b16 %v2788
    %v2828 = vunpack.c.l.b16 %v2789
    %v2829 = vunpack.c.l.b16 %v2790
    %v2830 = vunpack.c.l.b16 %v2791
    %v2831 = vunpack.c.l.b16 %v2792
    %v2832 = vunpack.c.l.b16 %v2793
    %v2833 = vunpack.c.l.b16 %v2794
    %v2834 = vunpack.c.l.b16 %v2795
    %v2835 = vunpack.c.l.b16 %v2796
    %v2836 = vunpack.c.l.b16 %v2797
    %v2837 = vunpack.c.l.b16 %v2798
    %v2838 = vpack.c.b16 %v2823, %v2822
    %v2839 = vpack.c.b16 %v2825, %v2824
    %v2840 = vpack.c.b16 %v2827, %v2826
    %v2841 = vpack.c.b16 %v2829, %v2828
    %v2842 = vpack.c.b16 %v2831, %v2830
    %v2843 = vpack.c.b16 %v2833, %v2832
    %v2844 = vpack.c.b16 %v2835, %v2834
    %v2845 = vpack.c.b16 %v2837, %v2836
    %2854 = vmatprep.subr.bf16.mxu0 0
    %2855 = vmatpush1.bf16.msra.mxu0 %v2838
    %2856 = vmatprep.subr.bf16.mxu0 0
    %2857 = vmatpush1.bf16.msra.mxu0 %v2839
    %2858 = vmatprep.subr.bf16.mxu0 0
    %2859 = vmatpush1.bf16.msra.mxu0 %v2840
    %2860 = vmatprep.subr.bf16.mxu0 0
    %2861 = vmatpush1.bf16.msra.mxu0 %v2841
    %2862 = vmatprep.subr.bf16.mxu0 0
    %2863 = vmatpush1.bf16.msra.mxu0 %v2842
    %2864 = vmatprep.subr.bf16.mxu0 0
    %2865 = vmatpush1.bf16.msra.mxu0 %v2843
    %2866 = vmatprep.subr.bf16.mxu0 0
    %2867 = vmatpush1.bf16.msra.mxu0 %v2844
    %2868 = vmatprep.subr.bf16.mxu0 0
    %2869 = vmatpush1.bf16.msra.mxu0 %v2845
    %2870 = vmatprep.subr.bf16.mxu0 0
    %2871 = vmatpush1.bf16.msra.mxu0 0
    %2872 = vmatprep.subr.bf16.mxu0 0
    %2873 = vmatpush1.bf16.msra.mxu0 0
    %2874 = vmatprep.subr.bf16.mxu0 0
    %2875 = vmatpush1.bf16.msra.mxu0 0
    %2876 = vmatprep.subr.bf16.mxu0 0
    %2877 = vmatpush1.bf16.msra.mxu0 0
    %2878 = vmatprep.subr.bf16.mxu0 0
    %2879 = vmatpush1.bf16.msra.mxu0 0
    %2880 = vmatprep.subr.bf16.mxu0 0
    %2881 = vmatpush1.bf16.msra.mxu0 0
    %2882 = vmatprep.subr.bf16.mxu0 0
    %2883 = vmatpush1.bf16.msra.mxu0 0
    %2884 = vmatprep.subr.bf16.mxu0 0
    %2885 = vmatpush1.bf16.msra.mxu0 0
    %2886 = vmatprep.mubr.bf16.mxu0 0
    %2887 = vmatmul.mubr.bf16.gmra.mrb[0].mxu0 %v2661
    %v2888 = vpop.f32.mrb[0].mxu0
    %v2889 = vadd.f32 %v2804, %v2888
    %v2890 = vpop.f32.mrb[0].mxu0
    %v2891 = vpop.f32.mrb[0].mxu0
    %v2892 = vadd.f32 %v2804, %v2891
    %v2893 = vpop.f32.mrb[0].mxu0
    %2894 = vmatprep.mubr.bf16.mxu0 0
    %2895 = vmatmul.mubr.bf16.gmra.mrb[0].mxu0 %v2662
    %v2896 = vpop.f32.mrb[0].mxu0
    %v2897 = vadd.f32 %v2804, %v2896
    %v2898 = vpop.f32.mrb[0].mxu0
    %v2899 = vpop.f32.mrb[0].mxu0
    %v2900 = vadd.f32 %v2804, %v2899
    %v2901 = vpop.f32.mrb[0].mxu0
    %2902 = vdwg.mxu0
    %v2903 = vld [vmem:[#allocation29] sm:$0xf]
    %v2904 = vld [vmem:[#allocation29 + $0x4] sm:$0xf]
    %v2905 = vld [vmem:[#allocation29 + $0x8] sm:$0xf]
    %v2906 = vld [vmem:[#allocation29 + $0xc] sm:$0xf]
    %v2907 = vld [vmem:[#allocation29 + $0x10] sm:$0xf]
    %v2908 = vld [vmem:[#allocation29 + $0x14] sm:$0xf]
    %v2909 = vld [vmem:[#allocation29 + $0x18] sm:$0xf]
    %v2910 = vld [vmem:[#allocation29 + $0x1c] sm:$0xf]
    %v2911 = vld [vmem:[#allocation29 + $0x20] sm:$0xf]
    %v2912 = vld [vmem:[#allocation29 + $0x24] sm:$0xf]
    %v2913 = vld [vmem:[#allocation29 + $0x28] sm:$0xf]
    %v2914 = vld [vmem:[#allocation29 + $0x2c] sm:$0xf]
    %v2915 = vld [vmem:[#allocation29 + $0x30] sm:$0xf]
    %v2916 = vld [vmem:[#allocation29 + $0x34] sm:$0xf]
    %v2917 = vld [vmem:[#allocation29 + $0x38] sm:$0xf]
    %v2918 = vld [vmem:[#allocation29 + $0x3c] sm:$0xf]
    %v2919 = vld [vmem:[#allocation31] sm:$0x1]
    %v2921 = vlaneseq
    %v2922 = vshrl.u32 %v2921, 7
    %v2923 = vsub.s32 0, %v2922
    %v2924 = vrot.slane %v2919, %v2923
    %v2942 = vunpack.c.l.b16 %v2903
    %v2943 = vunpack.c.l.b16 %v2904
    %v2944 = vunpack.c.l.b16 %v2905
    %v2945 = vunpack.c.l.b16 %v2906
    %v2946 = vunpack.c.l.b16 %v2907
    %v2947 = vunpack.c.l.b16 %v2908
    %v2948 = vunpack.c.l.b16 %v2909
    %v2949 = vunpack.c.l.b16 %v2910
    %v2950 = vunpack.c.l.b16 %v2911
    %v2951 = vunpack.c.l.b16 %v2912
    %v2952 = vunpack.c.l.b16 %v2913
    %v2953 = vunpack.c.l.b16 %v2914
    %v2954 = vunpack.c.l.b16 %v2915
    %v2955 = vunpack.c.l.b16 %v2916
    %v2956 = vunpack.c.l.b16 %v2917
    %v2957 = vunpack.c.l.b16 %v2918
    %v2958 = vpack.c.b16 %v2943, %v2942
    %v2959 = vpack.c.b16 %v2945, %v2944
    %v2960 = vpack.c.b16 %v2947, %v2946
    %v2961 = vpack.c.b16 %v2949, %v2948
    %v2962 = vpack.c.b16 %v2951, %v2950
    %v2963 = vpack.c.b16 %v2953, %v2952
    %v2964 = vpack.c.b16 %v2955, %v2954
    %v2965 = vpack.c.b16 %v2957, %v2956
    %2974 = vmatprep.subr.bf16.mxu0 0
    %2975 = vmatpush1.bf16.msra.mxu0 %v2958
    %2976 = vmatprep.subr.bf16.mxu0 0
    %2977 = vmatpush1.bf16.msra.mxu0 %v2959
    %2978 = vmatprep.subr.bf16.mxu0 0
    %2979 = vmatpush1.bf16.msra.mxu0 %v2960
    %2980 = vmatprep.subr.bf16.mxu0 0
    %2981 = vmatpush1.bf16.msra.mxu0 %v2961
    %2982 = vmatprep.subr.bf16.mxu0 0
    %2983 = vmatpush1.bf16.msra.mxu0 %v2962
    %2984 = vmatprep.subr.bf16.mxu0 0
    %2985 = vmatpush1.bf16.msra.mxu0 %v2963
    %2986 = vmatprep.subr.bf16.mxu0 0
    %2987 = vmatpush1.bf16.msra.mxu0 %v2964
    %2988 = vmatprep.subr.bf16.mxu0 0
    %2989 = vmatpush1.bf16.msra.mxu0 %v2965
    %2990 = vmatprep.subr.bf16.mxu0 0
    %2991 = vmatpush1.bf16.msra.mxu0 0
    %2992 = vmatprep.subr.bf16.mxu0 0
    %2993 = vmatpush1.bf16.msra.mxu0 0
    %2994 = vmatprep.subr.bf16.mxu0 0
    %2995 = vmatpush1.bf16.msra.mxu0 0
    %2996 = vmatprep.subr.bf16.mxu0 0
    %2997 = vmatpush1.bf16.msra.mxu0 0
    %2998 = vmatprep.subr.bf16.mxu0 0
    %2999 = vmatpush1.bf16.msra.mxu0 0
    %3000 = vmatprep.subr.bf16.mxu0 0
    %3001 = vmatpush1.bf16.msra.mxu0 0
    %3002 = vmatprep.subr.bf16.mxu0 0
    %3003 = vmatpush1.bf16.msra.mxu0 0
    %3004 = vmatprep.subr.bf16.mxu0 0
    %3005 = vmatpush1.bf16.msra.mxu0 0
    %3006 = vmatprep.mubr.bf16.mxu0 0
    %3007 = vmatmul.mubr.bf16.gmra.mrb[0].mxu0 %v2661
    %v3008 = vpop.f32.mrb[0].mxu0
    %v3009 = vadd.f32 %v2924, %v3008
    %v3010 = vpop.f32.mrb[0].mxu0
    %v3011 = vpop.f32.mrb[0].mxu0
    %v3012 = vadd.f32 %v2924, %v3011
    %v3013 = vpop.f32.mrb[0].mxu0
    %3014 = vmatprep.mubr.bf16.mxu0 0
    %3015 = vmatmul.mubr.bf16.gmra.mrb[0].mxu0 %v2662
    %v3016 = vpop.f32.mrb[0].mxu0
    %v3017 = vadd.f32 %v2924, %v3016
    %v3018 = vpop.f32.mrb[0].mxu0
    %v3019 = vpop.f32.mrb[0].mxu0
    %v3020 = vadd.f32 %v2924, %v3019
    %v3021 = vpop.f32.mrb[0].mxu0
    %3022 = vdwg.mxu0
    %v3023 = vpack.c.bf16 %v2892, %v2889
    %v3024 = vpack.c.bf16 %v2900, %v2897
    %v3025 = vld [vmem:[#allocation32] sm:$0x1]
    %v3027 = vlaneseq
    %v3028 = vshrl.u32 %v3027, 7
    %v3029 = vsub.s32 0, %v3028
    %v3030 = vrot.slane %v3025, %v3029
    %v3032 = vmul.f32 %v2769, %v3030
    %v3033 = vmul.f32 %v2772, %v3030
    %v3034 = vmul.f32 %v2777, %v3030
    %v3035 = vmul.f32 %v2780, %v3030
    %v3036 = vpack.c.bf16 %v3033, %v3032
    %v3037 = vpack.c.bf16 %v3035, %v3034
    %v3038 = vld [vmem:[%s47] sm:$0xff]
    %v3039 = vld [vmem:[%s47 + $0x8] sm:$0xff]
    %v3040 = vld [vmem:[%s47 + $0x10] sm:$0xff]
    %v3041 = vld [vmem:[%s47 + $0x18] sm:$0xff]
    %3042 = vmatprep.subr.bf16.mxu0 0
    %3043 = vmatpush1.bf16.xpose.msra.mxu0 %v3023
    %3044 = vmatprep.subr.bf16.mxu0 0
    %3045 = vmatpush1.bf16.xpose.msra.mxu0 %v3024
    %3046 = vmatprep.subr.bf16.mxu0 0
    %3047 = vmatpush1.bf16.xpose.msra.mxu0 0
    %3048 = vmatprep.subr.bf16.mxu0 0
    %3049 = vmatpush1.bf16.xpose.msra.mxu0 0
    %3050 = vmatprep.subr.bf16.mxu0 0
    %3051 = vmatpush1.bf16.xpose.msra.mxu0 0
    %3052 = vmatprep.subr.bf16.mxu0 0
    %3053 = vmatpush1.bf16.xpose.msra.mxu0 0
    %3054 = vmatprep.subr.bf16.mxu0 0
    %3055 = vmatpush1.bf16.xpose.msra.mxu0 0
    %3056 = vmatprep.subr.bf16.mxu0 0
    %3057 = vmatpush1.bf16.xpose.msra.mxu0 0
    %3058 = vmatprep.subr.bf16.mxu0 0
    %3059 = vmatpush1.bf16.xpose.msra.mxu0 0
    %3060 = vmatprep.subr.bf16.mxu0 0
    %3061 = vmatpush1.bf16.xpose.msra.mxu0 0
    %3062 = vmatprep.subr.bf16.mxu0 0
    %3063 = vmatpush1.bf16.xpose.msra.mxu0 0
    %3064 = vmatprep.subr.bf16.mxu0 0
    %3065 = vmatpush1.bf16.xpose.msra.mxu0 0
    %3066 = vmatprep.subr.bf16.mxu0 0
    %3067 = vmatpush1.bf16.xpose.msra.mxu0 0
    %3068 = vmatprep.subr.bf16.mxu0 0
    %3069 = vmatpush1.bf16.xpose.msra.mxu0 0
    %3070 = vmatprep.subr.bf16.mxu0 0
    %3071 = vmatpush1.bf16.xpose.msra.mxu0 0
    %3072 = vmatprep.subr.bf16.mxu0 0
    %3073 = vmatpush1.bf16.xpose.msra.mxu0 0
    %3074 = vmatprep.mubr.bf16.mxu0 0
    %3075 = vmatmul.mubr.bf16.gmra.mrb[0].mxu0 %v3036
    %v3076 = vpop.f32.mrb[0].mxu0
    %v3077 = vadd.f32 %v3038, %v3076
    %v3078 = vpop.f32.mrb[0].mxu0
    %v3079 = vpop.f32.mrb[0].mxu0
    %v3080 = vadd.f32 %v3039, %v3079
    %v3081 = vpop.f32.mrb[0].mxu0
    %3082 = vmatprep.mubr.bf16.mxu0 0
    %3083 = vmatmul.mubr.bf16.gmra.mrb[0].mxu0 %v3037
    %v3084 = vpop.f32.mrb[0].mxu0
    %v3085 = vadd.f32 %v3040, %v3084
    %v3086 = vpop.f32.mrb[0].mxu0
    %v3087 = vpop.f32.mrb[0].mxu0
    %v3088 = vadd.f32 %v3041, %v3087
    %v3089 = vpop.f32.mrb[0].mxu0
    %3090 = vdwg.mxu0
    %vm3091 = vcmask 261120
    %v3092 = vsel %vm3091, %v3077, -inf
    %3093 = vmax.xlane.f32.xlu0 %v3092
    %v3094 = vpop.xlane.xlu0 %3093
    %v3095 = vsel %vm3091, %v3080, -inf
    %3096 = vmax.xlane.f32.xlu0 %v3095
    %v3097 = vpop.xlane.xlu0 %3096
    %v3098 = vsel %vm3091, %v3085, -inf
    %3099 = vmax.xlane.f32.xlu0 %v3098
    %v3100 = vpop.xlane.xlu0 %3099
    %v3101 = vsel %vm3091, %v3088, -inf
    %3102 = vmax.xlane.f32.xlu0 %v3101
    %v3103 = vpop.xlane.xlu0 %3102
    %v3104 = vsub.f32 %v3077, %v3094
    %v3105 = vsub.f32 %v3080, %v3097
    %v3106 = vsub.f32 %v3085, %v3100
    %v3107 = vsub.f32 %v3088, %v3103
    %v3108 = vmul.f32 %v3104, 1.442695
    %v3109 = vpow.pop %v3108
    %v3110 = vmul.f32 %v3105, 1.442695
    %v3111 = vpow.pop %v3110
    %v3112 = vmul.f32 %v3106, 1.442695
    %v3113 = vpow.pop %v3112
    %v3114 = vmul.f32 %v3107, 1.442695
    %v3115 = vpow.pop %v3114
    %v3116 = vsel %vm3091, %v3109, 0.0
    %3117 = vadd.xlane.f32.xlu0 %v3116
    %v3118 = vpop.xlane.xlu0 %3117
    %v3119 = vsel %vm3091, %v3111, 0.0
    %3120 = vadd.xlane.f32.xlu0 %v3119
    %v3121 = vpop.xlane.xlu0 %3120
    %v3122 = vsel %vm3091, %v3113, 0.0
    %3123 = vadd.xlane.f32.xlu0 %v3122
    %v3124 = vpop.xlane.xlu0 %3123
    %v3125 = vsel %vm3091, %v3115, 0.0
    %3126 = vadd.xlane.f32.xlu0 %v3125
    %v3127 = vpop.xlane.xlu0 %3126
    %v3128 = vrcp.pop %v3118
    %v3129 = vrcp.pop %v3121
    %v3130 = vrcp.pop %v3124
    %v3131 = vrcp.pop %v3127
    %v3132 = vmul.f32 %v3109, %v3128
    %v3133 = vmul.f32 %v3111, %v3129
    %v3134 = vmul.f32 %v3113, %v3130
    %v3135 = vmul.f32 %v3115, %v3131
    %v3136 = vmul.f32 %v3009, %v3030
    %v3137 = vmul.f32 %v3012, %v3030
    %v3138 = vmul.f32 %v3017, %v3030
    %v3139 = vmul.f32 %v3020, %v3030
    %v3140 = vpack.c.bf16 %v3137, %v3136
    %v3141 = vpack.c.bf16 %v3139, %v3138
    %v3142 = vpack.c.bf16 %v3133, %v3132
    %v3143 = vpack.c.bf16 %v3135, %v3134
    %s3144 = scalar_lea.vmem [#allocation32], 1
    %v3145 = vld [vmem:[%s3144] sm:$0x1]
    %v3147 = vlaneseq
    %v3148 = vshrl.u32 %v3147, 7
    %v3149 = vsub.s32 0, %v3148
    %v3150 = vrot.slane %v3145, %v3149
    %v3152 = vmul.f32 %v2769, %v3150
    %v3153 = vmul.f32 %v2772, %v3150
    %v3154 = vmul.f32 %v2777, %v3150
    %v3155 = vmul.f32 %v2780, %v3150
    %v3156 = vpack.c.bf16 %v3153, %v3152
    %v3157 = vpack.c.bf16 %v3155, %v3154
    %s3158 = scalar_lea.vmem %s47, 32
    %v3159 = vld [vmem:[%s3158] sm:$0xff]
    %v3160 = vld [vmem:[%s3158 + $0x8] sm:$0xff]
    %v3161 = vld [vmem:[%s3158 + $0x10] sm:$0xff]
    %v3162 = vld [vmem:[%s3158 + $0x18] sm:$0xff]
    %3163 = vmatprep.subr.bf16.mxu0 0
    %3164 = vmatpush1.bf16.xpose.msra.mxu0 %v3023
    %3165 = vmatprep.subr.bf16.mxu0 0
    %3166 = vmatpush1.bf16.xpose.msra.mxu0 %v3024
    %3167 = vmatprep.subr.bf16.mxu0 0
    %3168 = vmatpush1.bf16.xpose.msra.mxu0 0
    %3169 = vmatprep.subr.bf16.mxu0 0
    %3170 = vmatpush1.bf16.xpose.msra.mxu0 0
    %3171 = vmatprep.subr.bf16.mxu0 0
    %3172 = vmatpush1.bf16.xpose.msra.mxu0 0
    %3173 = vmatprep.subr.bf16.mxu0 0
    %3174 = vmatpush1.bf16.xpose.msra.mxu0 0
    %3175 = vmatprep.subr.bf16.mxu0 0
    %3176 = vmatpush1.bf16.xpose.msra.mxu0 0
    %3177 = vmatprep.subr.bf16.mxu0 0
    %3178 = vmatpush1.bf16.xpose.msra.mxu0 0
    %3179 = vmatprep.subr.bf16.mxu0 0
    %3180 = vmatpush1.bf16.xpose.msra.mxu0 0
    %3181 = vmatprep.subr.bf16.mxu0 0
    %3182 = vmatpush1.bf16.xpose.msra.mxu0 0
    %3183 = vmatprep.subr.bf16.mxu0 0
    %3184 = vmatpush1.bf16.xpose.msra.mxu0 0
    %3185 = vmatprep.subr.bf16.mxu0 0
    %3186 = vmatpush1.bf16.xpose.msra.mxu0 0
    %3187 = vmatprep.subr.bf16.mxu0 0
    %3188 = vmatpush1.bf16.xpose.msra.mxu0 0
    %3189 = vmatprep.subr.bf16.mxu0 0
    %3190 = vmatpush1.bf16.xpose.msra.mxu0 0
    %3191 = vmatprep.subr.bf16.mxu0 0
    %3192 = vmatpush1.bf16.xpose.msra.mxu0 0
    %3193 = vmatprep.subr.bf16.mxu0 0
    %3194 = vmatpush1.bf16.xpose.msra.mxu0 0
    %3195 = vmatprep.mubr.bf16.mxu0 0
    %3196 = vmatmul.mubr.bf16.gmra.mrb[0].mxu0 %v3156
    %v3197 = vpop.f32.mrb[0].mxu0
    %v3198 = vadd.f32 %v3159, %v3197
    %v3199 = vpop.f32.mrb[0].mxu0
    %v3200 = vpop.f32.mrb[0].mxu0
    %v3201 = vadd.f32 %v3160, %v3200
    %v3202 = vpop.f32.mrb[0].mxu0
    %3203 = vmatprep.mubr.bf16.mxu0 0
    %3204 = vmatmul.mubr.bf16.gmra.mrb[0].mxu0 %v3157
    %v3205 = vpop.f32.mrb[0].mxu0
    %v3206 = vadd.f32 %v3161, %v3205
    %v3207 = vpop.f32.mrb[0].mxu0
    %v3208 = vpop.f32.mrb[0].mxu0
    %v3209 = vadd.f32 %v3162, %v3208
    %v3210 = vpop.f32.mrb[0].mxu0
    %3211 = vdwg.mxu0
    %v3212 = vsel %vm3091, %v3198, -inf
    %3213 = vmax.xlane.f32.xlu0 %v3212
    %v3214 = vpop.xlane.xlu0 %3213
    %v3215 = vsel %vm3091, %v3201, -inf
    %3216 = vmax.xlane.f32.xlu0 %v3215
    %v3217 = vpop.xlane.xlu0 %3216
    %v3218 = vsel %vm3091, %v3206, -inf
    %3219 = vmax.xlane.f32.xlu0 %v3218
    %v3220 = vpop.xlane.xlu0 %3219
    %v3221 = vsel %vm3091, %v3209, -inf
    %3222 = vmax.xlane.f32.xlu0 %v3221
    %v3223 = vpop.xlane.xlu0 %3222
    %v3224 = vsub.f32 %v3198, %v3214
    %v3225 = vsub.f32 %v3201, %v3217
    %v3226 = vsub.f32 %v3206, %v3220
    %v3227 = vsub.f32 %v3209, %v3223
    %v3228 = vmul.f32 %v3224, 1.442695
    %v3229 = vpow.pop %v3228
    %v3230 = vmul.f32 %v3225, 1.442695
    %v3231 = vpow.pop %v3230
    %v3232 = vmul.f32 %v3226, 1.442695
    %v3233 = vpow.pop %v3232
    %v3234 = vmul.f32 %v3227, 1.442695
    %v3235 = vpow.pop %v3234
    %v3236 = vsel %vm3091, %v3229, 0.0
    %3237 = vadd.xlane.f32.xlu0 %v3236
    %v3238 = vpop.xlane.xlu0 %3237
    %v3239 = vsel %vm3091, %v3231, 0.0
    %3240 = vadd.xlane.f32.xlu0 %v3239
    %v3241 = vpop.xlane.xlu0 %3240
    %v3242 = vsel %vm3091, %v3233, 0.0
    %3243 = vadd.xlane.f32.xlu0 %v3242
    %v3244 = vpop.xlane.xlu0 %3243
    %v3245 = vsel %vm3091, %v3235, 0.0
    %3246 = vadd.xlane.f32.xlu0 %v3245
    %v3247 = vpop.xlane.xlu0 %3246
    %v3248 = vrcp.pop %v3238
    %v3249 = vrcp.pop %v3241
    %v3250 = vrcp.pop %v3244
    %v3251 = vrcp.pop %v3247
    %v3252 = vmul.f32 %v3229, %v3248
    %v3253 = vmul.f32 %v3231, %v3249
    %v3254 = vmul.f32 %v3233, %v3250
    %v3255 = vmul.f32 %v3235, %v3251
    %v3256 = vmul.f32 %v3009, %v3150
    %v3257 = vmul.f32 %v3012, %v3150
    %v3258 = vmul.f32 %v3017, %v3150
    %v3259 = vmul.f32 %v3020, %v3150
    %v3260 = vpack.c.bf16 %v3257, %v3256
    %v3261 = vpack.c.bf16 %v3259, %v3258
    %v3262 = vpack.c.bf16 %v3253, %v3252
    %v3263 = vpack.c.bf16 %v3255, %v3254
    %v3265 = vsel %vm3091, %v3262, 0
    %v3268 = vsel %vm3091, %v3263, 0
    %3270 = vmatprep.subr.bf16.mxu0 0
    %3271 = vmatpush1.bf16.msra.mxu0 %v3260
    %3272 = vmatprep.subr.bf16.mxu0 0
    %3273 = vmatpush1.bf16.msra.mxu0 %v3261
    %3274 = vmatprep.subr.bf16.mxu0 0
    %3275 = vmatpush1.bf16.msra.mxu0 0
    %3276 = vmatprep.subr.bf16.mxu0 0
    %3277 = vmatpush1.bf16.msra.mxu0 0
    %3278 = vmatprep.subr.bf16.mxu0 0
    %3279 = vmatpush1.bf16.msra.mxu0 0
    %3280 = vmatprep.subr.bf16.mxu0 0
    %3281 = vmatpush1.bf16.msra.mxu0 0
    %3282 = vmatprep.subr.bf16.mxu0 0
    %3283 = vmatpush1.bf16.msra.mxu0 0
    %3284 = vmatprep.subr.bf16.mxu0 0
    %3285 = vmatpush1.bf16.msra.mxu0 0
    %3286 = vmatprep.subr.bf16.mxu0 0
    %3287 = vmatpush1.bf16.msra.mxu0 0
    %3288 = vmatprep.subr.bf16.mxu0 0
    %3289 = vmatpush1.bf16.msra.mxu0 0
    %3290 = vmatprep.subr.bf16.mxu0 0
    %3291 = vmatpush1.bf16.msra.mxu0 0
    %3292 = vmatprep.subr.bf16.mxu0 0
    %3293 = vmatpush1.bf16.msra.mxu0 0
    %3294 = vmatprep.subr.bf16.mxu0 0
    %3295 = vmatpush1.bf16.msra.mxu0 0
    %3296 = vmatprep.subr.bf16.mxu0 0
    %3297 = vmatpush1.bf16.msra.mxu0 0
    %3298 = vmatprep.subr.bf16.mxu0 0
    %3299 = vmatpush1.bf16.msra.mxu0 0
    %3300 = vmatprep.subr.bf16.mxu0 0
    %3301 = vmatpush1.bf16.msra.mxu0 0
    %3302 = vmatprep.mubr.bf16.mxu0 0
    %3303 = vmatmul.mubr.bf16.gmra.mrb[0].mxu0 %v3265
    %v3304 = vpop.f32.mrb[0].mxu0
    %v3305 = vadd.f32 0.0, %v3304
    %v3306 = vpop.f32.mrb[0].mxu0
    %v3307 = vpop.f32.mrb[0].mxu0
    %v3308 = vadd.f32 0.0, %v3307
    %v3309 = vpop.f32.mrb[0].mxu0
    %3310 = vmatprep.mubr.bf16.mxu0 0
    %3311 = vmatmul.mubr.bf16.gmra.mrb[0].mxu0 %v3268
    %v3312 = vpop.f32.mrb[0].mxu0
    %v3313 = vadd.f32 0.0, %v3312
    %v3314 = vpop.f32.mrb[0].mxu0
    %v3315 = vpop.f32.mrb[0].mxu0
    %v3316 = vadd.f32 0.0, %v3315
    %v3317 = vpop.f32.mrb[0].mxu0
    %3318 = vdwg.mxu0
    %v3320 = vsel %vm3091, %v3142, 0
    %v3323 = vsel %vm3091, %v3143, 0
    %3325 = vmatprep.subr.bf16.mxu0 0
    %3326 = vmatpush1.bf16.msra.mxu0 %v3140
    %3327 = vmatprep.subr.bf16.mxu0 0
    %3328 = vmatpush1.bf16.msra.mxu0 %v3141
    %3329 = vmatprep.subr.bf16.mxu0 0
    %3330 = vmatpush1.bf16.msra.mxu0 0
    %3331 = vmatprep.subr.bf16.mxu0 0
    %3332 = vmatpush1.bf16.msra.mxu0 0
    %3333 = vmatprep.subr.bf16.mxu0 0
    %3334 = vmatpush1.bf16.msra.mxu0 0
    %3335 = vmatprep.subr.bf16.mxu0 0
    %3336 = vmatpush1.bf16.msra.mxu0 0
    %3337 = vmatprep.subr.bf16.mxu0 0
    %3338 = vmatpush1.bf16.msra.mxu0 0
    %3339 = vmatprep.subr.bf16.mxu0 0
    %3340 = vmatpush1.bf16.msra.mxu0 0
    %3341 = vmatprep.subr.bf16.mxu0 0
    %3342 = vmatpush1.bf16.msra.mxu0 0
    %3343 = vmatprep.subr.bf16.mxu0 0
    %3344 = vmatpush1.bf16.msra.mxu0 0
    %3345 = vmatprep.subr.bf16.mxu0 0
    %3346 = vmatpush1.bf16.msra.mxu0 0
    %3347 = vmatprep.subr.bf16.mxu0 0
    %3348 = vmatpush1.bf16.msra.mxu0 0
    %3349 = vmatprep.subr.bf16.mxu0 0
    %3350 = vmatpush1.bf16.msra.mxu0 0
    %3351 = vmatprep.subr.bf16.mxu0 0
    %3352 = vmatpush1.bf16.msra.mxu0 0
    %3353 = vmatprep.subr.bf16.mxu0 0
    %3354 = vmatpush1.bf16.msra.mxu0 0
    %3355 = vmatprep.subr.bf16.mxu0 0
    %3356 = vmatpush1.bf16.msra.mxu0 0
    %3357 = vmatprep.mubr.bf16.mxu0 0
    %3358 = vmatmul.mubr.bf16.gmra.mrb[0].mxu0 %v3320
    %v3359 = vpop.f32.mrb[0].mxu0
    %v3360 = vadd.f32 %v3305, %v3359
    %v3361 = vpop.f32.mrb[0].mxu0
    %v3362 = vpop.f32.mrb[0].mxu0
    %v3363 = vadd.f32 %v3308, %v3362
    %v3364 = vpop.f32.mrb[0].mxu0
    %3365 = vmatprep.mubr.bf16.mxu0 0
    %3366 = vmatmul.mubr.bf16.gmra.mrb[0].mxu0 %v3323
    %v3367 = vpop.f32.mrb[0].mxu0
    %v3368 = vadd.f32 %v3313, %v3367
    %v3369 = vpop.f32.mrb[0].mxu0
    %v3370 = vpop.f32.mrb[0].mxu0
    %v3371 = vadd.f32 %v3316, %v3370
    %v3372 = vpop.f32.mrb[0].mxu0
    %3373 = vdwg.mxu0
    %s3374 = scalar_lea.vmem [#allocation32], 2
    %v3375 = vld [vmem:[%s3374] sm:$0x1]
    %v3377 = vlaneseq
    %v3378 = vshrl.u32 %v3377, 7
    %v3379 = vsub.s32 0, %v3378
    %v3380 = vrot.slane %v3375, %v3379
    %v3382 = vmul.f32 %v2769, %v3380
    %v3383 = vmul.f32 %v2772, %v3380
    %v3384 = vmul.f32 %v2777, %v3380
    %v3385 = vmul.f32 %v2780, %v3380
    %v3386 = vpack.c.bf16 %v3383, %v3382
    %v3387 = vpack.c.bf16 %v3385, %v3384
    %s3388 = scalar_lea.vmem %s47, 64
    %v3389 = vld [vmem:[%s3388] sm:$0xff]
    %v3390 = vld [vmem:[%s3388 + $0x8] sm:$0xff]
    %v3391 = vld [vmem:[%s3388 + $0x10] sm:$0xff]
    %v3392 = vld [vmem:[%s3388 + $0x18] sm:$0xff]
    %3393 = vmatprep.subr.bf16.mxu0 0
    %3394 = vmatpush1.bf16.xpose.msra.mxu0 %v3023
    %3395 = vmatprep.subr.bf16.mxu0 0
    %3396 = vmatpush1.bf16.xpose.msra.mxu0 %v3024
    %3397 = vmatprep.subr.bf16.mxu0 0
    %3398 = vmatpush1.bf16.xpose.msra.mxu0 0
    %3399 = vmatprep.subr.bf16.mxu0 0
    %3400 = vmatpush1.bf16.xpose.msra.mxu0 0
    %3401 = vmatprep.subr.bf16.mxu0 0
    %3402 = vmatpush1.bf16.xpose.msra.mxu0 0
    %3403 = vmatprep.subr.bf16.mxu0 0
    %3404 = vmatpush1.bf16.xpose.msra.mxu0 0
    %3405 = vmatprep.subr.bf16.mxu0 0
    %3406 = vmatpush1.bf16.xpose.msra.mxu0 0
    %3407 = vmatprep.subr.bf16.mxu0 0
    %3408 = vmatpush1.bf16.xpose.msra.mxu0 0
    %3409 = vmatprep.subr.bf16.mxu0 0
    %3410 = vmatpush1.bf16.xpose.msra.mxu0 0
    %3411 = vmatprep.subr.bf16.mxu0 0
    %3412 = vmatpush1.bf16.xpose.msra.mxu0 0
    %3413 = vmatprep.subr.bf16.mxu0 0
    %3414 = vmatpush1.bf16.xpose.msra.mxu0 0
    %3415 = vmatprep.subr.bf16.mxu0 0
    %3416 = vmatpush1.bf16.xpose.msra.mxu0 0
    %3417 = vmatprep.subr.bf16.mxu0 0
    %3418 = vmatpush1.bf16.xpose.msra.mxu0 0
    %3419 = vmatprep.subr.bf16.mxu0 0
    %3420 = vmatpush1.bf16.xpose.msra.mxu0 0
    %3421 = vmatprep.subr.bf16.mxu0 0
    %3422 = vmatpush1.bf16.xpose.msra.mxu0 0
    %3423 = vmatprep.subr.bf16.mxu0 0
    %3424 = vmatpush1.bf16.xpose.msra.mxu0 0
    %3425 = vmatprep.mubr.bf16.mxu0 0
    %3426 = vmatmul.mubr.bf16.gmra.mrb[0].mxu0 %v3386
    %v3427 = vpop.f32.mrb[0].mxu0
    %v3428 = vadd.f32 %v3389, %v3427
    %v3429 = vpop.f32.mrb[0].mxu0
    %v3430 = vpop.f32.mrb[0].mxu0
    %v3431 = vadd.f32 %v3390, %v3430
    %v3432 = vpop.f32.mrb[0].mxu0
    %3433 = vmatprep.mubr.bf16.mxu0 0
    %3434 = vmatmul.mubr.bf16.gmra.mrb[0].mxu0 %v3387
    %v3435 = vpop.f32.mrb[0].mxu0
    %v3436 = vadd.f32 %v3391, %v3435
    %v3437 = vpop.f32.mrb[0].mxu0
    %v3438 = vpop.f32.mrb[0].mxu0
    %v3439 = vadd.f32 %v3392, %v3438
    %v3440 = vpop.f32.mrb[0].mxu0
    %3441 = vdwg.mxu0
    %v3442 = vsel %vm3091, %v3428, -inf
    %3443 = vmax.xlane.f32.xlu0 %v3442
    %v3444 = vpop.xlane.xlu0 %3443
    %v3445 = vsel %vm3091, %v3431, -inf
    %3446 = vmax.xlane.f32.xlu0 %v3445
    %v3447 = vpop.xlane.xlu0 %3446
    %v3448 = vsel %vm3091, %v3436, -inf
    %3449 = vmax.xlane.f32.xlu0 %v3448
    %v3450 = vpop.xlane.xlu0 %3449
    %v3451 = vsel %vm3091, %v3439, -inf
    %3452 = vmax.xlane.f32.xlu0 %v3451
    %v3453 = vpop.xlane.xlu0 %3452
    %v3454 = vsub.f32 %v3428, %v3444
    %v3455 = vsub.f32 %v3431, %v3447
    %v3456 = vsub.f32 %v3436, %v3450
    %v3457 = vsub.f32 %v3439, %v3453
    %v3458 = vmul.f32 %v3454, 1.442695
    %v3459 = vpow.pop %v3458
    %v3460 = vmul.f32 %v3455, 1.442695
    %v3461 = vpow.pop %v3460
    %v3462 = vmul.f32 %v3456, 1.442695
    %v3463 = vpow.pop %v3462
    %v3464 = vmul.f32 %v3457, 1.442695
    %v3465 = vpow.pop %v3464
    %v3466 = vsel %vm3091, %v3459, 0.0
    %3467 = vadd.xlane.f32.xlu0 %v3466
    %v3468 = vpop.xlane.xlu0 %3467
    %v3469 = vsel %vm3091, %v3461, 0.0
    %3470 = vadd.xlane.f32.xlu0 %v3469
    %v3471 = vpop.xlane.xlu0 %3470
    %v3472 = vsel %vm3091, %v3463, 0.0
    %3473 = vadd.xlane.f32.xlu0 %v3472
    %v3474 = vpop.xlane.xlu0 %3473
    %v3475 = vsel %vm3091, %v3465, 0.0
    %3476 = vadd.xlane.f32.xlu0 %v3475
    %v3477 = vpop.xlane.xlu0 %3476
    %v3478 = vrcp.pop %v3468
    %v3479 = vrcp.pop %v3471
    %v3480 = vrcp.pop %v3474
    %v3481 = vrcp.pop %v3477
    %v3482 = vmul.f32 %v3459, %v3478
    %v3483 = vmul.f32 %v3461, %v3479
    %v3484 = vmul.f32 %v3463, %v3480
    %v3485 = vmul.f32 %v3465, %v3481
    %v3486 = vmul.f32 %v3009, %v3380
    %v3487 = vmul.f32 %v3012, %v3380
    %v3488 = vmul.f32 %v3017, %v3380
    %v3489 = vmul.f32 %v3020, %v3380
    %v3490 = vpack.c.bf16 %v3487, %v3486
    %v3491 = vpack.c.bf16 %v3489, %v3488
    %v3492 = vpack.c.bf16 %v3483, %v3482
    %v3493 = vpack.c.bf16 %v3485, %v3484
    %v3495 = vsel %vm3091, %v3492, 0
    %v3498 = vsel %vm3091, %v3493, 0
    %3500 = vmatprep.subr.bf16.mxu0 0
    %3501 = vmatpush1.bf16.msra.mxu0 %v3490
    %3502 = vmatprep.subr.bf16.mxu0 0
    %3503 = vmatpush1.bf16.msra.mxu0 %v3491
    %3504 = vmatprep.subr.bf16.mxu0 0
    %3505 = vmatpush1.bf16.msra.mxu0 0
    %3506 = vmatprep.subr.bf16.mxu0 0
    %3507 = vmatpush1.bf16.msra.mxu0 0
    %3508 = vmatprep.subr.bf16.mxu0 0
    %3509 = vmatpush1.bf16.msra.mxu0 0
    %3510 = vmatprep.subr.bf16.mxu0 0
    %3511 = vmatpush1.bf16.msra.mxu0 0
    %3512 = vmatprep.subr.bf16.mxu0 0
    %3513 = vmatpush1.bf16.msra.mxu0 0
    %3514 = vmatprep.subr.bf16.mxu0 0
    %3515 = vmatpush1.bf16.msra.mxu0 0
    %3516 = vmatprep.subr.bf16.mxu0 0
    %3517 = vmatpush1.bf16.msra.mxu0 0
    %3518 = vmatprep.subr.bf16.mxu0 0
    %3519 = vmatpush1.bf16.msra.mxu0 0
    %3520 = vmatprep.subr.bf16.mxu0 0
    %3521 = vmatpush1.bf16.msra.mxu0 0
    %3522 = vmatprep.subr.bf16.mxu0 0
    %3523 = vmatpush1.bf16.msra.mxu0 0
    %3524 = vmatprep.subr.bf16.mxu0 0
    %3525 = vmatpush1.bf16.msra.mxu0 0
    %3526 = vmatprep.subr.bf16.mxu0 0
    %3527 = vmatpush1.bf16.msra.mxu0 0
    %3528 = vmatprep.subr.bf16.mxu0 0
    %3529 = vmatpush1.bf16.msra.mxu0 0
    %3530 = vmatprep.subr.bf16.mxu0 0
    %3531 = vmatpush1.bf16.msra.mxu0 0
    %3532 = vmatprep.mubr.bf16.mxu0 0
    %3533 = vmatmul.mubr.bf16.gmra.mrb[0].mxu0 %v3495
    %v3534 = vpop.f32.mrb[0].mxu0
    %v3535 = vadd.f32 0.0, %v3534
    %v3536 = vpop.f32.mrb[0].mxu0
    %v3537 = vpop.f32.mrb[0].mxu0
    %v3538 = vadd.f32 0.0, %v3537
    %v3539 = vpop.f32.mrb[0].mxu0
    %3540 = vmatprep.mubr.bf16.mxu0 0
    %3541 = vmatmul.mubr.bf16.gmra.mrb[0].mxu0 %v3498
    %v3542 = vpop.f32.mrb[0].mxu0
    %v3543 = vadd.f32 0.0, %v3542
    %v3544 = vpop.f32.mrb[0].mxu0
    %v3545 = vpop.f32.mrb[0].mxu0
    %v3546 = vadd.f32 0.0, %v3545
    %v3547 = vpop.f32.mrb[0].mxu0
    %3548 = vdwg.mxu0
    %v3549 = vadd.f32 %v3360, %v3535
    %v3550 = vadd.f32 %v3363, %v3538
    %v3551 = vadd.f32 %v3368, %v3543
    %v3552 = vadd.f32 %v3371, %v3546
    %s3553 = scalar_lea.vmem [#allocation32], 3
    %v3554 = vld [vmem:[%s3553] sm:$0x1]
    %v3556 = vlaneseq
    %v3557 = vshrl.u32 %v3556, 7
    %v3558 = vsub.s32 0, %v3557
    %v3559 = vrot.slane %v3554, %v3558
    %v3561 = vmul.f32 %v2769, %v3559
    %v3562 = vmul.f32 %v2772, %v3559
    %v3563 = vmul.f32 %v2777, %v3559
    %v3564 = vmul.f32 %v2780, %v3559
    %v3565 = vpack.c.bf16 %v3562, %v3561
    %v3566 = vpack.c.bf16 %v3564, %v3563
    %s3567 = scalar_lea.vmem %s47, 96
    %v3568 = vld [vmem:[%s3567] sm:$0xff]
    %v3569 = vld [vmem:[%s3567 + $0x8] sm:$0xff]
    %v3570 = vld [vmem:[%s3567 + $0x10] sm:$0xff]
    %v3571 = vld [vmem:[%s3567 + $0x18] sm:$0xff]
    %3572 = vmatprep.subr.bf16.mxu0 0
    %3573 = vmatpush1.bf16.xpose.msra.mxu0 %v3023
    %3574 = vmatprep.subr.bf16.mxu0 0
    %3575 = vmatpush1.bf16.xpose.msra.mxu0 %v3024
    %3576 = vmatprep.subr.bf16.mxu0 0
    %3577 = vmatpush1.bf16.xpose.msra.mxu0 0
    %3578 = vmatprep.subr.bf16.mxu0 0
    %3579 = vmatpush1.bf16.xpose.msra.mxu0 0
    %3580 = vmatprep.subr.bf16.mxu0 0
    %3581 = vmatpush1.bf16.xpose.msra.mxu0 0
    %3582 = vmatprep.subr.bf16.mxu0 0
    %3583 = vmatpush1.bf16.xpose.msra.mxu0 0
    %3584 = vmatprep.subr.bf16.mxu0 0
    %3585 = vmatpush1.bf16.xpose.msra.mxu0 0
    %3586 = vmatprep.subr.bf16.mxu0 0
    %3587 = vmatpush1.bf16.xpose.msra.mxu0 0
    %3588 = vmatprep.subr.bf16.mxu0 0
    %3589 = vmatpush1.bf16.xpose.msra.mxu0 0
    %3590 = vmatprep.subr.bf16.mxu0 0
    %3591 = vmatpush1.bf16.xpose.msra.mxu0 0
    %3592 = vmatprep.subr.bf16.mxu0 0
    %3593 = vmatpush1.bf16.xpose.msra.mxu0 0
    %3594 = vmatprep.subr.bf16.mxu0 0
    %3595 = vmatpush1.bf16.xpose.msra.mxu0 0
    %3596 = vmatprep.subr.bf16.mxu0 0
    %3597 = vmatpush1.bf16.xpose.msra.mxu0 0
    %3598 = vmatprep.subr.bf16.mxu0 0
    %3599 = vmatpush1.bf16.xpose.msra.mxu0 0
    %3600 = vmatprep.subr.bf16.mxu0 0
    %3601 = vmatpush1.bf16.xpose.msra.mxu0 0
    %3602 = vmatprep.subr.bf16.mxu0 0
    %3603 = vmatpush1.bf16.xpose.msra.mxu0 0
    %3604 = vmatprep.mubr.bf16.mxu0 0
    %3605 = vmatmul.mubr.bf16.gmra.mrb[0].mxu0 %v3565
    %v3606 = vpop.f32.mrb[0].mxu0
    %v3607 = vadd.f32 %v3568, %v3606
    %v3608 = vpop.f32.mrb[0].mxu0
    %v3609 = vpop.f32.mrb[0].mxu0
    %v3610 = vadd.f32 %v3569, %v3609
    %v3611 = vpop.f32.mrb[0].mxu0
    %3612 = vmatprep.mubr.bf16.mxu0 0
    %3613 = vmatmul.mubr.bf16.gmra.mrb[0].mxu0 %v3566
    %v3614 = vpop.f32.mrb[0].mxu0
    %v3615 = vadd.f32 %v3570, %v3614
    %v3616 = vpop.f32.mrb[0].mxu0
    %v3617 = vpop.f32.mrb[0].mxu0
    %v3618 = vadd.f32 %v3571, %v3617
    %v3619 = vpop.f32.mrb[0].mxu0
    %3620 = vdwg.mxu0
    %v3621 = vsel %vm3091, %v3607, -inf
    %3622 = vmax.xlane.f32.xlu0 %v3621
    %v3623 = vpop.xlane.xlu0 %3622
    %v3624 = vsel %vm3091, %v3610, -inf
    %3625 = vmax.xlane.f32.xlu0 %v3624
    %v3626 = vpop.xlane.xlu0 %3625
    %v3627 = vsel %vm3091, %v3615, -inf
    %3628 = vmax.xlane.f32.xlu0 %v3627
    %v3629 = vpop.xlane.xlu0 %3628
    %v3630 = vsel %vm3091, %v3618, -inf
    %3631 = vmax.xlane.f32.xlu0 %v3630
    %v3632 = vpop.xlane.xlu0 %3631
    %v3633 = vsub.f32 %v3607, %v3623
    %v3634 = vsub.f32 %v3610, %v3626
    %v3635 = vsub.f32 %v3615, %v3629
    %v3636 = vsub.f32 %v3618, %v3632
    %v3637 = vmul.f32 %v3633, 1.442695
    %v3638 = vpow.pop %v3637
    %v3639 = vmul.f32 %v3634, 1.442695
    %v3640 = vpow.pop %v3639
    %v3641 = vmul.f32 %v3635, 1.442695
    %v3642 = vpow.pop %v3641
    %v3643 = vmul.f32 %v3636, 1.442695
    %v3644 = vpow.pop %v3643
    %v3645 = vsel %vm3091, %v3638, 0.0
    %3646 = vadd.xlane.f32.xlu0 %v3645
    %v3647 = vpop.xlane.xlu0 %3646
    %v3648 = vsel %vm3091, %v3640, 0.0
    %3649 = vadd.xlane.f32.xlu0 %v3648
    %v3650 = vpop.xlane.xlu0 %3649
    %v3651 = vsel %vm3091, %v3642, 0.0
    %3652 = vadd.xlane.f32.xlu0 %v3651
    %v3653 = vpop.xlane.xlu0 %3652
    %v3654 = vsel %vm3091, %v3644, 0.0
    %3655 = vadd.xlane.f32.xlu0 %v3654
    %v3656 = vpop.xlane.xlu0 %3655
    %v3657 = vrcp.pop %v3647
    %v3658 = vrcp.pop %v3650
    %v3659 = vrcp.pop %v3653
    %v3660 = vrcp.pop %v3656
    %v3661 = vmul.f32 %v3638, %v3657
    %v3662 = vmul.f32 %v3640, %v3658
    %v3663 = vmul.f32 %v3642, %v3659
    %v3664 = vmul.f32 %v3644, %v3660
    %v3665 = vmul.f32 %v3009, %v3559
    %v3666 = vmul.f32 %v3012, %v3559
    %v3667 = vmul.f32 %v3017, %v3559
    %v3668 = vmul.f32 %v3020, %v3559
    %v3669 = vpack.c.bf16 %v3666, %v3665
    %v3670 = vpack.c.bf16 %v3668, %v3667
    %v3671 = vpack.c.bf16 %v3662, %v3661
    %v3672 = vpack.c.bf16 %v3664, %v3663
    %v3674 = vsel %vm3091, %v3671, 0
    %v3677 = vsel %vm3091, %v3672, 0
    %3679 = vmatprep.subr.bf16.mxu0 0
    %3680 = vmatpush1.bf16.msra.mxu0 %v3669
    %3681 = vmatprep.subr.bf16.mxu0 0
    %3682 = vmatpush1.bf16.msra.mxu0 %v3670
    %3683 = vmatprep.subr.bf16.mxu0 0
    %3684 = vmatpush1.bf16.msra.mxu0 0
    %3685 = vmatprep.subr.bf16.mxu0 0
    %3686 = vmatpush1.bf16.msra.mxu0 0
    %3687 = vmatprep.subr.bf16.mxu0 0
    %3688 = vmatpush1.bf16.msra.mxu0 0
    %3689 = vmatprep.subr.bf16.mxu0 0
    %3690 = vmatpush1.bf16.msra.mxu0 0
    %3691 = vmatprep.subr.bf16.mxu0 0
    %3692 = vmatpush1.bf16.msra.mxu0 0
    %3693 = vmatprep.subr.bf16.mxu0 0
    %3694 = vmatpush1.bf16.msra.mxu0 0
    %3695 = vmatprep.subr.bf16.mxu0 0
    %3696 = vmatpush1.bf16.msra.mxu0 0
    %3697 = vmatprep.subr.bf16.mxu0 0
    %3698 = vmatpush1.bf16.msra.mxu0 0
    %3699 = vmatprep.subr.bf16.mxu0 0
    %3700 = vmatpush1.bf16.msra.mxu0 0
    %3701 = vmatprep.subr.bf16.mxu0 0
    %3702 = vmatpush1.bf16.msra.mxu0 0
    %3703 = vmatprep.subr.bf16.mxu0 0
    %3704 = vmatpush1.bf16.msra.mxu0 0
    %3705 = vmatprep.subr.bf16.mxu0 0
    %3706 = vmatpush1.bf16.msra.mxu0 0
    %3707 = vmatprep.subr.bf16.mxu0 0
    %3708 = vmatpush1.bf16.msra.mxu0 0
    %3709 = vmatprep.subr.bf16.mxu0 0
    %3710 = vmatpush1.bf16.msra.mxu0 0
    %3711 = vmatprep.mubr.bf16.mxu0 0
    %3712 = vmatmul.mubr.bf16.gmra.mrb[0].mxu0 %v3674
    %v3713 = vpop.f32.mrb[0].mxu0
    %v3714 = vadd.f32 0.0, %v3713
    %v3715 = vpop.f32.mrb[0].mxu0
    %v3716 = vpop.f32.mrb[0].mxu0
    %v3717 = vadd.f32 0.0, %v3716
    %v3718 = vpop.f32.mrb[0].mxu0
    %3719 = vmatprep.mubr.bf16.mxu0 0
    %3720 = vmatmul.mubr.bf16.gmra.mrb[0].mxu0 %v3677
    %v3721 = vpop.f32.mrb[0].mxu0
    %v3722 = vadd.f32 0.0, %v3721
    %v3723 = vpop.f32.mrb[0].mxu0
    %v3724 = vpop.f32.mrb[0].mxu0
    %v3725 = vadd.f32 0.0, %v3724
    %v3726 = vpop.f32.mrb[0].mxu0
    %3727 = vdwg.mxu0
    %v3728 = vadd.f32 %v3549, %v3714
    %v3729 = vadd.f32 %v3550, %v3717
    %v3730 = vadd.f32 %v3551, %v3722
    %v3731 = vadd.f32 %v3552, %v3725
    %v3732 = vpack.c.bf16 %v3729, %v3728
    %v3733 = vpack.c.bf16 %v3731, %v3730
    %v3734 = vld [vmem:[#allocation34] sm:$0xf]
    %v3735 = vld [vmem:[#allocation34 + $0x4] sm:$0xf]
    %v3736 = vld [vmem:[#allocation34 + $0x8] sm:$0xf]
    %v3737 = vld [vmem:[#allocation34 + $0xc] sm:$0xf]
    %v3738 = vld [vmem:[#allocation34 + $0x10] sm:$0xf]
    %v3739 = vld [vmem:[#allocation34 + $0x14] sm:$0xf]
    %v3740 = vld [vmem:[#allocation34 + $0x18] sm:$0xf]
    %v3741 = vld [vmem:[#allocation34 + $0x1c] sm:$0xf]
    %v3742 = vld [vmem:[#allocation34 + $0x20] sm:$0xf]
    %v3743 = vld [vmem:[#allocation34 + $0x24] sm:$0xf]
    %v3744 = vld [vmem:[#allocation34 + $0x28] sm:$0xf]
    %v3745 = vld [vmem:[#allocation34 + $0x2c] sm:$0xf]
    %v3746 = vld [vmem:[#allocation34 + $0x30] sm:$0xf]
    %v3747 = vld [vmem:[#allocation34 + $0x34] sm:$0xf]
    %v3748 = vld [vmem:[#allocation34 + $0x38] sm:$0xf]
    %v3749 = vld [vmem:[#allocation34 + $0x3c] sm:$0xf]
    %v3750 = vld [vmem:[#allocation35] sm:$0x1]
    %v3752 = vlaneseq
    %v3753 = vshrl.u32 %v3752, 7
    %v3754 = vsub.s32 0, %v3753
    %v3755 = vrot.slane %v3750, %v3754
    %v3773 = vunpack.c.l.b16 %v3734
    %v3774 = vunpack.c.l.b16 %v3735
    %v3775 = vunpack.c.l.b16 %v3736
    %v3776 = vunpack.c.l.b16 %v3737
    %v3777 = vunpack.c.l.b16 %v3738
    %v3778 = vunpack.c.l.b16 %v3739
    %v3779 = vunpack.c.l.b16 %v3740
    %v3780 = vunpack.c.l.b16 %v3741
    %v3781 = vunpack.c.l.b16 %v3742
    %v3782 = vunpack.c.l.b16 %v3743
    %v3783 = vunpack.c.l.b16 %v3744
    %v3784 = vunpack.c.l.b16 %v3745
    %v3785 = vunpack.c.l.b16 %v3746
    %v3786 = vunpack.c.l.b16 %v3747
    %v3787 = vunpack.c.l.b16 %v3748
    %v3788 = vunpack.c.l.b16 %v3749
    %v3789 = vpack.c.b16 %v3774, %v3773
    %v3790 = vpack.c.b16 %v3776, %v3775
    %v3791 = vpack.c.b16 %v3778, %v3777
    %v3792 = vpack.c.b16 %v3780, %v3779
    %v3793 = vpack.c.b16 %v3782, %v3781
    %v3794 = vpack.c.b16 %v3784, %v3783
    %v3795 = vpack.c.b16 %v3786, %v3785
    %v3796 = vpack.c.b16 %v3788, %v3787
    %3805 = vmatprep.subr.bf16.mxu0 0
    %3806 = vmatpush1.bf16.msra.mxu0 %v3789
    %3807 = vmatprep.subr.bf16.mxu0 0
    %3808 = vmatpush1.bf16.msra.mxu0 %v3790
    %3809 = vmatprep.subr.bf16.mxu0 0
    %3810 = vmatpush1.bf16.msra.mxu0 %v3791
    %3811 = vmatprep.subr.bf16.mxu0 0
    %3812 = vmatpush1.bf16.msra.mxu0 %v3792
    %3813 = vmatprep.subr.bf16.mxu0 0
    %3814 = vmatpush1.bf16.msra.mxu0 %v3793
    %3815 = vmatprep.subr.bf16.mxu0 0
    %3816 = vmatpush1.bf16.msra.mxu0 %v3794
    %3817 = vmatprep.subr.bf16.mxu0 0
    %3818 = vmatpush1.bf16.msra.mxu0 %v3795
    %3819 = vmatprep.subr.bf16.mxu0 0
    %3820 = vmatpush1.bf16.msra.mxu0 %v3796
    %3821 = vmatprep.subr.bf16.mxu0 0
    %3822 = vmatpush1.bf16.msra.mxu0 0
    %3823 = vmatprep.subr.bf16.mxu0 0
    %3824 = vmatpush1.bf16.msra.mxu0 0
    %3825 = vmatprep.subr.bf16.mxu0 0
    %3826 = vmatpush1.bf16.msra.mxu0 0
    %3827 = vmatprep.subr.bf16.mxu0 0
    %3828 = vmatpush1.bf16.msra.mxu0 0
    %3829 = vmatprep.subr.bf16.mxu0 0
    %3830 = vmatpush1.bf16.msra.mxu0 0
    %3831 = vmatprep.subr.bf16.mxu0 0
    %3832 = vmatpush1.bf16.msra.mxu0 0
    %3833 = vmatprep.subr.bf16.mxu0 0
    %3834 = vmatpush1.bf16.msra.mxu0 0
    %3835 = vmatprep.subr.bf16.mxu0 0
    %3836 = vmatpush1.bf16.msra.mxu0 0
    %3837 = vmatprep.mubr.bf16.mxu0 0
    %3838 = vmatmul.mubr.bf16.gmra.mrb[0].mxu0 %v3732
    %v3839 = vpop.f32.mrb[0].mxu0
    %v3840 = vadd.f32 %v3755, %v3839
    %v3841 = vpop.f32.mrb[0].mxu0
    %v3842 = vpop.f32.mrb[0].mxu0
    %v3843 = vadd.f32 %v3755, %v3842
    %v3844 = vpop.f32.mrb[0].mxu0
    %3845 = vmatprep.mubr.bf16.mxu0 0
    %3846 = vmatmul.mubr.bf16.gmra.mrb[0].mxu0 %v3733
    %v3847 = vpop.f32.mrb[0].mxu0
    %v3848 = vadd.f32 %v3755, %v3847
    %v3849 = vpop.f32.mrb[0].mxu0
    %v3850 = vpop.f32.mrb[0].mxu0
    %v3851 = vadd.f32 %v3755, %v3850
    %v3852 = vpop.f32.mrb[0].mxu0
    %3853 = vdwg.mxu0
    %v3854 = vadd.f32 %v2583, %v3840
    %v3855 = vadd.f32 %v2584, %v3843
    %v3856 = vadd.f32 %v2585, %v3848
    %v3857 = vadd.f32 %v2586, %v3851
    %v3858 = vld [vmem:[#allocation37] sm:$0x1]
    %v3859 = vld [vmem:[#allocation38] sm:$0x1]
    %3860 = vadd.xlane.f32.xlu0 %v3854
    %v3861 = vpop.xlane.xlu0 %3860
    %3862 = vadd.xlane.f32.xlu0 %v3855
    %v3863 = vpop.xlane.xlu0 %3862
    %3864 = vadd.xlane.f32.xlu0 %v3856
    %v3865 = vpop.xlane.xlu0 %3864
    %3866 = vadd.xlane.f32.xlu0 %v3857
    %v3867 = vpop.xlane.xlu0 %3866
    %v3868 = vmul.f32 %v3861, 0.0078125
    %v3869 = vmul.f32 %v3863, 0.0078125
    %v3870 = vmul.f32 %v3865, 0.0078125
    %v3871 = vmul.f32 %v3867, 0.0078125
    %v3872 = vmul.f32 %v3854, %v3854
    %v3873 = vmul.f32 %v3855, %v3855
    %v3874 = vmul.f32 %v3856, %v3856
    %v3875 = vmul.f32 %v3857, %v3857
    %3876 = vadd.xlane.f32.xlu0 %v3872
    %v3877 = vpop.xlane.xlu0 %3876
    %3878 = vadd.xlane.f32.xlu0 %v3873
    %v3879 = vpop.xlane.xlu0 %3878
    %3880 = vadd.xlane.f32.xlu0 %v3874
    %v3881 = vpop.xlane.xlu0 %3880
    %3882 = vadd.xlane.f32.xlu0 %v3875
    %v3883 = vpop.xlane.xlu0 %3882
    %v3884 = vmul.f32 %v3877, 0.0078125
    %v3885 = vmul.f32 %v3879, 0.0078125
    %v3886 = vmul.f32 %v3881, 0.0078125
    %v3887 = vmul.f32 %v3883, 0.0078125
    %v3888 = vmul.f32 %v3868, %v3868
    %v3889 = vmul.f32 %v3869, %v3869
    %v3890 = vmul.f32 %v3870, %v3870
    %v3891 = vmul.f32 %v3871, %v3871
    %v3892 = vsub.f32 %v3884, %v3888
    %v3893 = vsub.f32 %v3885, %v3889
    %v3894 = vsub.f32 %v3886, %v3890
    %v3895 = vsub.f32 %v3887, %v3891
    %v3896 = vsub.f32 %v3854, %v3868
    %v3897 = vsub.f32 %v3855, %v3869
    %v3898 = vsub.f32 %v3856, %v3870
    %v3899 = vsub.f32 %v3857, %v3871
    %v3900 = vadd.f32 %v3892, 1e-05
    %v3901 = vadd.f32 %v3893, 1e-05
    %v3902 = vadd.f32 %v3894, 1e-05
    %v3903 = vadd.f32 %v3895, 1e-05
    %v3904 = vrsqrt.pop %v3900
    %v3905 = vrsqrt.pop %v3901
    %v3906 = vrsqrt.pop %v3902
    %v3907 = vrsqrt.pop %v3903
    %v3908 = vmul.f32 %v3896, %v3904
    %v3909 = vmul.f32 %v3897, %v3905
    %v3910 = vmul.f32 %v3898, %v3906
    %v3911 = vmul.f32 %v3899, %v3907
    %v3913 = vlaneseq
    %v3914 = vshrl.u32 %v3913, 7
    %v3915 = vsub.s32 0, %v3914
    %v3916 = vrot.slane %v3858, %v3915
    %v3918 = vmul.f32 %v3908, %v3916
    %v3919 = vmul.f32 %v3909, %v3916
    %v3920 = vmul.f32 %v3910, %v3916
    %v3921 = vmul.f32 %v3911, %v3916
    %v3923 = vlaneseq
    %v3924 = vshrl.u32 %v3923, 7
    %v3925 = vsub.s32 0, %v3924
    %v3926 = vrot.slane %v3859, %v3925
    %v3928 = vadd.f32 %v3918, %v3926
    %v3929 = vadd.f32 %v3919, %v3926
    %v3930 = vadd.f32 %v3920, %v3926
    %v3931 = vadd.f32 %v3921, %v3926
    %v3932 = vpack.c.bf16 %v3929, %v3928
    %v3933 = vpack.c.bf16 %v3931, %v3930
    %v3934 = vld [vmem:[%s57] sm:$0xff]
    %v3935 = vld [vmem:[%s57 + $0x8] sm:$0xff]
    %v3936 = vld [vmem:[%s57 + $0x10] sm:$0xff]
    %v3937 = vld [vmem:[%s57 + $0x18] sm:$0xff]
    %v3938 = vld [vmem:[%s57 + $0x20] sm:$0xff]
    %v3939 = vld [vmem:[%s57 + $0x28] sm:$0xff]
    %v3940 = vld [vmem:[%s57 + $0x30] sm:$0xff]
    %v3941 = vld [vmem:[%s57 + $0x38] sm:$0xff]
    %v3942 = vld [vmem:[%s57 + $0x40] sm:$0xff]
    %v3943 = vld [vmem:[%s57 + $0x48] sm:$0xff]
    %v3944 = vld [vmem:[%s57 + $0x50] sm:$0xff]
    %v3945 = vld [vmem:[%s57 + $0x58] sm:$0xff]
    %v3946 = vld [vmem:[%s57 + $0x60] sm:$0xff]
    %v3947 = vld [vmem:[%s57 + $0x68] sm:$0xff]
    %v3948 = vld [vmem:[%s57 + $0x70] sm:$0xff]
    %v3949 = vld [vmem:[%s57 + $0x78] sm:$0xff]
    %v3950 = vld [vmem:[#allocation40] sm:$0x3]
    %v3952 = vlaneseq
    %v3953 = vshrl.u32 %v3952, 7
    %v3954 = vsub.s32 0, %v3953
    %v3955 = vrot.slane %v3950, %v3954
    %v3956 = vlaneseq
    %v3957 = vshrl.u32 %v3956, 7
    %v3958 = vsub.s32 1, %v3957
    %v3959 = vrot.slane %v3950, %v3958
    %v3978 = vunpack.c.l.b16 %v3934
    %v3979 = vunpack.c.h.b16 %v3934
    %v3980 = vunpack.c.l.b16 %v3935
    %v3981 = vunpack.c.h.b16 %v3935
    %v3982 = vunpack.c.l.b16 %v3936
    %v3983 = vunpack.c.h.b16 %v3936
    %v3984 = vunpack.c.l.b16 %v3937
    %v3985 = vunpack.c.h.b16 %v3937
    %v3986 = vunpack.c.l.b16 %v3938
    %v3987 = vunpack.c.h.b16 %v3938
    %v3988 = vunpack.c.l.b16 %v3939
    %v3989 = vunpack.c.h.b16 %v3939
    %v3990 = vunpack.c.l.b16 %v3940
    %v3991 = vunpack.c.h.b16 %v3940
    %v3992 = vunpack.c.l.b16 %v3941
    %v3993 = vunpack.c.h.b16 %v3941
    %v3994 = vunpack.c.l.b16 %v3942
    %v3995 = vunpack.c.h.b16 %v3942
    %v3996 = vunpack.c.l.b16 %v3943
    %v3997 = vunpack.c.h.b16 %v3943
    %v3998 = vunpack.c.l.b16 %v3944
    %v3999 = vunpack.c.h.b16 %v3944
    %v4000 = vunpack.c.l.b16 %v3945
    %v4001 = vunpack.c.h.b16 %v3945
    %v4002 = vunpack.c.l.b16 %v3946
    %v4003 = vunpack.c.h.b16 %v3946
    %v4004 = vunpack.c.l.b16 %v3947
    %v4005 = vunpack.c.h.b16 %v3947
    %v4006 = vunpack.c.l.b16 %v3948
    %v4007 = vunpack.c.h.b16 %v3948
    %v4008 = vunpack.c.l.b16 %v3949
    %v4009 = vunpack.c.h.b16 %v3949
    %v4010 = vpack.c.b16 %v3980, %v3978
    %v4011 = vpack.c.b16 %v3981, %v3979
    %v4012 = vpack.c.b16 %v3984, %v3982
    %v4013 = vpack.c.b16 %v3985, %v3983
    %v4014 = vpack.c.b16 %v3988, %v3986
    %v4015 = vpack.c.b16 %v3989, %v3987
    %v4016 = vpack.c.b16 %v3992, %v3990
    %v4017 = vpack.c.b16 %v3993, %v3991
    %v4018 = vpack.c.b16 %v3996, %v3994
    %v4019 = vpack.c.b16 %v3997, %v3995
    %v4020 = vpack.c.b16 %v4000, %v3998
    %v4021 = vpack.c.b16 %v4001, %v3999
    %v4022 = vpack.c.b16 %v4004, %v4002
    %v4023 = vpack.c.b16 %v4005, %v4003
    %v4024 = vpack.c.b16 %v4008, %v4006
    %v4025 = vpack.c.b16 %v4009, %v4007
    %4042 = vmatprep.subr.bf16.mxu0 %v4011
    %4043 = vmatpush1.bf16.msra.mxu0 %v4010
    %4044 = vmatprep.subr.bf16.mxu0 %v4013
    %4045 = vmatpush1.bf16.msra.mxu0 %v4012
    %4046 = vmatprep.subr.bf16.mxu0 %v4015
    %4047 = vmatpush1.bf16.msra.mxu0 %v4014
    %4048 = vmatprep.subr.bf16.mxu0 %v4017
    %4049 = vmatpush1.bf16.msra.mxu0 %v4016
    %4050 = vmatprep.subr.bf16.mxu0 %v4019
    %4051 = vmatpush1.bf16.msra.mxu0 %v4018
    %4052 = vmatprep.subr.bf16.mxu0 %v4021
    %4053 = vmatpush1.bf16.msra.mxu0 %v4020
    %4054 = vmatprep.subr.bf16.mxu0 %v4023
    %4055 = vmatpush1.bf16.msra.mxu0 %v4022
    %4056 = vmatprep.subr.bf16.mxu0 %v4025
    %4057 = vmatpush1.bf16.msra.mxu0 %v4024
    %4058 = vmatprep.subr.bf16.mxu0 0
    %4059 = vmatpush1.bf16.msra.mxu0 0
    %4060 = vmatprep.subr.bf16.mxu0 0
    %4061 = vmatpush1.bf16.msra.mxu0 0
    %4062 = vmatprep.subr.bf16.mxu0 0
    %4063 = vmatpush1.bf16.msra.mxu0 0
    %4064 = vmatprep.subr.bf16.mxu0 0
    %4065 = vmatpush1.bf16.msra.mxu0 0
    %4066 = vmatprep.subr.bf16.mxu0 0
    %4067 = vmatpush1.bf16.msra.mxu0 0
    %4068 = vmatprep.subr.bf16.mxu0 0
    %4069 = vmatpush1.bf16.msra.mxu0 0
    %4070 = vmatprep.subr.bf16.mxu0 0
    %4071 = vmatpush1.bf16.msra.mxu0 0
    %4072 = vmatprep.subr.bf16.mxu0 0
    %4073 = vmatpush1.bf16.msra.mxu0 0
    %4074 = vmatprep.mubr.bf16.mxu0 0
    %4075 = vmatmul.mubr.bf16.gmra.mrb[0].mxu0 %v3932
    %v4076 = vpop.f32.mrb[0].mxu0
    %v4077 = vadd.f32 %v3955, %v4076
    %v4078 = vpop.f32.mrb[0].mxu0
    %v4079 = vadd.f32 %v3959, %v4078
    %v4080 = vpop.f32.mrb[0].mxu0
    %v4081 = vadd.f32 %v3955, %v4080
    %v4082 = vpop.f32.mrb[0].mxu0
    %v4083 = vadd.f32 %v3959, %v4082
    %4084 = vmatprep.mubr.bf16.mxu0 0
    %4085 = vmatmul.mubr.bf16.gmra.mrb[0].mxu0 %v3933
    %v4086 = vpop.f32.mrb[0].mxu0
    %v4087 = vadd.f32 %v3955, %v4086
    %v4088 = vpop.f32.mrb[0].mxu0
    %v4089 = vadd.f32 %v3959, %v4088
    %v4090 = vpop.f32.mrb[0].mxu0
    %v4091 = vadd.f32 %v3955, %v4090
    %v4092 = vpop.f32.mrb[0].mxu0
    %v4093 = vadd.f32 %v3959, %v4092
    %4094 = vdwg.mxu0
    %v4095 = vmul.f32 %v4077, %v4077
    %v4096 = vmul.f32 %v4079, %v4079
    %v4097 = vmul.f32 %v4081, %v4081
    %v4098 = vmul.f32 %v4083, %v4083
    %v4099 = vmul.f32 %v4087, %v4087
    %v4100 = vmul.f32 %v4089, %v4089
    %v4101 = vmul.f32 %v4091, %v4091
    %v4102 = vmul.f32 %v4093, %v4093
    %v4103 = vmul.f32 %v4077, %v4095
    %v4104 = vmul.f32 %v4079, %v4096
    %v4105 = vmul.f32 %v4081, %v4097
    %v4106 = vmul.f32 %v4083, %v4098
    %v4107 = vmul.f32 %v4087, %v4099
    %v4108 = vmul.f32 %v4089, %v4100
    %v4109 = vmul.f32 %v4091, %v4101
    %v4110 = vmul.f32 %v4093, %v4102
    %v4111 = vmul.f32 %v4103, 0.044715
    %v4112 = vmul.f32 %v4104, 0.044715
    %v4113 = vmul.f32 %v4105, 0.044715
    %v4114 = vmul.f32 %v4106, 0.044715
    %v4115 = vmul.f32 %v4107, 0.044715
    %v4116 = vmul.f32 %v4108, 0.044715
    %v4117 = vmul.f32 %v4109, 0.044715
    %v4118 = vmul.f32 %v4110, 0.044715
    %v4119 = vadd.f32 %v4077, %v4111
    %v4120 = vadd.f32 %v4079, %v4112
    %v4121 = vadd.f32 %v4081, %v4113
    %v4122 = vadd.f32 %v4083, %v4114
    %v4123 = vadd.f32 %v4087, %v4115
    %v4124 = vadd.f32 %v4089, %v4116
    %v4125 = vadd.f32 %v4091, %v4117
    %v4126 = vadd.f32 %v4093, %v4118
    %v4127 = vmul.f32 %v4119, 0.7978846
    %v4128 = vmul.f32 %v4120, 0.7978846
    %v4129 = vmul.f32 %v4121, 0.7978846
    %v4130 = vmul.f32 %v4122, 0.7978846
    %v4131 = vmul.f32 %v4123, 0.7978846
    %v4132 = vmul.f32 %v4124, 0.7978846
    %v4133 = vmul.f32 %v4125, 0.7978846
    %v4134 = vmul.f32 %v4126, 0.7978846
    %v4135 = vtanh.pop %v4127
    %v4136 = vtanh.pop %v4128
    %v4137 = vtanh.pop %v4129
    %v4138 = vtanh.pop %v4130
    %v4139 = vtanh.pop %v4131
    %v4140 = vtanh.pop %v4132
    %v4141 = vtanh.pop %v4133
    %v4142 = vtanh.pop %v4134
    %v4143 = vadd.f32 %v4135, 1.0
    %v4144 = vadd.f32 %v4136, 1.0
    %v4145 = vadd.f32 %v4137, 1.0
    %v4146 = vadd.f32 %v4138, 1.0
    %v4147 = vadd.f32 %v4139, 1.0
    %v4148 = vadd.f32 %v4140, 1.0
    %v4149 = vadd.f32 %v4141, 1.0
    %v4150 = vadd.f32 %v4142, 1.0
    %v4151 = vmul.f32 %v4143, 0.5
    %v4152 = vmul.f32 %v4144, 0.5
    %v4153 = vmul.f32 %v4145, 0.5
    %v4154 = vmul.f32 %v4146, 0.5
    %v4155 = vmul.f32 %v4147, 0.5
    %v4156 = vmul.f32 %v4148, 0.5
    %v4157 = vmul.f32 %v4149, 0.5
    %v4158 = vmul.f32 %v4150, 0.5
    %v4159 = vmul.f32 %v4077, %v4151
    %v4160 = vmul.f32 %v4079, %v4152
    %v4161 = vmul.f32 %v4081, %v4153
    %v4162 = vmul.f32 %v4083, %v4154
    %v4163 = vmul.f32 %v4087, %v4155
    %v4164 = vmul.f32 %v4089, %v4156
    %v4165 = vmul.f32 %v4091, %v4157
    %v4166 = vmul.f32 %v4093, %v4158
    %v4167 = vpack.c.bf16 %v4161, %v4159
    %v4168 = vpack.c.bf16 %v4162, %v4160
    %v4169 = vpack.c.bf16 %v4165, %v4163
    %v4170 = vpack.c.bf16 %v4166, %v4164
    %v4171 = vld [vmem:[#allocation41] sm:$0xf]
    %v4172 = vld [vmem:[#allocation41 + $0x4] sm:$0xf]
    %v4173 = vld [vmem:[#allocation41 + $0x8] sm:$0xf]
    %v4174 = vld [vmem:[#allocation41 + $0xc] sm:$0xf]
    %v4175 = vld [vmem:[#allocation41 + $0x10] sm:$0xf]
    %v4176 = vld [vmem:[#allocation41 + $0x14] sm:$0xf]
    %v4177 = vld [vmem:[#allocation41 + $0x18] sm:$0xf]
    %v4178 = vld [vmem:[#allocation41 + $0x1c] sm:$0xf]
    %v4179 = vld [vmem:[#allocation41 + $0x20] sm:$0xf]
    %v4180 = vld [vmem:[#allocation41 + $0x24] sm:$0xf]
    %v4181 = vld [vmem:[#allocation41 + $0x28] sm:$0xf]
    %v4182 = vld [vmem:[#allocation41 + $0x2c] sm:$0xf]
    %v4183 = vld [vmem:[#allocation41 + $0x30] sm:$0xf]
    %v4184 = vld [vmem:[#allocation41 + $0x34] sm:$0xf]
    %v4185 = vld [vmem:[#allocation41 + $0x38] sm:$0xf]
    %v4186 = vld [vmem:[#allocation41 + $0x3c] sm:$0xf]
    %v4187 = vld [vmem:[#allocation41 + $0x40] sm:$0xf]
    %v4188 = vld [vmem:[#allocation41 + $0x44] sm:$0xf]
    %v4189 = vld [vmem:[#allocation41 + $0x48] sm:$0xf]
    %v4190 = vld [vmem:[#allocation41 + $0x4c] sm:$0xf]
    %v4191 = vld [vmem:[#allocation41 + $0x50] sm:$0xf]
    %v4192 = vld [vmem:[#allocation41 + $0x54] sm:$0xf]
    %v4193 = vld [vmem:[#allocation41 + $0x58] sm:$0xf]
    %v4194 = vld [vmem:[#allocation41 + $0x5c] sm:$0xf]
    %v4195 = vld [vmem:[#allocation41 + $0x60] sm:$0xf]
    %v4196 = vld [vmem:[#allocation41 + $0x64] sm:$0xf]
    %v4197 = vld [vmem:[#allocation41 + $0x68] sm:$0xf]
    %v4198 = vld [vmem:[#allocation41 + $0x6c] sm:$0xf]
    %v4199 = vld [vmem:[#allocation41 + $0x70] sm:$0xf]
    %v4200 = vld [vmem:[#allocation41 + $0x74] sm:$0xf]
    %v4201 = vld [vmem:[#allocation41 + $0x78] sm:$0xf]
    %v4202 = vld [vmem:[#allocation41 + $0x7c] sm:$0xf]
    %v4203 = vld [vmem:[#allocation43] sm:$0x1]
    %v4205 = vlaneseq
    %v4206 = vshrl.u32 %v4205, 7
    %v4207 = vsub.s32 0, %v4206
    %v4208 = vrot.slane %v4203, %v4207
    %v4242 = vunpack.c.l.b16 %v4171
    %v4243 = vunpack.c.l.b16 %v4172
    %v4244 = vunpack.c.l.b16 %v4173
    %v4245 = vunpack.c.l.b16 %v4174
    %v4246 = vunpack.c.l.b16 %v4175
    %v4247 = vunpack.c.l.b16 %v4176
    %v4248 = vunpack.c.l.b16 %v4177
    %v4249 = vunpack.c.l.b16 %v4178
    %v4250 = vunpack.c.l.b16 %v4179
    %v4251 = vunpack.c.l.b16 %v4180
    %v4252 = vunpack.c.l.b16 %v4181
    %v4253 = vunpack.c.l.b16 %v4182
    %v4254 = vunpack.c.l.b16 %v4183
    %v4255 = vunpack.c.l.b16 %v4184
    %v4256 = vunpack.c.l.b16 %v4185
    %v4257 = vunpack.c.l.b16 %v4186
    %v4258 = vunpack.c.l.b16 %v4187
    %v4259 = vunpack.c.l.b16 %v4188
    %v4260 = vunpack.c.l.b16 %v4189
    %v4261 = vunpack.c.l.b16 %v4190
    %v4262 = vunpack.c.l.b16 %v4191
    %v4263 = vunpack.c.l.b16 %v4192
    %v4264 = vunpack.c.l.b16 %v4193
    %v4265 = vunpack.c.l.b16 %v4194
    %v4266 = vunpack.c.l.b16 %v4195
    %v4267 = vunpack.c.l.b16 %v4196
    %v4268 = vunpack.c.l.b16 %v4197
    %v4269 = vunpack.c.l.b16 %v4198
    %v4270 = vunpack.c.l.b16 %v4199
    %v4271 = vunpack.c.l.b16 %v4200
    %v4272 = vunpack.c.l.b16 %v4201
    %v4273 = vunpack.c.l.b16 %v4202
    %v4274 = vpack.c.b16 %v4243, %v4242
    %v4275 = vpack.c.b16 %v4245, %v4244
    %v4276 = vpack.c.b16 %v4247, %v4246
    %v4277 = vpack.c.b16 %v4249, %v4248
    %v4278 = vpack.c.b16 %v4251, %v4250
    %v4279 = vpack.c.b16 %v4253, %v4252
    %v4280 = vpack.c.b16 %v4255, %v4254
    %v4281 = vpack.c.b16 %v4257, %v4256
    %v4282 = vpack.c.b16 %v4259, %v4258
    %v4283 = vpack.c.b16 %v4261, %v4260
    %v4284 = vpack.c.b16 %v4263, %v4262
    %v4285 = vpack.c.b16 %v4265, %v4264
    %v4286 = vpack.c.b16 %v4267, %v4266
    %v4287 = vpack.c.b16 %v4269, %v4268
    %v4288 = vpack.c.b16 %v4271, %v4270
    %v4289 = vpack.c.b16 %v4273, %v4272
    %4306 = vmatprep.subr.bf16.mxu0 0
    %4307 = vmatpush1.bf16.msra.mxu0 %v4274
    %4308 = vmatprep.subr.bf16.mxu0 0
    %4309 = vmatpush1.bf16.msra.mxu0 %v4275
    %4310 = vmatprep.subr.bf16.mxu0 0
    %4311 = vmatpush1.bf16.msra.mxu0 %v4276
    %4312 = vmatprep.subr.bf16.mxu0 0
    %4313 = vmatpush1.bf16.msra.mxu0 %v4277
    %4314 = vmatprep.subr.bf16.mxu0 0
    %4315 = vmatpush1.bf16.msra.mxu0 %v4278
    %4316 = vmatprep.subr.bf16.mxu0 0
    %4317 = vmatpush1.bf16.msra.mxu0 %v4279
    %4318 = vmatprep.subr.bf16.mxu0 0
    %4319 = vmatpush1.bf16.msra.mxu0 %v4280
    %4320 = vmatprep.subr.bf16.mxu0 0
    %4321 = vmatpush1.bf16.msra.mxu0 %v4281
    %4322 = vmatprep.subr.bf16.mxu0 0
    %4323 = vmatpush1.bf16.msra.mxu0 %v4282
    %4324 = vmatprep.subr.bf16.mxu0 0
    %4325 = vmatpush1.bf16.msra.mxu0 %v4283
    %4326 = vmatprep.subr.bf16.mxu0 0
    %4327 = vmatpush1.bf16.msra.mxu0 %v4284
    %4328 = vmatprep.subr.bf16.mxu0 0
    %4329 = vmatpush1.bf16.msra.mxu0 %v4285
    %4330 = vmatprep.subr.bf16.mxu0 0
    %4331 = vmatpush1.bf16.msra.mxu0 %v4286
    %4332 = vmatprep.subr.bf16.mxu0 0
    %4333 = vmatpush1.bf16.msra.mxu0 %v4287
    %4334 = vmatprep.subr.bf16.mxu0 0
    %4335 = vmatpush1.bf16.msra.mxu0 %v4288
    %4336 = vmatprep.subr.bf16.mxu0 0
    %4337 = vmatpush1.bf16.msra.mxu0 %v4289
    %4338 = vmatprep.mubr.bf16.mxu0 %v4168
    %4339 = vmatmul.mubr.bf16.gmra.mrb[0].mxu0 %v4167
    %v4340 = vpop.f32.mrb[0].mxu0
    %v4341 = vadd.f32 %v4208, %v4340
    %v4342 = vpop.f32.mrb[0].mxu0
    %v4343 = vpop.f32.mrb[0].mxu0
    %v4344 = vadd.f32 %v4208, %v4343
    %v4345 = vpop.f32.mrb[0].mxu0
    %4346 = vmatprep.mubr.bf16.mxu0 %v4170
    %4347 = vmatmul.mubr.bf16.gmra.mrb[0].mxu0 %v4169
    %v4348 = vpop.f32.mrb[0].mxu0
    %v4349 = vadd.f32 %v4208, %v4348
    %v4350 = vpop.f32.mrb[0].mxu0
    %v4351 = vpop.f32.mrb[0].mxu0
    %v4352 = vadd.f32 %v4208, %v4351
    %v4353 = vpop.f32.mrb[0].mxu0
    %4354 = vdwg.mxu0
    %v4355 = vadd.f32 %v3854, %v4341
    %v4356 = vadd.f32 %v3855, %v4344
    %v4357 = vadd.f32 %v3856, %v4349
    %v4358 = vadd.f32 %v3857, %v4352
    %v4359 = vld [vmem:[#allocation44] sm:$0x1]
    %v4360 = vld [vmem:[#allocation46] sm:$0x1]
    %4361 = vadd.xlane.f32.xlu0 %v4355
    %v4362 = vpop.xlane.xlu0 %4361
    %4363 = vadd.xlane.f32.xlu0 %v4356
    %v4364 = vpop.xlane.xlu0 %4363
    %4365 = vadd.xlane.f32.xlu0 %v4357
    %v4366 = vpop.xlane.xlu0 %4365
    %4367 = vadd.xlane.f32.xlu0 %v4358
    %v4368 = vpop.xlane.xlu0 %4367
    %v4369 = vmul.f32 %v4362, 0.0078125
    %v4370 = vmul.f32 %v4364, 0.0078125
    %v4371 = vmul.f32 %v4366, 0.0078125
    %v4372 = vmul.f32 %v4368, 0.0078125
    %v4373 = vmul.f32 %v4355, %v4355
    %v4374 = vmul.f32 %v4356, %v4356
    %v4375 = vmul.f32 %v4357, %v4357
    %v4376 = vmul.f32 %v4358, %v4358
    %4377 = vadd.xlane.f32.xlu0 %v4373
    %v4378 = vpop.xlane.xlu0 %4377
    %4379 = vadd.xlane.f32.xlu0 %v4374
    %v4380 = vpop.xlane.xlu0 %4379
    %4381 = vadd.xlane.f32.xlu0 %v4375
    %v4382 = vpop.xlane.xlu0 %4381
    %4383 = vadd.xlane.f32.xlu0 %v4376
    %v4384 = vpop.xlane.xlu0 %4383
    %v4385 = vmul.f32 %v4378, 0.0078125
    %v4386 = vmul.f32 %v4380, 0.0078125
    %v4387 = vmul.f32 %v4382, 0.0078125
    %v4388 = vmul.f32 %v4384, 0.0078125
    %v4389 = vmul.f32 %v4369, %v4369
    %v4390 = vmul.f32 %v4370, %v4370
    %v4391 = vmul.f32 %v4371, %v4371
    %v4392 = vmul.f32 %v4372, %v4372
    %v4393 = vsub.f32 %v4385, %v4389
    %v4394 = vsub.f32 %v4386, %v4390
    %v4395 = vsub.f32 %v4387, %v4391
    %v4396 = vsub.f32 %v4388, %v4392
    %v4397 = vsub.f32 %v4355, %v4369
    %v4398 = vsub.f32 %v4356, %v4370
    %v4399 = vsub.f32 %v4357, %v4371
    %v4400 = vsub.f32 %v4358, %v4372
    %v4401 = vadd.f32 %v4393, 1e-05
    %v4402 = vadd.f32 %v4394, 1e-05
    %v4403 = vadd.f32 %v4395, 1e-05
    %v4404 = vadd.f32 %v4396, 1e-05
    %v4405 = vrsqrt.pop %v4401
    %v4406 = vrsqrt.pop %v4402
    %v4407 = vrsqrt.pop %v4403
    %v4408 = vrsqrt.pop %v4404
    %v4409 = vmul.f32 %v4397, %v4405
    %v4410 = vmul.f32 %v4398, %v4406
    %v4411 = vmul.f32 %v4399, %v4407
    %v4412 = vmul.f32 %v4400, %v4408
    %v4414 = vlaneseq
    %v4415 = vshrl.u32 %v4414, 7
    %v4416 = vsub.s32 0, %v4415
    %v4417 = vrot.slane %v4359, %v4416
    %v4419 = vmul.f32 %v4409, %v4417
    %v4420 = vmul.f32 %v4410, %v4417
    %v4421 = vmul.f32 %v4411, %v4417
    %v4422 = vmul.f32 %v4412, %v4417
    %v4424 = vlaneseq
    %v4425 = vshrl.u32 %v4424, 7
    %v4426 = vsub.s32 0, %v4425
    %v4427 = vrot.slane %v4360, %v4426
    %v4429 = vadd.f32 %v4419, %v4427
    %v4430 = vadd.f32 %v4420, %v4427
    %v4431 = vadd.f32 %v4421, %v4427
    %v4432 = vadd.f32 %v4422, %v4427
    %v4433 = vld [vmem:[#allocation47] sm:$0x1]
    %v4434 = vpack.c.bf16 %v4430, %v4429
    %v4435 = vpack.c.bf16 %v4432, %v4431
    %v4437 = vsel %vm3091, %v4433, 0
    %4439 = vmatprep.subr.bf16.mxu0 0
    %4440 = vmatpush1.bf16.msra.mxu0 %v4434
    %4441 = vmatprep.subr.bf16.mxu0 0
    %4442 = vmatpush1.bf16.msra.mxu0 %v4435
    %4443 = vmatprep.subr.bf16.mxu0 0
    %4444 = vmatpush1.bf16.msra.mxu0 0
    %4445 = vmatprep.subr.bf16.mxu0 0
    %4446 = vmatpush1.bf16.msra.mxu0 0
    %4447 = vmatprep.subr.bf16.mxu0 0
    %4448 = vmatpush1.bf16.msra.mxu0 0
    %4449 = vmatprep.subr.bf16.mxu0 0
    %4450 = vmatpush1.bf16.msra.mxu0 0
    %4451 = vmatprep.subr.bf16.mxu0 0
    %4452 = vmatpush1.bf16.msra.mxu0 0
    %4453 = vmatprep.subr.bf16.mxu0 0
    %4454 = vmatpush1.bf16.msra.mxu0 0
    %4455 = vmatprep.subr.bf16.mxu0 0
    %4456 = vmatpush1.bf16.msra.mxu0 0
    %4457 = vmatprep.subr.bf16.mxu0 0
    %4458 = vmatpush1.bf16.msra.mxu0 0
    %4459 = vmatprep.subr.bf16.mxu0 0
    %4460 = vmatpush1.bf16.msra.mxu0 0
    %4461 = vmatprep.subr.bf16.mxu0 0
    %4462 = vmatpush1.bf16.msra.mxu0 0
    %4463 = vmatprep.subr.bf16.mxu0 0
    %4464 = vmatpush1.bf16.msra.mxu0 0
    %4465 = vmatprep.subr.bf16.mxu0 0
    %4466 = vmatpush1.bf16.msra.mxu0 0
    %4467 = vmatprep.subr.bf16.mxu0 0
    %4468 = vmatpush1.bf16.msra.mxu0 0
    %4469 = vmatprep.subr.bf16.mxu0 0
    %4470 = vmatpush1.bf16.msra.mxu0 0
    %4471 = vmatprep.mubr.bf16.mxu0 0
    %4472 = vmatmul.mubr.bf16.gmra.mrb[0].mxu0 %v4437
    %v4473 = vpop.f32.mrb[0].mxu0
    %v4474 = vadd.f32 0.0, %v4473
    %v4475 = vpop.f32.mrb[0].mxu0
    %v4476 = vpop.f32.mrb[0].mxu0
    %v4477 = vpop.f32.mrb[0].mxu0
    %4478 = vdwg.mxu0
    %v4479 = vpack.c.bf16 %v4474, %v4474
    %v4480 = vld [vmem:[%s71] sm:$0xf]
    %v4481 = vld [vmem:[%s71 + $0x4] sm:$0xf]
    %v4482 = vld [vmem:[%s71 + $0x8] sm:$0xf]
    %v4483 = vld [vmem:[%s71 + $0xc] sm:$0xf]
    %v4484 = vld [vmem:[%s71 + $0x10] sm:$0xf]
    %v4485 = vld [vmem:[%s71 + $0x14] sm:$0xf]
    %v4486 = vld [vmem:[%s71 + $0x18] sm:$0xf]
    %v4487 = vld [vmem:[%s71 + $0x1c] sm:$0xf]
    %v4488 = vld [vmem:[%s71 + $0x20] sm:$0xf]
    %v4489 = vld [vmem:[%s71 + $0x24] sm:$0xf]
    %v4490 = vld [vmem:[%s71 + $0x28] sm:$0xf]
    %v4491 = vld [vmem:[%s71 + $0x2c] sm:$0xf]
    %v4492 = vld [vmem:[%s71 + $0x30] sm:$0xf]
    %v4493 = vld [vmem:[%s71 + $0x34] sm:$0xf]
    %v4494 = vld [vmem:[%s71 + $0x38] sm:$0xf]
    %v4495 = vld [vmem:[%s71 + $0x3c] sm:$0xf]
    %v4496 = vld [vmem:[#allocation2] sm:$0x1]
    %v4498 = vlaneseq
    %v4499 = vshrl.u32 %v4498, 7
    %v4500 = vsub.s32 0, %v4499
    %v4501 = vrot.slane %v4496, %v4500
    %v4519 = vunpack.c.l.b16 %v4480
    %v4520 = vunpack.c.l.b16 %v4481
    %v4521 = vunpack.c.l.b16 %v4482
    %v4522 = vunpack.c.l.b16 %v4483
    %v4523 = vunpack.c.l.b16 %v4484
    %v4524 = vunpack.c.l.b16 %v4485
    %v4525 = vunpack.c.l.b16 %v4486
    %v4526 = vunpack.c.l.b16 %v4487
    %v4527 = vunpack.c.l.b16 %v4488
    %v4528 = vunpack.c.l.b16 %v4489
    %v4529 = vunpack.c.l.b16 %v4490
    %v4530 = vunpack.c.l.b16 %v4491
    %v4531 = vunpack.c.l.b16 %v4492
    %v4532 = vunpack.c.l.b16 %v4493
    %v4533 = vunpack.c.l.b16 %v4494
    %v4534 = vunpack.c.l.b16 %v4495
    %v4535 = vpack.c.b16 %v4520, %v4519
    %v4536 = vpack.c.b16 %v4522, %v4521
    %v4537 = vpack.c.b16 %v4524, %v4523
    %v4538 = vpack.c.b16 %v4526, %v4525
    %v4539 = vpack.c.b16 %v4528, %v4527
    %v4540 = vpack.c.b16 %v4530, %v4529
    %v4541 = vpack.c.b16 %v4532, %v4531
    %v4542 = vpack.c.b16 %v4534, %v4533
    %4551 = vmatprep.subr.bf16.mxu0 0
    %4552 = vmatpush1.bf16.msra.mxu0 %v4535
    %4553 = vmatprep.subr.bf16.mxu0 0
    %4554 = vmatpush1.bf16.msra.mxu0 %v4536
    %4555 = vmatprep.subr.bf16.mxu0 0
    %4556 = vmatpush1.bf16.msra.mxu0 %v4537
    %4557 = vmatprep.subr.bf16.mxu0 0
    %4558 = vmatpush1.bf16.msra.mxu0 %v4538
    %4559 = vmatprep.subr.bf16.mxu0 0
    %4560 = vmatpush1.bf16.msra.mxu0 %v4539
    %4561 = vmatprep.subr.bf16.mxu0 0
    %4562 = vmatpush1.bf16.msra.mxu0 %v4540
    %4563 = vmatprep.subr.bf16.mxu0 0
    %4564 = vmatpush1.bf16.msra.mxu0 %v4541
    %4565 = vmatprep.subr.bf16.mxu0 0
    %4566 = vmatpush1.bf16.msra.mxu0 %v4542
    %4567 = vmatprep.subr.bf16.mxu0 0
    %4568 = vmatpush1.bf16.msra.mxu0 0
    %4569 = vmatprep.subr.bf16.mxu0 0
    %4570 = vmatpush1.bf16.msra.mxu0 0
    %4571 = vmatprep.subr.bf16.mxu0 0
    %4572 = vmatpush1.bf16.msra.mxu0 0
    %4573 = vmatprep.subr.bf16.mxu0 0
    %4574 = vmatpush1.bf16.msra.mxu0 0
    %4575 = vmatprep.subr.bf16.mxu0 0
    %4576 = vmatpush1.bf16.msra.mxu0 0
    %4577 = vmatprep.subr.bf16.mxu0 0
    %4578 = vmatpush1.bf16.msra.mxu0 0
    %4579 = vmatprep.subr.bf16.mxu0 0
    %4580 = vmatpush1.bf16.msra.mxu0 0
    %4581 = vmatprep.subr.bf16.mxu0 0
    %4582 = vmatpush1.bf16.msra.mxu0 0
    %4583 = vmatprep.mubr.bf16.mxu0 0
    %4584 = vmatmul.mubr.bf16.gmra.mrb[0].mxu0 %v4479
    %v4585 = vpop.f32.mrb[0].mxu0
    %v4586 = vadd.f32 %v4501, %v4585
    %v4587 = vpop.f32.mrb[0].mxu0
    %v4588 = vpop.f32.mrb[0].mxu0
    %v4589 = vpop.f32.mrb[0].mxu0
    %4590 = vdwg.mxu0
    %v4591 = vxor.u32 %v4586, 2147483648
    %v4592 = vmul.f32 %v4591, 1.442695
    %v4593 = vpow.pop %v4592
    %v4594 = vadd.f32 %v4593, 1.0
    %v4595 = vrcp.pop %v4594
    %v4596 = vmul.f32 1.0, %v4595
    %vm4597 = vcmask 1024
    %4598 = vst.msk [vmem:[%s75] sm:$0x3] %vm4597, %v4596
    // Predicated region
    $region270: #{coatnet_forward.1} parent=1 // pred_check
      _
    $region271: #{coatnet_forward.1} parent=1 // pred_check_branch
      %4600 = sbr.rel (0) target = $region273
    $region272: #{coatnet_forward.1} parent=1 // pred_region
      _
    $region273: #{coatnet_forward.1} parent=1 // pred_fallthru
      _
    // Predicated region
    $region274: #{coatnet_forward.1} parent=1 // pred_check
      _
    $region275: #{coatnet_forward.1} parent=1 // pred_check_branch
      %4602 = sbr.rel (0) target = $region277
    $region276: #{coatnet_forward.1} parent=1 // pred_region
      _
    $region277: #{coatnet_forward.1} parent=1 // pred_fallthru
      _
    %4603 = vsyncpa [#allocation4], 1
    %4604 = vsyncpa [#allocation6], 1
    %4605 = vsyncpa [#allocation9], 1
    %4606 = vsyncpa [#allocation12], 1
    %4607 = vsyncpa [#allocation15], 1
    %4608 = vsyncpa [#allocation18], 1
    %4609 = vsyncpa [#allocation21], 1
    %4610 = vsyncpa [#allocation24], 1
    %4611 = vsyncpa [#allocation27], 1
    %4612 = vsyncpa [#allocation30], 1
    %4613 = vsyncpa [#allocation33], 1
    %4614 = vsyncpa [#allocation36], 1
    %4615 = vsyncpa [#allocation39], 1
    %4616 = vsyncpa [#allocation42], 1
    %4617 = vsyncpa [#allocation45], 1
    %4618 = vsyncpa [#allocation48], 1

</llo_original>
